<compile_context>
chip_gen: v5e
topology: v5e:2x2
jax: 0.10.0
libtpu: 0.0.40
codegen_flags: <defaults>
</compile_context>

<pallas_src>
import math
from functools import partial

import jax
import jax.numpy as jnp
from jax.experimental import pallas as pl
from jax.experimental.pallas import tpu as pltpu


# --------------------------- in-kernel helpers ------------------------------

def _add_layer_norm(x, y, gamma, beta):
    """AddNorm: LayerNorm(dropout(Y) + X), dropout p=0, eps=1e-5."""
    s = x + y
    mu = jnp.mean(s, axis=-1, keepdims=True)
    var = jnp.mean((s - mu) ** 2, axis=-1, keepdims=True)
    return (s - mu) * jax.lax.rsqrt(var + 1e-5) * gamma + beta


def _attention(q, k, v, wo, keep_mask, num_heads, aw_ref):
    """Multi-head attention core for one batch element.

    q:(Sq,H) f32 (already scaled by 1/sqrt(hd)), k/v:(Sk,H) f32, wo:(H,H) bf16,
    keep_mask:(Sq,Sk) bool (True = keep), aw_ref: optional (nh,Sq,Sk) prob output.
    Returns (Sq,H) f32 after the output projection.
    """
    Sq, H = q.shape
    hd = H // num_heads
    ctx_parts = []
    for h in range(num_heads):
        sl = slice(h * hd, (h + 1) * hd)
        qh = q[:, sl].astype(jnp.bfloat16)
        kh = k[:, sl].astype(jnp.bfloat16)
        vh = v[:, sl].astype(jnp.bfloat16)
        # scores = Qh @ Kh^T (contract hd with hd, no explicit transpose)
        s = jax.lax.dot_general(qh, kh, (((1,), (1,)), ((), ())),
                                preferred_element_type=jnp.float32)      # (Sq,Sk)
        s = jnp.where(keep_mask, s, -1e6)
        m = jnp.max(s, axis=-1, keepdims=True)
        e = jnp.exp(s - m)
        p = e * pl.reciprocal(jnp.sum(e, axis=-1, keepdims=True), approx=True)
        if aw_ref is not None:
            aw_ref[h] = p.astype(aw_ref.dtype)
        ctx_parts.append(jnp.dot(p.astype(jnp.bfloat16), vh,
                                 preferred_element_type=jnp.float32))    # (Sq,hd)
    ctx = jnp.concatenate(ctx_parts, axis=-1)                            # (Sq,H)
    return jnp.dot(ctx.astype(jnp.bfloat16), wo,
                   preferred_element_type=jnp.float32)                   # (Sq,H)


# ------------------------- fused DecoderBlock kernel -------------------------

def _decoder_block_kernel(vl_ref, x_ref, enc_ref, *refs, num_heads, scale,
                          emb_scale, first_block, collect_attn):
    idx = 0
    pos_ref = None
    if first_block:
        pos_ref = refs[idx]; idx += 1
    (wqkv1_ref, wo1_ref, g1_ref, b1_ref,
     wq2_ref, wkv2_ref, wo2_ref, g2_ref, b2_ref,
     fw1_ref, fb1_ref, fw2_ref, fb2_ref, g3_ref, b3_ref) = refs[idx:idx + 15]
    idx += 15
    y_ref = refs[idx]; idx += 1
    x0_ref = None
    if first_block:
        x0_ref = refs[idx]; idx += 1
    aw1_ref = aw2_ref = None
    if collect_attn:
        aw1_ref, aw2_ref = refs[idx], refs[idx + 1]

    bi = pl.program_id(0)
    S, H = x_ref.shape
    enc_S = enc_ref.shape[0]

    x = x_ref[...].astype(jnp.float32)                       # (S,H)
    if first_block:
        # X = embedding * sqrt(num_hiddens) + positional_encoding (dropout p=0)
        x = x * emb_scale + pos_ref[...]
        x0_ref[...] = x.astype(x0_ref.dtype)                 # state[2][0] (block input)

    # --- self-attention (causal mask built in-kernel) + AddNorm --------------
    qkv = jnp.dot(x.astype(jnp.bfloat16), wqkv1_ref[...],
                  preferred_element_type=jnp.float32)        # (S,3H)
    row = jax.lax.broadcasted_iota(jnp.int32, (S, S), 0)
    col = jax.lax.broadcasted_iota(jnp.int32, (S, S), 1)
    a1 = _attention(qkv[:, :H] * scale, qkv[:, H:2 * H], qkv[:, 2 * H:3 * H],
                    wo1_ref[...], row >= col, num_heads, aw1_ref)
    y = _add_layer_norm(x, a1, g1_ref[...], b1_ref[...])

    # --- cross-attention (mask from enc_valid_lens in SMEM) + AddNorm --------
    q2 = jnp.dot(y.astype(jnp.bfloat16), wq2_ref[...],
                 preferred_element_type=jnp.float32)         # (S,H)
    kv2 = jnp.dot(enc_ref[...], wkv2_ref[...],
                  preferred_element_type=jnp.float32)        # (enc_S,2H)
    kcol = jax.lax.broadcasted_iota(jnp.int32, (S, enc_S), 1)
    a2 = _attention(q2 * scale, kv2[:, :H], kv2[:, H:2 * H],
                    wo2_ref[...], kcol < vl_ref[bi], num_heads, aw2_ref)
    z = _add_layer_norm(y, a2, g2_ref[...], b2_ref[...])

    # --- position-wise FFN + AddNorm -----------------------------------------
    h = jnp.maximum(
        jnp.dot(z.astype(jnp.bfloat16), fw1_ref[...],
                preferred_element_type=jnp.float32) + fb1_ref[...], 0.0)
    f = jnp.dot(h.astype(jnp.bfloat16), fw2_ref[...],
                preferred_element_type=jnp.float32) + fb2_ref[...]
    y_ref[...] = _add_layer_norm(z, f, g3_ref[...], b3_ref[...]).astype(y_ref.dtype)


def decoder_block(x, enc, enc_valid_lens, lp, num_heads, *,
                  pos=None, emb_scale=1.0, collect_attn=False):
    """One fused DecoderBlock forward.

    x:(B,S,H) bf16 block input, enc:(B,enc_S,H) bf16.  If `pos` is given this is
    the first block: the kernel applies x*emb_scale + pos and also emits that
    tensor (the block's effective input / state entry) as an extra output.
    Returns (y, x_in_or_None, aw_self_or_None, aw_cross_or_None).
    """
    B, S, H = x.shape
    enc_S = enc.shape[1]
    hd = H // num_heads
    scale = 1.0 / math.sqrt(hd)
    first_block = pos is not None

    weights = (lp["wqkv1"], lp["wo1"], lp["ln1_g"], lp["ln1_b"],
               lp["wq2"], lp["wkv2"], lp["wo2"], lp["ln2_g"], lp["ln2_b"],
               lp["ffn_w1"], lp["ffn_b1"], lp["ffn_w2"], lp["ffn_b2"],
               lp["ln3_g"], lp["ln3_b"])

    act_map = lambda bi, vl: (bi, 0, 0)        # per-batch activation blocks
    attw_map = lambda bi, vl: (bi, 0, 0, 0)
    w_map = lambda bi, vl: (0, 0)              # resident 2-D weight blocks

    operands = [x, enc]
    in_specs = [pl.BlockSpec((None, S, H), act_map),
                pl.BlockSpec((None, enc_S, H), act_map)]
    if first_block:
        operands.append(pos)
        in_specs.append(pl.BlockSpec((S, H), w_map))
    operands.extend(weights)
    in_specs.extend(pl.BlockSpec(w.shape, w_map) for w in weights)

    out_shape = [jax.ShapeDtypeStruct((B, S, H), jnp.bfloat16)]
    out_specs = [pl.BlockSpec((None, S, H), act_map)]
    if first_block:
        out_shape.append(jax.ShapeDtypeStruct((B, S, H), jnp.bfloat16))
        out_specs.append(pl.BlockSpec((None, S, H), act_map))
    if collect_attn:
        out_shape += [jax.ShapeDtypeStruct((B, num_heads, S, S), jnp.bfloat16),
                      jax.ShapeDtypeStruct((B, num_heads, S, enc_S), jnp.bfloat16)]
        out_specs += [pl.BlockSpec((None, num_heads, S, S), attw_map),
                      pl.BlockSpec((None, num_heads, S, enc_S), attw_map)]

    # Explicit scoped-VMEM budget from the actual per-step footprint (+ headroom).
    act_bytes = (S * H + enc_S * H + S * H) * 2
    if first_block:
        act_bytes += S * H * 4 + S * H * 2
    if collect_attn:
        act_bytes += num_heads * S * (S + enc_S) * 2
    w_bytes = sum(math.prod(w.shape) * w.dtype.itemsize for w in weights)
    vmem_limit = int(min(max(4 * (act_bytes + w_bytes), 16 << 20), 64 << 20))

    results = pl.pallas_call(
        partial(_decoder_block_kernel, num_heads=num_heads, scale=scale,
                emb_scale=float(emb_scale), first_block=first_block,
                collect_attn=collect_attn),
        out_shape=tuple(out_shape),
        grid_spec=pltpu.PrefetchScalarGridSpec(
            num_scalar_prefetch=1,
            grid=(B,),
            in_specs=in_specs,
            out_specs=tuple(out_specs)),
        compiler_params=pltpu.CompilerParams(
            dimension_semantics=("parallel",),
            vmem_limit_bytes=vmem_limit),
    )(enc_valid_lens, *operands)

    i = 0
    y = results[i]; i += 1
    x_in = None
    if first_block:
        x_in = results[i]; i += 1
    aw1 = aw2 = None
    if collect_attn:
        aw1, aw2 = results[i], results[i + 1]
    return y, x_in, aw1, aw2


# --------------------------- final vocab projection ---------------------------

def _dense_kernel(x_ref, w_ref, b_ref, o_ref):
    o_ref[...] = (jnp.dot(x_ref[...], w_ref[...],
                          preferred_element_type=jnp.float32) + b_ref[...])


def dense(x2d, w, b):
    """y = x @ w + b, tiled over rows AND the vocab dim.
    x:(M,H) bf16, w:(H,N) bf16, b:(1,N) f32 -> (M,N) f32."""
    M, H = x2d.shape
    N = w.shape[1]
    bm = M if M <= 512 else 512          # 512 rows per step (multiple of 8)
    bn = N if N <= 2048 else 2048        # 128-multiple vocab tile at real sizes
    grid = (pl.cdiv(M, bm), pl.cdiv(N, bn))

    foot = bm * H * 2 + H * bn * 2 + bn * 4 + bm * bn * 4
    vmem_limit = int(min(max(4 * foot, 16 << 20), 64 << 20))

    return pl.pallas_call(
        _dense_kernel,
        out_shape=jax.ShapeDtypeStruct((M, N), jnp.float32),
        grid=grid,
        in_specs=[pl.BlockSpec((bm, H), lambda i, j: (i, 0)),
                  pl.BlockSpec((H, bn), lambda i, j: (0, j)),
                  pl.BlockSpec((1, bn), lambda i, j: (0, j))],
        out_specs=pl.BlockSpec((bm, bn), lambda i, j: (i, j)),
        compiler_params=pltpu.CompilerParams(
            dimension_semantics=("parallel", "parallel"),
            vmem_limit_bytes=vmem_limit),
    )(x2d, w, b)


# ------------------------------- glue (JAX) -----------------------------------

def positional_encoding(S, H):
    pos = jnp.arange(S, dtype=jnp.float32)[:, None]
    div = jnp.power(10000.0, jnp.arange(0, H, 2, dtype=jnp.float32) / H)
    angles = pos / div                          # (S, H//2)  (H assumed even)
    P = jnp.zeros((S, H), jnp.float32)
    P = P.at[:, 0::2].set(jnp.sin(angles))
    P = P.at[:, 1::2].set(jnp.cos(angles))
    return P


def decoder_forward(params, tokens, enc_outputs, enc_valid_lens, num_heads,
                    collect_attention=False):
    B, S = tokens.shape
    H = params["embedding"].shape[1]

    # TODO(synk): embedding gather stays in XLA (a DMA-gather Pallas kernel is
    # unnecessary at these sizes).
    emb = jnp.take(params["embedding"], tokens, axis=0).astype(jnp.bfloat16)
    enc_bf = enc_outputs.astype(jnp.bfloat16)
    pos = positional_encoding(S, H)

    x = emb
    key_values_state = []
    attn_self, attn_cross = [], []
    for li, lp in enumerate(params["layers"]):
        y, x_in, aw1, aw2 = decoder_block(
            x, enc_bf, enc_valid_lens, lp, num_heads,
            pos=pos if li == 0 else None,
            emb_scale=math.sqrt(H),
            collect_attn=collect_attention)
        key_values_state.append(x_in if x_in is not None else x)  # state[2][i]
        if collect_attention:
            attn_self.append(aw1.reshape(B * num_heads, S, S))
            attn_cross.append(aw2.reshape(B * num_heads, S, -1))
        x = y

    logits = dense(x.reshape(B * S, H), params["dense_w"],
                   params["dense_b"]).reshape(B, S, -1)
    state = [enc_outputs, enc_valid_lens, key_values_state]
    attn = (attn_self, attn_cross) if collect_attention else None
    return logits, state, attn


# -------------------------------- parameters ----------------------------------

def linear_params(key, fan_in, fan_out, bias=True):
    kw, kb = jax.random.split(key)
    bound = 1.0 / math.sqrt(fan_in)
    w = jax.random.uniform(kw, (fan_in, fan_out), jnp.float32, -bound, bound)
    b = (jax.random.uniform(kb, (fan_out,), jnp.float32, -bound, bound)
         if bias else jnp.zeros((fan_out,), jnp.float32))
    return w, b


def init_decoder_params(key, vocab_size, num_hiddens, ffn_num_hiddens,
                        num_heads, num_layers):
    H = num_hiddens
    keys = jax.random.split(key, 2 + num_layers)
    params = {"embedding": jax.random.normal(keys[0], (vocab_size, H), jnp.float32)}
    dw, db = linear_params(keys[1], H, vocab_size, bias=True)
    params["dense_w"] = dw.astype(jnp.bfloat16)       # MXU operands stored bf16
    params["dense_b"] = db.reshape(1, vocab_size)

    layers = []
    for li in range(num_layers):
        lk = jax.random.split(keys[2 + li], 10)
        wq1, _ = linear_params(lk[0], H, H, bias=False)
        wk1, _ = linear_params(lk[1], H, H, bias=False)
        wv1, _ = linear_params(lk[2], H, H, bias=False)
        wo1, _ = linear_params(lk[3], H, H, bias=False)
        wq2, _ = linear_params(lk[4], H, H, bias=False)
        wk2, _ = linear_params(lk[5], H, H, bias=False)
        wv2, _ = linear_params(lk[6], H, H, bias=False)
        wo2, _ = linear_params(lk[7], H, H, bias=False)
        fw1, fb1 = linear_params(lk[8], H, ffn_num_hiddens, bias=True)
        fw2, fb2 = linear_params(lk[9], ffn_num_hiddens, H, bias=True)
        ones = jnp.ones((1, H), jnp.float32)
        zeros = jnp.zeros((1, H), jnp.float32)
        layers.append({
            # fused lane-dense weights (no per-head lane padding)
            "wqkv1": jnp.concatenate([wq1, wk1, wv1], axis=1).astype(jnp.bfloat16),
            "wo1": wo1.astype(jnp.bfloat16),
            "wq2": wq2.astype(jnp.bfloat16),
            "wkv2": jnp.concatenate([wk2, wv2], axis=1).astype(jnp.bfloat16),
            "wo2": wo2.astype(jnp.bfloat16),
            "ffn_w1": fw1.astype(jnp.bfloat16), "ffn_b1": fb1.reshape(1, -1),
            "ffn_w2": fw2.astype(jnp.bfloat16), "ffn_b2": fb2.reshape(1, -1),
            "ln1_g": ones, "ln1_b": zeros,
            "ln2_g": ones, "ln2_b": zeros,
            "ln3_g": ones, "ln3_b": zeros,
        })
    params["layers"] = layers
    return params


# ----------------------------------- main --------------------------------------

if __name__ == "__main__":
    VOCAB, H, FFN_H, HEADS, LAYERS = 32, 32, 64, 4, 2
    B, S, ENC_S = 2, 8, 8

    key = jax.random.PRNGKey(0)
    kp, kt, ke = jax.random.split(key, 3)
    params = init_decoder_params(kp, VOCAB, H, FFN_H, HEADS, LAYERS)

    tokens = jax.random.randint(kt, (B, S), 0, VOCAB, dtype=jnp.int32)
    enc_outputs = jax.random.normal(ke, (B, ENC_S, H), jnp.float32)
    enc_valid_lens = jnp.array([8, 5], dtype=jnp.int32)

    fwd = jax.jit(decoder_forward, static_argnums=(4, 5))

    # Fast path: no attention-probability HBM writeback.
    logits, state, attn = fwd(params, tokens, enc_outputs, enc_valid_lens, HEADS, False)
    jax.block_until_ready(logits)
    assert logits.shape == (B, S, VOCAB)
    assert state[2][0].shape == (B, S, H)
    assert attn is None
    assert bool(jnp.all(jnp.isfinite(logits)))

    # Debug path: also return attention weights (matches the PyTorch property).
    logits2, state2, attn2 = fwd(params, tokens, enc_outputs, enc_valid_lens, HEADS, True)
    jax.block_until_ready(logits2)
    assert attn2[0][0].shape == (B * HEADS, S, S)
    assert attn2[1][0].shape == (B * HEADS, S, ENC_S)
    row_sums = jnp.sum(attn2[0][0].astype(jnp.float32), axis=-1)
    assert bool(jnp.all(jnp.abs(row_sums - 1.0) < 2e-2))   # approx-reciprocal softmax
    assert bool(jnp.all(jnp.abs(logits2 - logits) < 1e-3))

    print("KERNEL_OK")
</pallas_src>

<mosaic_0001>
module attributes {stable_mosaic.version = 11 : i64} {
  func.func @_decoder_block_kernel(%arg0: i32, %arg1: memref<2xi32, #tpu.memory_space<smem>>, %arg2: memref<1x8x32xbf16, #tpu.memory_space<vmem>>, %arg3: memref<1x8x32xbf16, #tpu.memory_space<vmem>>, %arg4: memref<32x96xbf16, #tpu.memory_space<vmem>>, %arg5: memref<32x32xbf16, #tpu.memory_space<vmem>>, %arg6: memref<1x32xf32, #tpu.memory_space<vmem>>, %arg7: memref<1x32xf32, #tpu.memory_space<vmem>>, %arg8: memref<32x32xbf16, #tpu.memory_space<vmem>>, %arg9: memref<32x64xbf16, #tpu.memory_space<vmem>>, %arg10: memref<32x32xbf16, #tpu.memory_space<vmem>>, %arg11: memref<1x32xf32, #tpu.memory_space<vmem>>, %arg12: memref<1x32xf32, #tpu.memory_space<vmem>>, %arg13: memref<32x64xbf16, #tpu.memory_space<vmem>>, %arg14: memref<1x64xf32, #tpu.memory_space<vmem>>, %arg15: memref<64x32xbf16, #tpu.memory_space<vmem>>, %arg16: memref<1x32xf32, #tpu.memory_space<vmem>>, %arg17: memref<1x32xf32, #tpu.memory_space<vmem>>, %arg18: memref<1x32xf32, #tpu.memory_space<vmem>>, %arg19: memref<1x8x32xbf16, #tpu.memory_space<vmem>>) attributes {dimension_semantics = [#tpu.dimension_semantics<parallel>], iteration_bounds = array<i64: 2>, scalar_prefetch = 1 : i64, scratch_operands = 0 : i64, tpu.core_type = #tpu.core_type<tc>, window_params = [{transform_indices = @transform_0, window_bounds = array<i64: 1, 8, 32>}, {transform_indices = @transform_1, window_bounds = array<i64: 1, 8, 32>}, {pipeline_mode = #tpu.pipeline_mode<synchronous>, transform_indices = @transform_2, window_bounds = array<i64: 32, 96>}, {pipeline_mode = #tpu.pipeline_mode<synchronous>, transform_indices = @transform_3, window_bounds = array<i64: 32, 32>}, {pipeline_mode = #tpu.pipeline_mode<synchronous>, transform_indices = @transform_4, window_bounds = array<i64: 1, 32>}, {pipeline_mode = #tpu.pipeline_mode<synchronous>, transform_indices = @transform_5, window_bounds = array<i64: 1, 32>}, {pipeline_mode = #tpu.pipeline_mode<synchronous>, transform_indices = @transform_6, window_bounds = array<i64: 32, 32>}, {pipeline_mode = #tpu.pipeline_mode<synchronous>, transform_indices = @transform_7, window_bounds = array<i64: 32, 64>}, {pipeline_mode = #tpu.pipeline_mode<synchronous>, transform_indices = @transform_8, window_bounds = array<i64: 32, 32>}, {pipeline_mode = #tpu.pipeline_mode<synchronous>, transform_indices = @transform_9, window_bounds = array<i64: 1, 32>}, {pipeline_mode = #tpu.pipeline_mode<synchronous>, transform_indices = @transform_10, window_bounds = array<i64: 1, 32>}, {pipeline_mode = #tpu.pipeline_mode<synchronous>, transform_indices = @transform_11, window_bounds = array<i64: 32, 64>}, {pipeline_mode = #tpu.pipeline_mode<synchronous>, transform_indices = @transform_12, window_bounds = array<i64: 1, 64>}, {pipeline_mode = #tpu.pipeline_mode<synchronous>, transform_indices = @transform_13, window_bounds = array<i64: 64, 32>}, {pipeline_mode = #tpu.pipeline_mode<synchronous>, transform_indices = @transform_14, window_bounds = array<i64: 1, 32>}, {pipeline_mode = #tpu.pipeline_mode<synchronous>, transform_indices = @transform_15, window_bounds = array<i64: 1, 32>}, {pipeline_mode = #tpu.pipeline_mode<synchronous>, transform_indices = @transform_16, window_bounds = array<i64: 1, 32>}, {transform_indices = @transform_17, window_bounds = array<i64: 1, 8, 32>}]} {
    %c0 = arith.constant 0 : index
    %c0_0 = arith.constant 0 : index
    %c0_1 = arith.constant 0 : index
    %0 = vector.load %arg2[%c0, %c0_0, %c0_1] : memref<1x8x32xbf16, #tpu.memory_space<vmem>>, vector<1x8x32xbf16>
    %1 = vector.shape_cast %0 : vector<1x8x32xbf16> to vector<8x32xbf16>
    %2 = arith.extf %1 : vector<8x32xbf16> to vector<8x32xf32>
    %3 = arith.truncf %2 : vector<8x32xf32> to vector<8x32xbf16>
    %c0_2 = arith.constant 0 : index
    %c0_3 = arith.constant 0 : index
    %4 = vector.load %arg4[%c0_2, %c0_3] : memref<32x96xbf16, #tpu.memory_space<vmem>>, vector<32x96xbf16>
    %cst = arith.constant dense<0.000000e+00> : vector<8x96xf32>
    %5 = tpu.matmul %3, %4, %cst {dimension_numbers = #tpu.dot_dimension_numbers<[1], [0], [0], [1], [0, 0, 1, 1], [], []>} : vector<8x32xbf16>, vector<32x96xbf16>, vector<8x96xf32> -> vector<8x96xf32>
    %6 = tpu.iota {dimensions = array<i32: 0>} : vector<8x8xi32>
    %7 = tpu.iota {dimensions = array<i32: 1>} : vector<8x8xi32>
    %8 = vector.extract_strided_slice %5 {offsets = [0, 0], sizes = [8, 32], strides = [1, 1]} : vector<8x96xf32> to vector<8x32xf32>
    %cst_4 = arith.constant 0.353553385 : f32
    %9 = vector.broadcast %cst_4 : f32 to vector<8x32xf32>
    %10 = arith.mulf %8, %9 : vector<8x32xf32>
    %11 = vector.extract_strided_slice %5 {offsets = [0, 32], sizes = [8, 32], strides = [1, 1]} : vector<8x96xf32> to vector<8x32xf32>
    %12 = vector.extract_strided_slice %5 {offsets = [0, 64], sizes = [8, 32], strides = [1, 1]} : vector<8x96xf32> to vector<8x32xf32>
    %c0_5 = arith.constant 0 : index
    %c0_6 = arith.constant 0 : index
    %13 = vector.load %arg5[%c0_5, %c0_6] : memref<32x32xbf16, #tpu.memory_space<vmem>>, vector<32x32xbf16>
    %14 = arith.cmpi sge, %6, %7 : vector<8x8xi32>
    %15 = vector.extract_strided_slice %10 {offsets = [0, 0], sizes = [8, 8], strides = [1, 1]} : vector<8x32xf32> to vector<8x8xf32>
    %16 = arith.truncf %15 : vector<8x8xf32> to vector<8x8xbf16>
    %17 = vector.extract_strided_slice %11 {offsets = [0, 0], sizes = [8, 8], strides = [1, 1]} : vector<8x32xf32> to vector<8x8xf32>
    %18 = arith.truncf %17 : vector<8x8xf32> to vector<8x8xbf16>
    %19 = vector.extract_strided_slice %12 {offsets = [0, 0], sizes = [8, 8], strides = [1, 1]} : vector<8x32xf32> to vector<8x8xf32>
    %20 = arith.truncf %19 : vector<8x8xf32> to vector<8x8xbf16>
    %cst_7 = arith.constant dense<0.000000e+00> : vector<8x8xf32>
    %21 = tpu.matmul %16, %18, %cst_7 {dimension_numbers = #tpu.dot_dimension_numbers<[1], [1], [0], [0], [0, 0, 1, 0], [], []>} : vector<8x8xbf16>, vector<8x8xbf16>, vector<8x8xf32> -> vector<8x8xf32>
    %cst_8 = arith.constant -1.000000e+06 : f32
    %22 = vector.broadcast %cst_8 : f32 to vector<8x8xf32>
    %23 = arith.select %14, %21, %22 : vector<8x8xi1>, vector<8x8xf32>
    %cst_9 = arith.constant dense<0xFF800000> : vector<8xf32>
    %24 = vector.multi_reduction <maximumf>, %23, %cst_9 [1] : vector<8x8xf32> to vector<8xf32>
    %25 = vector.shape_cast %24 : vector<8xf32> to vector<8x1xf32>
    %26 = vector.broadcast %25 : vector<8x1xf32> to vector<8x8xf32>
    %27 = arith.subf %23, %26 : vector<8x8xf32>
    %28 = math.exp %27 : vector<8x8xf32>
    %cst_10 = arith.constant dense<0.000000e+00> : vector<8xf32>
    %29 = vector.multi_reduction <add>, %28, %cst_10 [1] : vector<8x8xf32> to vector<8xf32>
    %30 = vector.shape_cast %29 : vector<8xf32> to vector<8x1xf32>
    %31 = tpu.reciprocal %30 {approx = true} : vector<8x1xf32> -> vector<8x1xf32>
    %32 = vector.broadcast %31 : vector<8x1xf32> to vector<8x8xf32>
    %33 = arith.mulf %28, %32 : vector<8x8xf32>
    %34 = arith.truncf %33 : vector<8x8xf32> to vector<8x8xbf16>
    %cst_11 = arith.constant dense<0.000000e+00> : vector<8x8xf32>
    %35 = tpu.matmul %34, %20, %cst_11 {dimension_numbers = #tpu.dot_dimension_numbers<[1], [0], [0], [1], [0, 0, 1, 1], [], []>} : vector<8x8xbf16>, vector<8x8xbf16>, vector<8x8xf32> -> vector<8x8xf32>
    %36 = vector.extract_strided_slice %10 {offsets = [0, 8], sizes = [8, 8], strides = [1, 1]} : vector<8x32xf32> to vector<8x8xf32>
    %37 = arith.truncf %36 : vector<8x8xf32> to vector<8x8xbf16>
    %38 = vector.extract_strided_slice %11 {offsets = [0, 8], sizes = [8, 8], strides = [1, 1]} : vector<8x32xf32> to vector<8x8xf32>
    %39 = arith.truncf %38 : vector<8x8xf32> to vector<8x8xbf16>
    %40 = vector.extract_strided_slice %12 {offsets = [0, 8], sizes = [8, 8], strides = [1, 1]} : vector<8x32xf32> to vector<8x8xf32>
    %41 = arith.truncf %40 : vector<8x8xf32> to vector<8x8xbf16>
    %cst_12 = arith.constant dense<0.000000e+00> : vector<8x8xf32>
    %42 = tpu.matmul %37, %39, %cst_12 {dimension_numbers = #tpu.dot_dimension_numbers<[1], [1], [0], [0], [0, 0, 1, 0], [], []>} : vector<8x8xbf16>, vector<8x8xbf16>, vector<8x8xf32> -> vector<8x8xf32>
    %cst_13 = arith.constant -1.000000e+06 : f32
    %43 = vector.broadcast %cst_13 : f32 to vector<8x8xf32>
    %44 = arith.select %14, %42, %43 : vector<8x8xi1>, vector<8x8xf32>
    %cst_14 = arith.constant dense<0xFF800000> : vector<8xf32>
    %45 = vector.multi_reduction <maximumf>, %44, %cst_14 [1] : vector<8x8xf32> to vector<8xf32>
    %46 = vector.shape_cast %45 : vector<8xf32> to vector<8x1xf32>
    %47 = vector.broadcast %46 : vector<8x1xf32> to vector<8x8xf32>
    %48 = arith.subf %44, %47 : vector<8x8xf32>
    %49 = math.exp %48 : vector<8x8xf32>
    %cst_15 = arith.constant dense<0.000000e+00> : vector<8xf32>
    %50 = vector.multi_reduction <add>, %49, %cst_15 [1] : vector<8x8xf32> to vector<8xf32>
    %51 = vector.shape_cast %50 : vector<8xf32> to vector<8x1xf32>
    %52 = tpu.reciprocal %51 {approx = true} : vector<8x1xf32> -> vector<8x1xf32>
    %53 = vector.broadcast %52 : vector<8x1xf32> to vector<8x8xf32>
    %54 = arith.mulf %49, %53 : vector<8x8xf32>
    %55 = arith.truncf %54 : vector<8x8xf32> to vector<8x8xbf16>
    %cst_16 = arith.constant dense<0.000000e+00> : vector<8x8xf32>
    %56 = tpu.matmul %55, %41, %cst_16 {dimension_numbers = #tpu.dot_dimension_numbers<[1], [0], [0], [1], [0, 0, 1, 1], [], []>} : vector<8x8xbf16>, vector<8x8xbf16>, vector<8x8xf32> -> vector<8x8xf32>
    %57 = vector.extract_strided_slice %10 {offsets = [0, 16], sizes = [8, 8], strides = [1, 1]} : vector<8x32xf32> to vector<8x8xf32>
    %58 = arith.truncf %57 : vector<8x8xf32> to vector<8x8xbf16>
    %59 = vector.extract_strided_slice %11 {offsets = [0, 16], sizes = [8, 8], strides = [1, 1]} : vector<8x32xf32> to vector<8x8xf32>
    %60 = arith.truncf %59 : vector<8x8xf32> to vector<8x8xbf16>
    %61 = vector.extract_strided_slice %12 {offsets = [0, 16], sizes = [8, 8], strides = [1, 1]} : vector<8x32xf32> to vector<8x8xf32>
    %62 = arith.truncf %61 : vector<8x8xf32> to vector<8x8xbf16>
    %cst_17 = arith.constant dense<0.000000e+00> : vector<8x8xf32>
    %63 = tpu.matmul %58, %60, %cst_17 {dimension_numbers = #tpu.dot_dimension_numbers<[1], [1], [0], [0], [0, 0, 1, 0], [], []>} : vector<8x8xbf16>, vector<8x8xbf16>, vector<8x8xf32> -> vector<8x8xf32>
    %cst_18 = arith.constant -1.000000e+06 : f32
    %64 = vector.broadcast %cst_18 : f32 to vector<8x8xf32>
    %65 = arith.select %14, %63, %64 : vector<8x8xi1>, vector<8x8xf32>
    %cst_19 = arith.constant dense<0xFF800000> : vector<8xf32>
    %66 = vector.multi_reduction <maximumf>, %65, %cst_19 [1] : vector<8x8xf32> to vector<8xf32>
    %67 = vector.shape_cast %66 : vector<8xf32> to vector<8x1xf32>
    %68 = vector.broadcast %67 : vector<8x1xf32> to vector<8x8xf32>
    %69 = arith.subf %65, %68 : vector<8x8xf32>
    %70 = math.exp %69 : vector<8x8xf32>
    %cst_20 = arith.constant dense<0.000000e+00> : vector<8xf32>
    %71 = vector.multi_reduction <add>, %70, %cst_20 [1] : vector<8x8xf32> to vector<8xf32>
    %72 = vector.shape_cast %71 : vector<8xf32> to vector<8x1xf32>
    %73 = tpu.reciprocal %72 {approx = true} : vector<8x1xf32> -> vector<8x1xf32>
    %74 = vector.broadcast %73 : vector<8x1xf32> to vector<8x8xf32>
    %75 = arith.mulf %70, %74 : vector<8x8xf32>
    %76 = arith.truncf %75 : vector<8x8xf32> to vector<8x8xbf16>
    %cst_21 = arith.constant dense<0.000000e+00> : vector<8x8xf32>
    %77 = tpu.matmul %76, %62, %cst_21 {dimension_numbers = #tpu.dot_dimension_numbers<[1], [0], [0], [1], [0, 0, 1, 1], [], []>} : vector<8x8xbf16>, vector<8x8xbf16>, vector<8x8xf32> -> vector<8x8xf32>
    %78 = vector.extract_strided_slice %10 {offsets = [0, 24], sizes = [8, 8], strides = [1, 1]} : vector<8x32xf32> to vector<8x8xf32>
    %79 = arith.truncf %78 : vector<8x8xf32> to vector<8x8xbf16>
    %80 = vector.extract_strided_slice %11 {offsets = [0, 24], sizes = [8, 8], strides = [1, 1]} : vector<8x32xf32> to vector<8x8xf32>
    %81 = arith.truncf %80 : vector<8x8xf32> to vector<8x8xbf16>
    %82 = vector.extract_strided_slice %12 {offsets = [0, 24], sizes = [8, 8], strides = [1, 1]} : vector<8x32xf32> to vector<8x8xf32>
    %83 = arith.truncf %82 : vector<8x8xf32> to vector<8x8xbf16>
    %cst_22 = arith.constant dense<0.000000e+00> : vector<8x8xf32>
    %84 = tpu.matmul %79, %81, %cst_22 {dimension_numbers = #tpu.dot_dimension_numbers<[1], [1], [0], [0], [0, 0, 1, 0], [], []>} : vector<8x8xbf16>, vector<8x8xbf16>, vector<8x8xf32> -> vector<8x8xf32>
    %cst_23 = arith.constant -1.000000e+06 : f32
    %85 = vector.broadcast %cst_23 : f32 to vector<8x8xf32>
    %86 = arith.select %14, %84, %85 : vector<8x8xi1>, vector<8x8xf32>
    %cst_24 = arith.constant dense<0xFF800000> : vector<8xf32>
    %87 = vector.multi_reduction <maximumf>, %86, %cst_24 [1] : vector<8x8xf32> to vector<8xf32>
    %88 = vector.shape_cast %87 : vector<8xf32> to vector<8x1xf32>
    %89 = vector.broadcast %88 : vector<8x1xf32> to vector<8x8xf32>
    %90 = arith.subf %86, %89 : vector<8x8xf32>
    %91 = math.exp %90 : vector<8x8xf32>
    %cst_25 = arith.constant dense<0.000000e+00> : vector<8xf32>
    %92 = vector.multi_reduction <add>, %91, %cst_25 [1] : vector<8x8xf32> to vector<8xf32>
    %93 = vector.shape_cast %92 : vector<8xf32> to vector<8x1xf32>
    %94 = tpu.reciprocal %93 {approx = true} : vector<8x1xf32> -> vector<8x1xf32>
    %95 = vector.broadcast %94 : vector<8x1xf32> to vector<8x8xf32>
    %96 = arith.mulf %91, %95 : vector<8x8xf32>
    %97 = arith.truncf %96 : vector<8x8xf32> to vector<8x8xbf16>
    %cst_26 = arith.constant dense<0.000000e+00> : vector<8x8xf32>
    %98 = tpu.matmul %97, %83, %cst_26 {dimension_numbers = #tpu.dot_dimension_numbers<[1], [0], [0], [1], [0, 0, 1, 1], [], []>} : vector<8x8xbf16>, vector<8x8xbf16>, vector<8x8xf32> -> vector<8x8xf32>
    %99 = tpu.concatenate %35, %56, %77, %98 in 1 : vector<8x8xf32>, vector<8x8xf32>, vector<8x8xf32>, vector<8x8xf32> -> vector<8x32xf32>
    %100 = arith.truncf %99 : vector<8x32xf32> to vector<8x32xbf16>
    %cst_27 = arith.constant dense<0.000000e+00> : vector<8x32xf32>
    %101 = tpu.matmul %100, %13, %cst_27 {dimension_numbers = #tpu.dot_dimension_numbers<[1], [0], [0], [1], [0, 0, 1, 1], [], []>} : vector<8x32xbf16>, vector<32x32xbf16>, vector<8x32xf32> -> vector<8x32xf32>
    %c0_28 = arith.constant 0 : index
    %c0_29 = arith.constant 0 : index
    %102 = vector.load %arg6[%c0_28, %c0_29] : memref<1x32xf32, #tpu.memory_space<vmem>>, vector<1x32xf32>
    %c0_30 = arith.constant 0 : index
    %c0_31 = arith.constant 0 : index
    %103 = vector.load %arg7[%c0_30, %c0_31] : memref<1x32xf32, #tpu.memory_space<vmem>>, vector<1x32xf32>
    %104 = arith.addf %2, %101 : vector<8x32xf32>
    %cst_32 = arith.constant dense<0.000000e+00> : vector<8xf32>
    %105 = vector.multi_reduction <add>, %104, %cst_32 [1] : vector<8x32xf32> to vector<8xf32>
    %106 = vector.shape_cast %105 : vector<8xf32> to vector<8x1xf32>
    %cst_33 = arith.constant 3.200000e+01 : f32
    %107 = vector.broadcast %cst_33 : f32 to vector<8x1xf32>
    %108 = arith.divf %106, %107 : vector<8x1xf32>
    %109 = vector.broadcast %108 : vector<8x1xf32> to vector<8x32xf32>
    %110 = arith.subf %104, %109 : vector<8x32xf32>
    %111 = arith.mulf %110, %110 : vector<8x32xf32>
    %cst_34 = arith.constant dense<0.000000e+00> : vector<8xf32>
    %112 = vector.multi_reduction <add>, %111, %cst_34 [1] : vector<8x32xf32> to vector<8xf32>
    %113 = vector.shape_cast %112 : vector<8xf32> to vector<8x1xf32>
    %cst_35 = arith.constant 3.200000e+01 : f32
    %114 = vector.broadcast %cst_35 : f32 to vector<8x1xf32>
    %115 = arith.divf %113, %114 : vector<8x1xf32>
    %116 = vector.broadcast %108 : vector<8x1xf32> to vector<8x32xf32>
    %117 = arith.subf %104, %116 : vector<8x32xf32>
    %cst_36 = arith.constant 9.99999974E-6 : f32
    %118 = vector.broadcast %cst_36 : f32 to vector<8x1xf32>
    %119 = arith.addf %115, %118 : vector<8x1xf32>
    %120 = math.rsqrt %119 : vector<8x1xf32>
    %121 = vector.broadcast %120 : vector<8x1xf32> to vector<8x32xf32>
    %122 = arith.mulf %117, %121 : vector<8x32xf32>
    %123 = vector.broadcast %102 : vector<1x32xf32> to vector<8x32xf32>
    %124 = arith.mulf %122, %123 : vector<8x32xf32>
    %125 = vector.broadcast %103 : vector<1x32xf32> to vector<8x32xf32>
    %126 = arith.addf %124, %125 : vector<8x32xf32>
    %127 = arith.truncf %126 : vector<8x32xf32> to vector<8x32xbf16>
    %c0_37 = arith.constant 0 : index
    %c0_38 = arith.constant 0 : index
    %128 = vector.load %arg8[%c0_37, %c0_38] : memref<32x32xbf16, #tpu.memory_space<vmem>>, vector<32x32xbf16>
    %cst_39 = arith.constant dense<0.000000e+00> : vector<8x32xf32>
    %129 = tpu.matmul %127, %128, %cst_39 {dimension_numbers = #tpu.dot_dimension_numbers<[1], [0], [0], [1], [0, 0, 1, 1], [], []>} : vector<8x32xbf16>, vector<32x32xbf16>, vector<8x32xf32> -> vector<8x32xf32>
    %c0_40 = arith.constant 0 : index
    %c0_41 = arith.constant 0 : index
    %c0_42 = arith.constant 0 : index
    %130 = vector.load %arg3[%c0_40, %c0_41, %c0_42] : memref<1x8x32xbf16, #tpu.memory_space<vmem>>, vector<1x8x32xbf16>
    %131 = vector.shape_cast %130 : vector<1x8x32xbf16> to vector<8x32xbf16>
    %c0_43 = arith.constant 0 : index
    %c0_44 = arith.constant 0 : index
    %132 = vector.load %arg9[%c0_43, %c0_44] : memref<32x64xbf16, #tpu.memory_space<vmem>>, vector<32x64xbf16>
    %cst_45 = arith.constant dense<0.000000e+00> : vector<8x64xf32>
    %133 = tpu.matmul %131, %132, %cst_45 {dimension_numbers = #tpu.dot_dimension_numbers<[1], [0], [0], [1], [0, 0, 1, 1], [], []>} : vector<8x32xbf16>, vector<32x64xbf16>, vector<8x64xf32> -> vector<8x64xf32>
    %134 = tpu.iota {dimensions = array<i32: 1>} : vector<8x8xi32>
    %cst_46 = arith.constant 0.353553385 : f32
    %135 = vector.broadcast %cst_46 : f32 to vector<8x32xf32>
    %136 = arith.mulf %129, %135 : vector<8x32xf32>
    %137 = vector.extract_strided_slice %133 {offsets = [0, 0], sizes = [8, 32], strides = [1, 1]} : vector<8x64xf32> to vector<8x32xf32>
    %138 = vector.extract_strided_slice %133 {offsets = [0, 32], sizes = [8, 32], strides = [1, 1]} : vector<8x64xf32> to vector<8x32xf32>
    %c0_47 = arith.constant 0 : index
    %c0_48 = arith.constant 0 : index
    %139 = vector.load %arg10[%c0_47, %c0_48] : memref<32x32xbf16, #tpu.memory_space<vmem>>, vector<32x32xbf16>
    %140 = arith.index_cast %arg0 : i32 to index
    %141 = memref.load %arg1[%140] : memref<2xi32, #tpu.memory_space<smem>>
    %142 = vector.broadcast %141 : i32 to vector<8x8xi32>
    %143 = arith.cmpi slt, %134, %142 : vector<8x8xi32>
    %144 = vector.extract_strided_slice %136 {offsets = [0, 0], sizes = [8, 8], strides = [1, 1]} : vector<8x32xf32> to vector<8x8xf32>
    %145 = arith.truncf %144 : vector<8x8xf32> to vector<8x8xbf16>
    %146 = vector.extract_strided_slice %137 {offsets = [0, 0], sizes = [8, 8], strides = [1, 1]} : vector<8x32xf32> to vector<8x8xf32>
    %147 = arith.truncf %146 : vector<8x8xf32> to vector<8x8xbf16>
    %148 = vector.extract_strided_slice %138 {offsets = [0, 0], sizes = [8, 8], strides = [1, 1]} : vector<8x32xf32> to vector<8x8xf32>
    %149 = arith.truncf %148 : vector<8x8xf32> to vector<8x8xbf16>
    %cst_49 = arith.constant dense<0.000000e+00> : vector<8x8xf32>
    %150 = tpu.matmul %145, %147, %cst_49 {dimension_numbers = #tpu.dot_dimension_numbers<[1], [1], [0], [0], [0, 0, 1, 0], [], []>} : vector<8x8xbf16>, vector<8x8xbf16>, vector<8x8xf32> -> vector<8x8xf32>
    %cst_50 = arith.constant -1.000000e+06 : f32
    %151 = vector.broadcast %cst_50 : f32 to vector<8x8xf32>
    %152 = arith.select %143, %150, %151 : vector<8x8xi1>, vector<8x8xf32>
    %cst_51 = arith.constant dense<0xFF800000> : vector<8xf32>
    %153 = vector.multi_reduction <maximumf>, %152, %cst_51 [1] : vector<8x8xf32> to vector<8xf32>
    %154 = vector.shape_cast %153 : vector<8xf32> to vector<8x1xf32>
    %155 = vector.broadcast %154 : vector<8x1xf32> to vector<8x8xf32>
    %156 = arith.subf %152, %155 : vector<8x8xf32>
    %157 = math.exp %156 : vector<8x8xf32>
    %cst_52 = arith.constant dense<0.000000e+00> : vector<8xf32>
    %158 = vector.multi_reduction <add>, %157, %cst_52 [1] : vector<8x8xf32> to vector<8xf32>
    %159 = vector.shape_cast %158 : vector<8xf32> to vector<8x1xf32>
    %160 = tpu.reciprocal %159 {approx = true} : vector<8x1xf32> -> vector<8x1xf32>
    %161 = vector.broadcast %160 : vector<8x1xf32> to vector<8x8xf32>
    %162 = arith.mulf %157, %161 : vector<8x8xf32>
    %163 = arith.truncf %162 : vector<8x8xf32> to vector<8x8xbf16>
    %cst_53 = arith.constant dense<0.000000e+00> : vector<8x8xf32>
    %164 = tpu.matmul %163, %149, %cst_53 {dimension_numbers = #tpu.dot_dimension_numbers<[1], [0], [0], [1], [0, 0, 1, 1], [], []>} : vector<8x8xbf16>, vector<8x8xbf16>, vector<8x8xf32> -> vector<8x8xf32>
    %165 = vector.extract_strided_slice %136 {offsets = [0, 8], sizes = [8, 8], strides = [1, 1]} : vector<8x32xf32> to vector<8x8xf32>
    %166 = arith.truncf %165 : vector<8x8xf32> to vector<8x8xbf16>
    %167 = vector.extract_strided_slice %137 {offsets = [0, 8], sizes = [8, 8], strides = [1, 1]} : vector<8x32xf32> to vector<8x8xf32>
    %168 = arith.truncf %167 : vector<8x8xf32> to vector<8x8xbf16>
    %169 = vector.extract_strided_slice %138 {offsets = [0, 8], sizes = [8, 8], strides = [1, 1]} : vector<8x32xf32> to vector<8x8xf32>
    %170 = arith.truncf %169 : vector<8x8xf32> to vector<8x8xbf16>
    %cst_54 = arith.constant dense<0.000000e+00> : vector<8x8xf32>
    %171 = tpu.matmul %166, %168, %cst_54 {dimension_numbers = #tpu.dot_dimension_numbers<[1], [1], [0], [0], [0, 0, 1, 0], [], []>} : vector<8x8xbf16>, vector<8x8xbf16>, vector<8x8xf32> -> vector<8x8xf32>
    %cst_55 = arith.constant -1.000000e+06 : f32
    %172 = vector.broadcast %cst_55 : f32 to vector<8x8xf32>
    %173 = arith.select %143, %171, %172 : vector<8x8xi1>, vector<8x8xf32>
    %cst_56 = arith.constant dense<0xFF800000> : vector<8xf32>
    %174 = vector.multi_reduction <maximumf>, %173, %cst_56 [1] : vector<8x8xf32> to vector<8xf32>
    %175 = vector.shape_cast %174 : vector<8xf32> to vector<8x1xf32>
    %176 = vector.broadcast %175 : vector<8x1xf32> to vector<8x8xf32>
    %177 = arith.subf %173, %176 : vector<8x8xf32>
    %178 = math.exp %177 : vector<8x8xf32>
    %cst_57 = arith.constant dense<0.000000e+00> : vector<8xf32>
    %179 = vector.multi_reduction <add>, %178, %cst_57 [1] : vector<8x8xf32> to vector<8xf32>
    %180 = vector.shape_cast %179 : vector<8xf32> to vector<8x1xf32>
    %181 = tpu.reciprocal %180 {approx = true} : vector<8x1xf32> -> vector<8x1xf32>
    %182 = vector.broadcast %181 : vector<8x1xf32> to vector<8x8xf32>
    %183 = arith.mulf %178, %182 : vector<8x8xf32>
    %184 = arith.truncf %183 : vector<8x8xf32> to vector<8x8xbf16>
    %cst_58 = arith.constant dense<0.000000e+00> : vector<8x8xf32>
    %185 = tpu.matmul %184, %170, %cst_58 {dimension_numbers = #tpu.dot_dimension_numbers<[1], [0], [0], [1], [0, 0, 1, 1], [], []>} : vector<8x8xbf16>, vector<8x8xbf16>, vector<8x8xf32> -> vector<8x8xf32>
    %186 = vector.extract_strided_slice %136 {offsets = [0, 16], sizes = [8, 8], strides = [1, 1]} : vector<8x32xf32> to vector<8x8xf32>
    %187 = arith.truncf %186 : vector<8x8xf32> to vector<8x8xbf16>
    %188 = vector.extract_strided_slice %137 {offsets = [0, 16], sizes = [8, 8], strides = [1, 1]} : vector<8x32xf32> to vector<8x8xf32>
    %189 = arith.truncf %188 : vector<8x8xf32> to vector<8x8xbf16>
    %190 = vector.extract_strided_slice %138 {offsets = [0, 16], sizes = [8, 8], strides = [1, 1]} : vector<8x32xf32> to vector<8x8xf32>
    %191 = arith.truncf %190 : vector<8x8xf32> to vector<8x8xbf16>
    %cst_59 = arith.constant dense<0.000000e+00> : vector<8x8xf32>
    %192 = tpu.matmul %187, %189, %cst_59 {dimension_numbers = #tpu.dot_dimension_numbers<[1], [1], [0], [0], [0, 0, 1, 0], [], []>} : vector<8x8xbf16>, vector<8x8xbf16>, vector<8x8xf32> -> vector<8x8xf32>
    %cst_60 = arith.constant -1.000000e+06 : f32
    %193 = vector.broadcast %cst_60 : f32 to vector<8x8xf32>
    %194 = arith.select %143, %192, %193 : vector<8x8xi1>, vector<8x8xf32>
    %cst_61 = arith.constant dense<0xFF800000> : vector<8xf32>
    %195 = vector.multi_reduction <maximumf>, %194, %cst_61 [1] : vector<8x8xf32> to vector<8xf32>
    %196 = vector.shape_cast %195 : vector<8xf32> to vector<8x1xf32>
    %197 = vector.broadcast %196 : vector<8x1xf32> to vector<8x8xf32>
    %198 = arith.subf %194, %197 : vector<8x8xf32>
    %199 = math.exp %198 : vector<8x8xf32>
    %cst_62 = arith.constant dense<0.000000e+00> : vector<8xf32>
    %200 = vector.multi_reduction <add>, %199, %cst_62 [1] : vector<8x8xf32> to vector<8xf32>
    %201 = vector.shape_cast %200 : vector<8xf32> to vector<8x1xf32>
    %202 = tpu.reciprocal %201 {approx = true} : vector<8x1xf32> -> vector<8x1xf32>
    %203 = vector.broadcast %202 : vector<8x1xf32> to vector<8x8xf32>
    %204 = arith.mulf %199, %203 : vector<8x8xf32>
    %205 = arith.truncf %204 : vector<8x8xf32> to vector<8x8xbf16>
    %cst_63 = arith.constant dense<0.000000e+00> : vector<8x8xf32>
    %206 = tpu.matmul %205, %191, %cst_63 {dimension_numbers = #tpu.dot_dimension_numbers<[1], [0], [0], [1], [0, 0, 1, 1], [], []>} : vector<8x8xbf16>, vector<8x8xbf16>, vector<8x8xf32> -> vector<8x8xf32>
    %207 = vector.extract_strided_slice %136 {offsets = [0, 24], sizes = [8, 8], strides = [1, 1]} : vector<8x32xf32> to vector<8x8xf32>
    %208 = arith.truncf %207 : vector<8x8xf32> to vector<8x8xbf16>
    %209 = vector.extract_strided_slice %137 {offsets = [0, 24], sizes = [8, 8], strides = [1, 1]} : vector<8x32xf32> to vector<8x8xf32>
    %210 = arith.truncf %209 : vector<8x8xf32> to vector<8x8xbf16>
    %211 = vector.extract_strided_slice %138 {offsets = [0, 24], sizes = [8, 8], strides = [1, 1]} : vector<8x32xf32> to vector<8x8xf32>
    %212 = arith.truncf %211 : vector<8x8xf32> to vector<8x8xbf16>
    %cst_64 = arith.constant dense<0.000000e+00> : vector<8x8xf32>
    %213 = tpu.matmul %208, %210, %cst_64 {dimension_numbers = #tpu.dot_dimension_numbers<[1], [1], [0], [0], [0, 0, 1, 0], [], []>} : vector<8x8xbf16>, vector<8x8xbf16>, vector<8x8xf32> -> vector<8x8xf32>
    %cst_65 = arith.constant -1.000000e+06 : f32
    %214 = vector.broadcast %cst_65 : f32 to vector<8x8xf32>
    %215 = arith.select %143, %213, %214 : vector<8x8xi1>, vector<8x8xf32>
    %cst_66 = arith.constant dense<0xFF800000> : vector<8xf32>
    %216 = vector.multi_reduction <maximumf>, %215, %cst_66 [1] : vector<8x8xf32> to vector<8xf32>
    %217 = vector.shape_cast %216 : vector<8xf32> to vector<8x1xf32>
    %218 = vector.broadcast %217 : vector<8x1xf32> to vector<8x8xf32>
    %219 = arith.subf %215, %218 : vector<8x8xf32>
    %220 = math.exp %219 : vector<8x8xf32>
    %cst_67 = arith.constant dense<0.000000e+00> : vector<8xf32>
    %221 = vector.multi_reduction <add>, %220, %cst_67 [1] : vector<8x8xf32> to vector<8xf32>
    %222 = vector.shape_cast %221 : vector<8xf32> to vector<8x1xf32>
    %223 = tpu.reciprocal %222 {approx = true} : vector<8x1xf32> -> vector<8x1xf32>
    %224 = vector.broadcast %223 : vector<8x1xf32> to vector<8x8xf32>
    %225 = arith.mulf %220, %224 : vector<8x8xf32>
    %226 = arith.truncf %225 : vector<8x8xf32> to vector<8x8xbf16>
    %cst_68 = arith.constant dense<0.000000e+00> : vector<8x8xf32>
    %227 = tpu.matmul %226, %212, %cst_68 {dimension_numbers = #tpu.dot_dimension_numbers<[1], [0], [0], [1], [0, 0, 1, 1], [], []>} : vector<8x8xbf16>, vector<8x8xbf16>, vector<8x8xf32> -> vector<8x8xf32>
    %228 = tpu.concatenate %164, %185, %206, %227 in 1 : vector<8x8xf32>, vector<8x8xf32>, vector<8x8xf32>, vector<8x8xf32> -> vector<8x32xf32>
    %229 = arith.truncf %228 : vector<8x32xf32> to vector<8x32xbf16>
    %cst_69 = arith.constant dense<0.000000e+00> : vector<8x32xf32>
    %230 = tpu.matmul %229, %139, %cst_69 {dimension_numbers = #tpu.dot_dimension_numbers<[1], [0], [0], [1], [0, 0, 1, 1], [], []>} : vector<8x32xbf16>, vector<32x32xbf16>, vector<8x32xf32> -> vector<8x32xf32>
    %c0_70 = arith.constant 0 : index
    %c0_71 = arith.constant 0 : index
    %231 = vector.load %arg11[%c0_70, %c0_71] : memref<1x32xf32, #tpu.memory_space<vmem>>, vector<1x32xf32>
    %c0_72 = arith.constant 0 : index
    %c0_73 = arith.constant 0 : index
    %232 = vector.load %arg12[%c0_72, %c0_73] : memref<1x32xf32, #tpu.memory_space<vmem>>, vector<1x32xf32>
    %233 = arith.addf %126, %230 : vector<8x32xf32>
    %cst_74 = arith.constant dense<0.000000e+00> : vector<8xf32>
    %234 = vector.multi_reduction <add>, %233, %cst_74 [1] : vector<8x32xf32> to vector<8xf32>
    %235 = vector.shape_cast %234 : vector<8xf32> to vector<8x1xf32>
    %cst_75 = arith.constant 3.200000e+01 : f32
    %236 = vector.broadcast %cst_75 : f32 to vector<8x1xf32>
    %237 = arith.divf %235, %236 : vector<8x1xf32>
    %238 = vector.broadcast %237 : vector<8x1xf32> to vector<8x32xf32>
    %239 = arith.subf %233, %238 : vector<8x32xf32>
    %240 = arith.mulf %239, %239 : vector<8x32xf32>
    %cst_76 = arith.constant dense<0.000000e+00> : vector<8xf32>
    %241 = vector.multi_reduction <add>, %240, %cst_76 [1] : vector<8x32xf32> to vector<8xf32>
    %242 = vector.shape_cast %241 : vector<8xf32> to vector<8x1xf32>
    %cst_77 = arith.constant 3.200000e+01 : f32
    %243 = vector.broadcast %cst_77 : f32 to vector<8x1xf32>
    %244 = arith.divf %242, %243 : vector<8x1xf32>
    %245 = vector.broadcast %237 : vector<8x1xf32> to vector<8x32xf32>
    %246 = arith.subf %233, %245 : vector<8x32xf32>
    %cst_78 = arith.constant 9.99999974E-6 : f32
    %247 = vector.broadcast %cst_78 : f32 to vector<8x1xf32>
    %248 = arith.addf %244, %247 : vector<8x1xf32>
    %249 = math.rsqrt %248 : vector<8x1xf32>
    %250 = vector.broadcast %249 : vector<8x1xf32> to vector<8x32xf32>
    %251 = arith.mulf %246, %250 : vector<8x32xf32>
    %252 = vector.broadcast %231 : vector<1x32xf32> to vector<8x32xf32>
    %253 = arith.mulf %251, %252 : vector<8x32xf32>
    %254 = vector.broadcast %232 : vector<1x32xf32> to vector<8x32xf32>
    %255 = arith.addf %253, %254 : vector<8x32xf32>
    %256 = arith.truncf %255 : vector<8x32xf32> to vector<8x32xbf16>
    %c0_79 = arith.constant 0 : index
    %c0_80 = arith.constant 0 : index
    %257 = vector.load %arg13[%c0_79, %c0_80] : memref<32x64xbf16, #tpu.memory_space<vmem>>, vector<32x64xbf16>
    %cst_81 = arith.constant dense<0.000000e+00> : vector<8x64xf32>
    %258 = tpu.matmul %256, %257, %cst_81 {dimension_numbers = #tpu.dot_dimension_numbers<[1], [0], [0], [1], [0, 0, 1, 1], [], []>} : vector<8x32xbf16>, vector<32x64xbf16>, vector<8x64xf32> -> vector<8x64xf32>
    %c0_82 = arith.constant 0 : index
    %c0_83 = arith.constant 0 : index
    %259 = vector.load %arg14[%c0_82, %c0_83] : memref<1x64xf32, #tpu.memory_space<vmem>>, vector<1x64xf32>
    %260 = vector.broadcast %259 : vector<1x64xf32> to vector<8x64xf32>
    %261 = arith.addf %258, %260 : vector<8x64xf32>
    %cst_84 = arith.constant 0.000000e+00 : f32
    %262 = vector.broadcast %cst_84 : f32 to vector<8x64xf32>
    %263 = arith.maximumf %261, %262 : vector<8x64xf32>
    %264 = arith.truncf %263 : vector<8x64xf32> to vector<8x64xbf16>
    %c0_85 = arith.constant 0 : index
    %c0_86 = arith.constant 0 : index
    %265 = vector.load %arg15[%c0_85, %c0_86] : memref<64x32xbf16, #tpu.memory_space<vmem>>, vector<64x32xbf16>
    %cst_87 = arith.constant dense<0.000000e+00> : vector<8x32xf32>
    %266 = tpu.matmul %264, %265, %cst_87 {dimension_numbers = #tpu.dot_dimension_numbers<[1], [0], [0], [1], [0, 0, 1, 1], [], []>} : vector<8x64xbf16>, vector<64x32xbf16>, vector<8x32xf32> -> vector<8x32xf32>
    %c0_88 = arith.constant 0 : index
    %c0_89 = arith.constant 0 : index
    %267 = vector.load %arg16[%c0_88, %c0_89] : memref<1x32xf32, #tpu.memory_space<vmem>>, vector<1x32xf32>
    %268 = vector.broadcast %267 : vector<1x32xf32> to vector<8x32xf32>
    %269 = arith.addf %266, %268 : vector<8x32xf32>
    %c0_90 = arith.constant 0 : index
    %c0_91 = arith.constant 0 : index
    %270 = vector.load %arg17[%c0_90, %c0_91] : memref<1x32xf32, #tpu.memory_space<vmem>>, vector<1x32xf32>
    %c0_92 = arith.constant 0 : index
    %c0_93 = arith.constant 0 : index
    %271 = vector.load %arg18[%c0_92, %c0_93] : memref<1x32xf32, #tpu.memory_space<vmem>>, vector<1x32xf32>
    %272 = arith.addf %255, %269 : vector<8x32xf32>
    %cst_94 = arith.constant dense<0.000000e+00> : vector<8xf32>
    %273 = vector.multi_reduction <add>, %272, %cst_94 [1] : vector<8x32xf32> to vector<8xf32>
    %274 = vector.shape_cast %273 : vector<8xf32> to vector<8x1xf32>
    %cst_95 = arith.constant 3.200000e+01 : f32
    %275 = vector.broadcast %cst_95 : f32 to vector<8x1xf32>
    %276 = arith.divf %274, %275 : vector<8x1xf32>
    %277 = vector.broadcast %276 : vector<8x1xf32> to vector<8x32xf32>
    %278 = arith.subf %272, %277 : vector<8x32xf32>
    %279 = arith.mulf %278, %278 : vector<8x32xf32>
    %cst_96 = arith.constant dense<0.000000e+00> : vector<8xf32>
    %280 = vector.multi_reduction <add>, %279, %cst_96 [1] : vector<8x32xf32> to vector<8xf32>
    %281 = vector.shape_cast %280 : vector<8xf32> to vector<8x1xf32>
    %cst_97 = arith.constant 3.200000e+01 : f32
    %282 = vector.broadcast %cst_97 : f32 to vector<8x1xf32>
    %283 = arith.divf %281, %282 : vector<8x1xf32>
    %284 = vector.broadcast %276 : vector<8x1xf32> to vector<8x32xf32>
    %285 = arith.subf %272, %284 : vector<8x32xf32>
    %cst_98 = arith.constant 9.99999974E-6 : f32
    %286 = vector.broadcast %cst_98 : f32 to vector<8x1xf32>
    %287 = arith.addf %283, %286 : vector<8x1xf32>
    %288 = math.rsqrt %287 : vector<8x1xf32>
    %289 = vector.broadcast %288 : vector<8x1xf32> to vector<8x32xf32>
    %290 = arith.mulf %285, %289 : vector<8x32xf32>
    %291 = vector.broadcast %270 : vector<1x32xf32> to vector<8x32xf32>
    %292 = arith.mulf %290, %291 : vector<8x32xf32>
    %293 = vector.broadcast %271 : vector<1x32xf32> to vector<8x32xf32>
    %294 = arith.addf %292, %293 : vector<8x32xf32>
    %295 = arith.truncf %294 : vector<8x32xf32> to vector<8x32xbf16>
    %c0_99 = arith.constant 0 : index
    %c0_100 = arith.constant 0 : index
    %c0_101 = arith.constant 0 : index
    %296 = vector.load %arg19[%c0_99, %c0_100, %c0_101] : memref<1x8x32xbf16, #tpu.memory_space<vmem>>, vector<1x8x32xbf16>
    %297 = vector.shape_cast %296 : vector<1x8x32xbf16> to vector<8x32xbf16>
    %298 = vector.shape_cast %295 : vector<8x32xbf16> to vector<1x8x32xbf16>
    tpu.vector_store %arg19[%c0_99, %c0_100, %c0_101], %298 {strides = array<i32>} : memref<1x8x32xbf16, #tpu.memory_space<vmem>>, vector<1x8x32xbf16>,
    return
  }
  func.func @transform_0(%arg0: i32, %arg1: memref<2xi32, #tpu.memory_space<smem>>) -> (i32, i32, i32) {
    %c0_i32 = arith.constant 0 : i32
    %c0_i32_0 = arith.constant 0 : i32
    %c0_i32_1 = arith.constant 0 : i32
    return %arg0, %c0_i32, %c0_i32_0 : i32, i32, i32
  }
  func.func @transform_1(%arg0: i32, %arg1: memref<2xi32, #tpu.memory_space<smem>>) -> (i32, i32, i32) {
    %c0_i32 = arith.constant 0 : i32
    %c0_i32_0 = arith.constant 0 : i32
    %c0_i32_1 = arith.constant 0 : i32
    return %arg0, %c0_i32, %c0_i32_0 : i32, i32, i32
  }
  func.func @transform_2(%arg0: i32, %arg1: memref<2xi32, #tpu.memory_space<smem>>) -> (i32, i32) {
    %c0_i32 = arith.constant 0 : i32
    %c0_i32_0 = arith.constant 0 : i32
    %c0_i32_1 = arith.constant 0 : i32
    return %c0_i32, %c0_i32_0 : i32, i32
  }
  func.func @transform_3(%arg0: i32, %arg1: memref<2xi32, #tpu.memory_space<smem>>) -> (i32, i32) {
    %c0_i32 = arith.constant 0 : i32
    %c0_i32_0 = arith.constant 0 : i32
    %c0_i32_1 = arith.constant 0 : i32
    return %c0_i32, %c0_i32_0 : i32, i32
  }
  func.func @transform_4(%arg0: i32, %arg1: memref<2xi32, #tpu.memory_space<smem>>) -> (i32, i32) {
    %c0_i32 = arith.constant 0 : i32
    %c0_i32_0 = arith.constant 0 : i32
    %c0_i32_1 = arith.constant 0 : i32
    return %c0_i32, %c0_i32_0 : i32, i32
  }
  func.func @transform_5(%arg0: i32, %arg1: memref<2xi32, #tpu.memory_space<smem>>) -> (i32, i32) {
    %c0_i32 = arith.constant 0 : i32
    %c0_i32_0 = arith.constant 0 : i32
    %c0_i32_1 = arith.constant 0 : i32
    return %c0_i32, %c0_i32_0 : i32, i32
  }
  func.func @transform_6(%arg0: i32, %arg1: memref<2xi32, #tpu.memory_space<smem>>) -> (i32, i32) {
    %c0_i32 = arith.constant 0 : i32
    %c0_i32_0 = arith.constant 0 : i32
    %c0_i32_1 = arith.constant 0 : i32
    return %c0_i32, %c0_i32_0 : i32, i32
  }
  func.func @transform_7(%arg0: i32, %arg1: memref<2xi32, #tpu.memory_space<smem>>) -> (i32, i32) {
    %c0_i32 = arith.constant 0 : i32
    %c0_i32_0 = arith.constant 0 : i32
    %c0_i32_1 = arith.constant 0 : i32
    return %c0_i32, %c0_i32_0 : i32, i32
  }
  func.func @transform_8(%arg0: i32, %arg1: memref<2xi32, #tpu.memory_space<smem>>) -> (i32, i32) {
    %c0_i32 = arith.constant 0 : i32
    %c0_i32_0 = arith.constant 0 : i32
    %c0_i32_1 = arith.constant 0 : i32
    return %c0_i32, %c0_i32_0 : i32, i32
  }
  func.func @transform_9(%arg0: i32, %arg1: memref<2xi32, #tpu.memory_space<smem>>) -> (i32, i32) {
    %c0_i32 = arith.constant 0 : i32
    %c0_i32_0 = arith.constant 0 : i32
    %c0_i32_1 = arith.constant 0 : i32
    return %c0_i32, %c0_i32_0 : i32, i32
  }
  func.func @transform_10(%arg0: i32, %arg1: memref<2xi32, #tpu.memory_space<smem>>) -> (i32, i32) {
    %c0_i32 = arith.constant 0 : i32
    %c0_i32_0 = arith.constant 0 : i32
    %c0_i32_1 = arith.constant 0 : i32
    return %c0_i32, %c0_i32_0 : i32, i32
  }
  func.func @transform_11(%arg0: i32, %arg1: memref<2xi32, #tpu.memory_space<smem>>) -> (i32, i32) {
    %c0_i32 = arith.constant 0 : i32
    %c0_i32_0 = arith.constant 0 : i32
    %c0_i32_1 = arith.constant 0 : i32
    return %c0_i32, %c0_i32_0 : i32, i32
  }
  func.func @transform_12(%arg0: i32, %arg1: memref<2xi32, #tpu.memory_space<smem>>) -> (i32, i32) {
    %c0_i32 = arith.constant 0 : i32
    %c0_i32_0 = arith.constant 0 : i32
    %c0_i32_1 = arith.constant 0 : i32
    return %c0_i32, %c0_i32_0 : i32, i32
  }
  func.func @transform_13(%arg0: i32, %arg1: memref<2xi32, #tpu.memory_space<smem>>) -> (i32, i32) {
    %c0_i32 = arith.constant 0 : i32
    %c0_i32_0 = arith.constant 0 : i32
    %c0_i32_1 = arith.constant 0 : i32
    return %c0_i32, %c0_i32_0 : i32, i32
  }
  func.func @transform_14(%arg0: i32, %arg1: memref<2xi32, #tpu.memory_space<smem>>) -> (i32, i32) {
    %c0_i32 = arith.constant 0 : i32
    %c0_i32_0 = arith.constant 0 : i32
    %c0_i32_1 = arith.constant 0 : i32
    return %c0_i32, %c0_i32_0 : i32, i32
  }
  func.func @transform_15(%arg0: i32, %arg1: memref<2xi32, #tpu.memory_space<smem>>) -> (i32, i32) {
    %c0_i32 = arith.constant 0 : i32
    %c0_i32_0 = arith.constant 0 : i32
    %c0_i32_1 = arith.constant 0 : i32
    return %c0_i32, %c0_i32_0 : i32, i32
  }
  func.func @transform_16(%arg0: i32, %arg1: memref<2xi32, #tpu.memory_space<smem>>) -> (i32, i32) {
    %c0_i32 = arith.constant 0 : i32
    %c0_i32_0 = arith.constant 0 : i32
    %c0_i32_1 = arith.constant 0 : i32
    return %c0_i32, %c0_i32_0 : i32, i32
  }
  func.func @transform_17(%arg0: i32, %arg1: memref<2xi32, #tpu.memory_space<smem>>) -> (i32, i32, i32) {
    %c0_i32 = arith.constant 0 : i32
    %c0_i32_0 = arith.constant 0 : i32
    %c0_i32_1 = arith.constant 0 : i32
    return %arg0, %c0_i32, %c0_i32_0 : i32, i32, i32
  }
}

module attributes {stable_mosaic.version = 11 : i64} {
  func.func @_dense_kernel(%arg0: i32, %arg1: i32, %arg2: memref<16x32xbf16, #tpu.memory_space<vmem>>, %arg3: memref<32x32xbf16, #tpu.memory_space<vmem>>, %arg4: memref<1x32xf32, #tpu.memory_space<vmem>>, %arg5: memref<16x32xf32, #tpu.memory_space<vmem>>) attributes {dimension_semantics = [#tpu.dimension_semantics<parallel>, #tpu.dimension_semantics<parallel>], iteration_bounds = array<i64: 1, 1>, scalar_prefetch = 0 : i64, scratch_operands = 0 : i64, tpu.core_type = #tpu.core_type<tc>, window_params = [{transform_indices = @transform_0, window_bounds = array<i64: 16, 32>}, {transform_indices = @transform_1, window_bounds = array<i64: 32, 32>}, {transform_indices = @transform_2, window_bounds = array<i64: 1, 32>}, {transform_indices = @transform_3, window_bounds = array<i64: 16, 32>}]} {
    %c0 = arith.constant 0 : index
    %c0_0 = arith.constant 0 : index
    %0 = vector.load %arg2[%c0, %c0_0] : memref<16x32xbf16, #tpu.memory_space<vmem>>, vector<16x32xbf16>
    %c0_1 = arith.constant 0 : index
    %c0_2 = arith.constant 0 : index
    %1 = vector.load %arg3[%c0_1, %c0_2] : memref<32x32xbf16, #tpu.memory_space<vmem>>, vector<32x32xbf16>
    %cst = arith.constant dense<0.000000e+00> : vector<16x32xf32>
    %2 = tpu.matmul %0, %1, %cst {dimension_numbers = #tpu.dot_dimension_numbers<[1], [0], [0], [1], [0, 0, 1, 1], [], []>} : vector<16x32xbf16>, vector<32x32xbf16>, vector<16x32xf32> -> vector<16x32xf32>
    %c0_3 = arith.constant 0 : index
    %c0_4 = arith.constant 0 : index
    %3 = vector.load %arg4[%c0_3, %c0_4] : memref<1x32xf32, #tpu.memory_space<vmem>>, vector<1x32xf32>
    %4 = vector.broadcast %3 : vector<1x32xf32> to vector<16x32xf32>
    %5 = arith.addf %2, %4 : vector<16x32xf32>
    %c0_5 = arith.constant 0 : index
    %c0_6 = arith.constant 0 : index
    %6 = vector.load %arg5[%c0_5, %c0_6] : memref<16x32xf32, #tpu.memory_space<vmem>>, vector<16x32xf32>
    tpu.vector_store %arg5[%c0_5, %c0_6], %5 {strides = array<i32>} : memref<16x32xf32, #tpu.memory_space<vmem>>, vector<16x32xf32>,
    return
  }
  func.func @transform_0(%arg0: i32, %arg1: i32) -> (i32, i32) {
    %c0_i32 = arith.constant 0 : i32
    %c0_i32_0 = arith.constant 0 : i32
    return %arg0, %c0_i32 : i32, i32
  }
  func.func @transform_1(%arg0: i32, %arg1: i32) -> (i32, i32) {
    %c0_i32 = arith.constant 0 : i32
    %c0_i32_0 = arith.constant 0 : i32
    return %c0_i32, %arg1 : i32, i32
  }
  func.func @transform_2(%arg0: i32, %arg1: i32) -> (i32, i32) {
    %c0_i32 = arith.constant 0 : i32
    %c0_i32_0 = arith.constant 0 : i32
    return %c0_i32, %arg1 : i32, i32
  }
  func.func @transform_3(%arg0: i32, %arg1: i32) -> (i32, i32) {
    %c0_i32 = arith.constant 0 : i32
    return %arg0, %arg1 : i32, i32
  }
}

module attributes {stable_mosaic.version = 11 : i64} {
  func.func @_decoder_block_kernel(%arg0: i32, %arg1: memref<2xi32, #tpu.memory_space<smem>>, %arg2: memref<1x8x32xbf16, #tpu.memory_space<vmem>>, %arg3: memref<1x8x32xbf16, #tpu.memory_space<vmem>>, %arg4: memref<8x32xf32, #tpu.memory_space<vmem>>, %arg5: memref<32x96xbf16, #tpu.memory_space<vmem>>, %arg6: memref<32x32xbf16, #tpu.memory_space<vmem>>, %arg7: memref<1x32xf32, #tpu.memory_space<vmem>>, %arg8: memref<1x32xf32, #tpu.memory_space<vmem>>, %arg9: memref<32x32xbf16, #tpu.memory_space<vmem>>, %arg10: memref<32x64xbf16, #tpu.memory_space<vmem>>, %arg11: memref<32x32xbf16, #tpu.memory_space<vmem>>, %arg12: memref<1x32xf32, #tpu.memory_space<vmem>>, %arg13: memref<1x32xf32, #tpu.memory_space<vmem>>, %arg14: memref<32x64xbf16, #tpu.memory_space<vmem>>, %arg15: memref<1x64xf32, #tpu.memory_space<vmem>>, %arg16: memref<64x32xbf16, #tpu.memory_space<vmem>>, %arg17: memref<1x32xf32, #tpu.memory_space<vmem>>, %arg18: memref<1x32xf32, #tpu.memory_space<vmem>>, %arg19: memref<1x32xf32, #tpu.memory_space<vmem>>, %arg20: memref<1x8x32xbf16, #tpu.memory_space<vmem>>, %arg21: memref<1x8x32xbf16, #tpu.memory_space<vmem>>) attributes {dimension_semantics = [#tpu.dimension_semantics<parallel>], iteration_bounds = array<i64: 2>, scalar_prefetch = 1 : i64, scratch_operands = 0 : i64, tpu.core_type = #tpu.core_type<tc>, window_params = [{transform_indices = @transform_0, window_bounds = array<i64: 1, 8, 32>}, {transform_indices = @transform_1, window_bounds = array<i64: 1, 8, 32>}, {pipeline_mode = #tpu.pipeline_mode<synchronous>, transform_indices = @transform_2, window_bounds = array<i64: 8, 32>}, {pipeline_mode = #tpu.pipeline_mode<synchronous>, transform_indices = @transform_3, window_bounds = array<i64: 32, 96>}, {pipeline_mode = #tpu.pipeline_mode<synchronous>, transform_indices = @transform_4, window_bounds = array<i64: 32, 32>}, {pipeline_mode = #tpu.pipeline_mode<synchronous>, transform_indices = @transform_5, window_bounds = array<i64: 1, 32>}, {pipeline_mode = #tpu.pipeline_mode<synchronous>, transform_indices = @transform_6, window_bounds = array<i64: 1, 32>}, {pipeline_mode = #tpu.pipeline_mode<synchronous>, transform_indices = @transform_7, window_bounds = array<i64: 32, 32>}, {pipeline_mode = #tpu.pipeline_mode<synchronous>, transform_indices = @transform_8, window_bounds = array<i64: 32, 64>}, {pipeline_mode = #tpu.pipeline_mode<synchronous>, transform_indices = @transform_9, window_bounds = array<i64: 32, 32>}, {pipeline_mode = #tpu.pipeline_mode<synchronous>, transform_indices = @transform_10, window_bounds = array<i64: 1, 32>}, {pipeline_mode = #tpu.pipeline_mode<synchronous>, transform_indices = @transform_11, window_bounds = array<i64: 1, 32>}, {pipeline_mode = #tpu.pipeline_mode<synchronous>, transform_indices = @transform_12, window_bounds = array<i64: 32, 64>}, {pipeline_mode = #tpu.pipeline_mode<synchronous>, transform_indices = @transform_13, window_bounds = array<i64: 1, 64>}, {pipeline_mode = #tpu.pipeline_mode<synchronous>, transform_indices = @transform_14, window_bounds = array<i64: 64, 32>}, {pipeline_mode = #tpu.pipeline_mode<synchronous>, transform_indices = @transform_15, window_bounds = array<i64: 1, 32>}, {pipeline_mode = #tpu.pipeline_mode<synchronous>, transform_indices = @transform_16, window_bounds = array<i64: 1, 32>}, {pipeline_mode = #tpu.pipeline_mode<synchronous>, transform_indices = @transform_17, window_bounds = array<i64: 1, 32>}, {transform_indices = @transform_18, window_bounds = array<i64: 1, 8, 32>}, {transform_indices = @transform_19, window_bounds = array<i64: 1, 8, 32>}]} {
    %c0 = arith.constant 0 : index
    %c0_0 = arith.constant 0 : index
    %c0_1 = arith.constant 0 : index
    %0 = vector.load %arg2[%c0, %c0_0, %c0_1] : memref<1x8x32xbf16, #tpu.memory_space<vmem>>, vector<1x8x32xbf16>
    %1 = vector.shape_cast %0 : vector<1x8x32xbf16> to vector<8x32xbf16>
    %2 = arith.extf %1 : vector<8x32xbf16> to vector<8x32xf32>
    %cst = arith.constant 5.65685415 : f32
    %3 = vector.broadcast %cst : f32 to vector<8x32xf32>
    %4 = arith.mulf %2, %3 : vector<8x32xf32>
    %c0_2 = arith.constant 0 : index
    %c0_3 = arith.constant 0 : index
    %5 = vector.load %arg4[%c0_2, %c0_3] : memref<8x32xf32, #tpu.memory_space<vmem>>, vector<8x32xf32>
    %6 = arith.addf %4, %5 : vector<8x32xf32>
    %7 = arith.truncf %6 : vector<8x32xf32> to vector<8x32xbf16>
    %c0_4 = arith.constant 0 : index
    %c0_5 = arith.constant 0 : index
    %c0_6 = arith.constant 0 : index
    %8 = vector.load %arg21[%c0_4, %c0_5, %c0_6] : memref<1x8x32xbf16, #tpu.memory_space<vmem>>, vector<1x8x32xbf16>
    %9 = vector.shape_cast %8 : vector<1x8x32xbf16> to vector<8x32xbf16>
    %10 = vector.shape_cast %7 : vector<8x32xbf16> to vector<1x8x32xbf16>
    tpu.vector_store %arg21[%c0_4, %c0_5, %c0_6], %10 {strides = array<i32>} : memref<1x8x32xbf16, #tpu.memory_space<vmem>>, vector<1x8x32xbf16>,
    %11 = arith.truncf %6 : vector<8x32xf32> to vector<8x32xbf16>
    %c0_7 = arith.constant 0 : index
    %c0_8 = arith.constant 0 : index
    %12 = vector.load %arg5[%c0_7, %c0_8] : memref<32x96xbf16, #tpu.memory_space<vmem>>, vector<32x96xbf16>
    %cst_9 = arith.constant dense<0.000000e+00> : vector<8x96xf32>
    %13 = tpu.matmul %11, %12, %cst_9 {dimension_numbers = #tpu.dot_dimension_numbers<[1], [0], [0], [1], [0, 0, 1, 1], [], []>} : vector<8x32xbf16>, vector<32x96xbf16>, vector<8x96xf32> -> vector<8x96xf32>
    %14 = tpu.iota {dimensions = array<i32: 0>} : vector<8x8xi32>
    %15 = tpu.iota {dimensions = array<i32: 1>} : vector<8x8xi32>
    %16 = vector.extract_strided_slice %13 {offsets = [0, 0], sizes = [8, 32], strides = [1, 1]} : vector<8x96xf32> to vector<8x32xf32>
    %cst_10 = arith.constant 0.353553385 : f32
    %17 = vector.broadcast %cst_10 : f32 to vector<8x32xf32>
    %18 = arith.mulf %16, %17 : vector<8x32xf32>
    %19 = vector.extract_strided_slice %13 {offsets = [0, 32], sizes = [8, 32], strides = [1, 1]} : vector<8x96xf32> to vector<8x32xf32>
    %20 = vector.extract_strided_slice %13 {offsets = [0, 64], sizes = [8, 32], strides = [1, 1]} : vector<8x96xf32> to vector<8x32xf32>
    %c0_11 = arith.constant 0 : index
    %c0_12 = arith.constant 0 : index
    %21 = vector.load %arg6[%c0_11, %c0_12] : memref<32x32xbf16, #tpu.memory_space<vmem>>, vector<32x32xbf16>
    %22 = arith.cmpi sge, %14, %15 : vector<8x8xi32>
    %23 = vector.extract_strided_slice %18 {offsets = [0, 0], sizes = [8, 8], strides = [1, 1]} : vector<8x32xf32> to vector<8x8xf32>
    %24 = arith.truncf %23 : vector<8x8xf32> to vector<8x8xbf16>
    %25 = vector.extract_strided_slice %19 {offsets = [0, 0], sizes = [8, 8], strides = [1, 1]} : vector<8x32xf32> to vector<8x8xf32>
    %26 = arith.truncf %25 : vector<8x8xf32> to vector<8x8xbf16>
    %27 = vector.extract_strided_slice %20 {offsets = [0, 0], sizes = [8, 8], strides = [1, 1]} : vector<8x32xf32> to vector<8x8xf32>
    %28 = arith.truncf %27 : vector<8x8xf32> to vector<8x8xbf16>
    %cst_13 = arith.constant dense<0.000000e+00> : vector<8x8xf32>
    %29 = tpu.matmul %24, %26, %cst_13 {dimension_numbers = #tpu.dot_dimension_numbers<[1], [1], [0], [0], [0, 0, 1, 0], [], []>} : vector<8x8xbf16>, vector<8x8xbf16>, vector<8x8xf32> -> vector<8x8xf32>
    %cst_14 = arith.constant -1.000000e+06 : f32
    %30 = vector.broadcast %cst_14 : f32 to vector<8x8xf32>
    %31 = arith.select %22, %29, %30 : vector<8x8xi1>, vector<8x8xf32>
    %cst_15 = arith.constant dense<0xFF800000> : vector<8xf32>
    %32 = vector.multi_reduction <maximumf>, %31, %cst_15 [1] : vector<8x8xf32> to vector<8xf32>
    %33 = vector.shape_cast %32 : vector<8xf32> to vector<8x1xf32>
    %34 = vector.broadcast %33 : vector<8x1xf32> to vector<8x8xf32>
    %35 = arith.subf %31, %34 : vector<8x8xf32>
    %36 = math.exp %35 : vector<8x8xf32>
    %cst_16 = arith.constant dense<0.000000e+00> : vector<8xf32>
    %37 = vector.multi_reduction <add>, %36, %cst_16 [1] : vector<8x8xf32> to vector<8xf32>
    %38 = vector.shape_cast %37 : vector<8xf32> to vector<8x1xf32>
    %39 = tpu.reciprocal %38 {approx = true} : vector<8x1xf32> -> vector<8x1xf32>
    %40 = vector.broadcast %39 : vector<8x1xf32> to vector<8x8xf32>
    %41 = arith.mulf %36, %40 : vector<8x8xf32>
    %42 = arith.truncf %41 : vector<8x8xf32> to vector<8x8xbf16>
    %cst_17 = arith.constant dense<0.000000e+00> : vector<8x8xf32>
    %43 = tpu.matmul %42, %28, %cst_17 {dimension_numbers = #tpu.dot_dimension_numbers<[1], [0], [0], [1], [0, 0, 1, 1], [], []>} : vector<8x8xbf16>, vector<8x8xbf16>, vector<8x8xf32> -> vector<8x8xf32>
    %44 = vector.extract_strided_slice %18 {offsets = [0, 8], sizes = [8, 8], strides = [1, 1]} : vector<8x32xf32> to vector<8x8xf32>
    %45 = arith.truncf %44 : vector<8x8xf32> to vector<8x8xbf16>
    %46 = vector.extract_strided_slice %19 {offsets = [0, 8], sizes = [8, 8], strides = [1, 1]} : vector<8x32xf32> to vector<8x8xf32>
    %47 = arith.truncf %46 : vector<8x8xf32> to vector<8x8xbf16>
    %48 = vector.extract_strided_slice %20 {offsets = [0, 8], sizes = [8, 8], strides = [1, 1]} : vector<8x32xf32> to vector<8x8xf32>
    %49 = arith.truncf %48 : vector<8x8xf32> to vector<8x8xbf16>
    %cst_18 = arith.constant dense<0.000000e+00> : vector<8x8xf32>
    %50 = tpu.matmul %45, %47, %cst_18 {dimension_numbers = #tpu.dot_dimension_numbers<[1], [1], [0], [0], [0, 0, 1, 0], [], []>} : vector<8x8xbf16>, vector<8x8xbf16>, vector<8x8xf32> -> vector<8x8xf32>
    %cst_19 = arith.constant -1.000000e+06 : f32
    %51 = vector.broadcast %cst_19 : f32 to vector<8x8xf32>
    %52 = arith.select %22, %50, %51 : vector<8x8xi1>, vector<8x8xf32>
    %cst_20 = arith.constant dense<0xFF800000> : vector<8xf32>
    %53 = vector.multi_reduction <maximumf>, %52, %cst_20 [1] : vector<8x8xf32> to vector<8xf32>
    %54 = vector.shape_cast %53 : vector<8xf32> to vector<8x1xf32>
    %55 = vector.broadcast %54 : vector<8x1xf32> to vector<8x8xf32>
    %56 = arith.subf %52, %55 : vector<8x8xf32>
    %57 = math.exp %56 : vector<8x8xf32>
    %cst_21 = arith.constant dense<0.000000e+00> : vector<8xf32>
    %58 = vector.multi_reduction <add>, %57, %cst_21 [1] : vector<8x8xf32> to vector<8xf32>
    %59 = vector.shape_cast %58 : vector<8xf32> to vector<8x1xf32>
    %60 = tpu.reciprocal %59 {approx = true} : vector<8x1xf32> -> vector<8x1xf32>
    %61 = vector.broadcast %60 : vector<8x1xf32> to vector<8x8xf32>
    %62 = arith.mulf %57, %61 : vector<8x8xf32>
    %63 = arith.truncf %62 : vector<8x8xf32> to vector<8x8xbf16>
    %cst_22 = arith.constant dense<0.000000e+00> : vector<8x8xf32>
    %64 = tpu.matmul %63, %49, %cst_22 {dimension_numbers = #tpu.dot_dimension_numbers<[1], [0], [0], [1], [0, 0, 1, 1], [], []>} : vector<8x8xbf16>, vector<8x8xbf16>, vector<8x8xf32> -> vector<8x8xf32>
    %65 = vector.extract_strided_slice %18 {offsets = [0, 16], sizes = [8, 8], strides = [1, 1]} : vector<8x32xf32> to vector<8x8xf32>
    %66 = arith.truncf %65 : vector<8x8xf32> to vector<8x8xbf16>
    %67 = vector.extract_strided_slice %19 {offsets = [0, 16], sizes = [8, 8], strides = [1, 1]} : vector<8x32xf32> to vector<8x8xf32>
    %68 = arith.truncf %67 : vector<8x8xf32> to vector<8x8xbf16>
    %69 = vector.extract_strided_slice %20 {offsets = [0, 16], sizes = [8, 8], strides = [1, 1]} : vector<8x32xf32> to vector<8x8xf32>
    %70 = arith.truncf %69 : vector<8x8xf32> to vector<8x8xbf16>
    %cst_23 = arith.constant dense<0.000000e+00> : vector<8x8xf32>
    %71 = tpu.matmul %66, %68, %cst_23 {dimension_numbers = #tpu.dot_dimension_numbers<[1], [1], [0], [0], [0, 0, 1, 0], [], []>} : vector<8x8xbf16>, vector<8x8xbf16>, vector<8x8xf32> -> vector<8x8xf32>
    %cst_24 = arith.constant -1.000000e+06 : f32
    %72 = vector.broadcast %cst_24 : f32 to vector<8x8xf32>
    %73 = arith.select %22, %71, %72 : vector<8x8xi1>, vector<8x8xf32>
    %cst_25 = arith.constant dense<0xFF800000> : vector<8xf32>
    %74 = vector.multi_reduction <maximumf>, %73, %cst_25 [1] : vector<8x8xf32> to vector<8xf32>
    %75 = vector.shape_cast %74 : vector<8xf32> to vector<8x1xf32>
    %76 = vector.broadcast %75 : vector<8x1xf32> to vector<8x8xf32>
    %77 = arith.subf %73, %76 : vector<8x8xf32>
    %78 = math.exp %77 : vector<8x8xf32>
    %cst_26 = arith.constant dense<0.000000e+00> : vector<8xf32>
    %79 = vector.multi_reduction <add>, %78, %cst_26 [1] : vector<8x8xf32> to vector<8xf32>
    %80 = vector.shape_cast %79 : vector<8xf32> to vector<8x1xf32>
    %81 = tpu.reciprocal %80 {approx = true} : vector<8x1xf32> -> vector<8x1xf32>
    %82 = vector.broadcast %81 : vector<8x1xf32> to vector<8x8xf32>
    %83 = arith.mulf %78, %82 : vector<8x8xf32>
    %84 = arith.truncf %83 : vector<8x8xf32> to vector<8x8xbf16>
    %cst_27 = arith.constant dense<0.000000e+00> : vector<8x8xf32>
    %85 = tpu.matmul %84, %70, %cst_27 {dimension_numbers = #tpu.dot_dimension_numbers<[1], [0], [0], [1], [0, 0, 1, 1], [], []>} : vector<8x8xbf16>, vector<8x8xbf16>, vector<8x8xf32> -> vector<8x8xf32>
    %86 = vector.extract_strided_slice %18 {offsets = [0, 24], sizes = [8, 8], strides = [1, 1]} : vector<8x32xf32> to vector<8x8xf32>
    %87 = arith.truncf %86 : vector<8x8xf32> to vector<8x8xbf16>
    %88 = vector.extract_strided_slice %19 {offsets = [0, 24], sizes = [8, 8], strides = [1, 1]} : vector<8x32xf32> to vector<8x8xf32>
    %89 = arith.truncf %88 : vector<8x8xf32> to vector<8x8xbf16>
    %90 = vector.extract_strided_slice %20 {offsets = [0, 24], sizes = [8, 8], strides = [1, 1]} : vector<8x32xf32> to vector<8x8xf32>
    %91 = arith.truncf %90 : vector<8x8xf32> to vector<8x8xbf16>
    %cst_28 = arith.constant dense<0.000000e+00> : vector<8x8xf32>
    %92 = tpu.matmul %87, %89, %cst_28 {dimension_numbers = #tpu.dot_dimension_numbers<[1], [1], [0], [0], [0, 0, 1, 0], [], []>} : vector<8x8xbf16>, vector<8x8xbf16>, vector<8x8xf32> -> vector<8x8xf32>
    %cst_29 = arith.constant -1.000000e+06 : f32
    %93 = vector.broadcast %cst_29 : f32 to vector<8x8xf32>
    %94 = arith.select %22, %92, %93 : vector<8x8xi1>, vector<8x8xf32>
    %cst_30 = arith.constant dense<0xFF800000> : vector<8xf32>
    %95 = vector.multi_reduction <maximumf>, %94, %cst_30 [1] : vector<8x8xf32> to vector<8xf32>
    %96 = vector.shape_cast %95 : vector<8xf32> to vector<8x1xf32>
    %97 = vector.broadcast %96 : vector<8x1xf32> to vector<8x8xf32>
    %98 = arith.subf %94, %97 : vector<8x8xf32>
    %99 = math.exp %98 : vector<8x8xf32>
    %cst_31 = arith.constant dense<0.000000e+00> : vector<8xf32>
    %100 = vector.multi_reduction <add>, %99, %cst_31 [1] : vector<8x8xf32> to vector<8xf32>
    %101 = vector.shape_cast %100 : vector<8xf32> to vector<8x1xf32>
    %102 = tpu.reciprocal %101 {approx = true} : vector<8x1xf32> -> vector<8x1xf32>
    %103 = vector.broadcast %102 : vector<8x1xf32> to vector<8x8xf32>
    %104 = arith.mulf %99, %103 : vector<8x8xf32>
    %105 = arith.truncf %104 : vector<8x8xf32> to vector<8x8xbf16>
    %cst_32 = arith.constant dense<0.000000e+00> : vector<8x8xf32>
    %106 = tpu.matmul %105, %91, %cst_32 {dimension_numbers = #tpu.dot_dimension_numbers<[1], [0], [0], [1], [0, 0, 1, 1], [], []>} : vector<8x8xbf16>, vector<8x8xbf16>, vector<8x8xf32> -> vector<8x8xf32>
    %107 = tpu.concatenate %43, %64, %85, %106 in 1 : vector<8x8xf32>, vector<8x8xf32>, vector<8x8xf32>, vector<8x8xf32> -> vector<8x32xf32>
    %108 = arith.truncf %107 : vector<8x32xf32> to vector<8x32xbf16>
    %cst_33 = arith.constant dense<0.000000e+00> : vector<8x32xf32>
    %109 = tpu.matmul %108, %21, %cst_33 {dimension_numbers = #tpu.dot_dimension_numbers<[1], [0], [0], [1], [0, 0, 1, 1], [], []>} : vector<8x32xbf16>, vector<32x32xbf16>, vector<8x32xf32> -> vector<8x32xf32>
    %c0_34 = arith.constant 0 : index
    %c0_35 = arith.constant 0 : index
    %110 = vector.load %arg7[%c0_34, %c0_35] : memref<1x32xf32, #tpu.memory_space<vmem>>, vector<1x32xf32>
    %c0_36 = arith.constant 0 : index
    %c0_37 = arith.constant 0 : index
    %111 = vector.load %arg8[%c0_36, %c0_37] : memref<1x32xf32, #tpu.memory_space<vmem>>, vector<1x32xf32>
    %112 = arith.addf %6, %109 : vector<8x32xf32>
    %cst_38 = arith.constant dense<0.000000e+00> : vector<8xf32>
    %113 = vector.multi_reduction <add>, %112, %cst_38 [1] : vector<8x32xf32> to vector<8xf32>
    %114 = vector.shape_cast %113 : vector<8xf32> to vector<8x1xf32>
    %cst_39 = arith.constant 3.200000e+01 : f32
    %115 = vector.broadcast %cst_39 : f32 to vector<8x1xf32>
    %116 = arith.divf %114, %115 : vector<8x1xf32>
    %117 = vector.broadcast %116 : vector<8x1xf32> to vector<8x32xf32>
    %118 = arith.subf %112, %117 : vector<8x32xf32>
    %119 = arith.mulf %118, %118 : vector<8x32xf32>
    %cst_40 = arith.constant dense<0.000000e+00> : vector<8xf32>
    %120 = vector.multi_reduction <add>, %119, %cst_40 [1] : vector<8x32xf32> to vector<8xf32>
    %121 = vector.shape_cast %120 : vector<8xf32> to vector<8x1xf32>
    %cst_41 = arith.constant 3.200000e+01 : f32
    %122 = vector.broadcast %cst_41 : f32 to vector<8x1xf32>
    %123 = arith.divf %121, %122 : vector<8x1xf32>
    %124 = vector.broadcast %116 : vector<8x1xf32> to vector<8x32xf32>
    %125 = arith.subf %112, %124 : vector<8x32xf32>
    %cst_42 = arith.constant 9.99999974E-6 : f32
    %126 = vector.broadcast %cst_42 : f32 to vector<8x1xf32>
    %127 = arith.addf %123, %126 : vector<8x1xf32>
    %128 = math.rsqrt %127 : vector<8x1xf32>
    %129 = vector.broadcast %128 : vector<8x1xf32> to vector<8x32xf32>
    %130 = arith.mulf %125, %129 : vector<8x32xf32>
    %131 = vector.broadcast %110 : vector<1x32xf32> to vector<8x32xf32>
    %132 = arith.mulf %130, %131 : vector<8x32xf32>
    %133 = vector.broadcast %111 : vector<1x32xf32> to vector<8x32xf32>
    %134 = arith.addf %132, %133 : vector<8x32xf32>
    %135 = arith.truncf %134 : vector<8x32xf32> to vector<8x32xbf16>
    %c0_43 = arith.constant 0 : index
    %c0_44 = arith.constant 0 : index
    %136 = vector.load %arg9[%c0_43, %c0_44] : memref<32x32xbf16, #tpu.memory_space<vmem>>, vector<32x32xbf16>
    %cst_45 = arith.constant dense<0.000000e+00> : vector<8x32xf32>
    %137 = tpu.matmul %135, %136, %cst_45 {dimension_numbers = #tpu.dot_dimension_numbers<[1], [0], [0], [1], [0, 0, 1, 1], [], []>} : vector<8x32xbf16>, vector<32x32xbf16>, vector<8x32xf32> -> vector<8x32xf32>
    %c0_46 = arith.constant 0 : index
    %c0_47 = arith.constant 0 : index
    %c0_48 = arith.constant 0 : index
    %138 = vector.load %arg3[%c0_46, %c0_47, %c0_48] : memref<1x8x32xbf16, #tpu.memory_space<vmem>>, vector<1x8x32xbf16>
    %139 = vector.shape_cast %138 : vector<1x8x32xbf16> to vector<8x32xbf16>
    %c0_49 = arith.constant 0 : index
    %c0_50 = arith.constant 0 : index
    %140 = vector.load %arg10[%c0_49, %c0_50] : memref<32x64xbf16, #tpu.memory_space<vmem>>, vector<32x64xbf16>
    %cst_51 = arith.constant dense<0.000000e+00> : vector<8x64xf32>
    %141 = tpu.matmul %139, %140, %cst_51 {dimension_numbers = #tpu.dot_dimension_numbers<[1], [0], [0], [1], [0, 0, 1, 1], [], []>} : vector<8x32xbf16>, vector<32x64xbf16>, vector<8x64xf32> -> vector<8x64xf32>
    %142 = tpu.iota {dimensions = array<i32: 1>} : vector<8x8xi32>
    %cst_52 = arith.constant 0.353553385 : f32
    %143 = vector.broadcast %cst_52 : f32 to vector<8x32xf32>
    %144 = arith.mulf %137, %143 : vector<8x32xf32>
    %145 = vector.extract_strided_slice %141 {offsets = [0, 0], sizes = [8, 32], strides = [1, 1]} : vector<8x64xf32> to vector<8x32xf32>
    %146 = vector.extract_strided_slice %141 {offsets = [0, 32], sizes = [8, 32], strides = [1, 1]} : vector<8x64xf32> to vector<8x32xf32>
    %c0_53 = arith.constant 0 : index
    %c0_54 = arith.constant 0 : index
    %147 = vector.load %arg11[%c0_53, %c0_54] : memref<32x32xbf16, #tpu.memory_space<vmem>>, vector<32x32xbf16>
    %148 = arith.index_cast %arg0 : i32 to index
    %149 = memref.load %arg1[%148] : memref<2xi32, #tpu.memory_space<smem>>
    %150 = vector.broadcast %149 : i32 to vector<8x8xi32>
    %151 = arith.cmpi slt, %142, %150 : vector<8x8xi32>
    %152 = vector.extract_strided_slice %144 {offsets = [0, 0], sizes = [8, 8], strides = [1, 1]} : vector<8x32xf32> to vector<8x8xf32>
    %153 = arith.truncf %152 : vector<8x8xf32> to vector<8x8xbf16>
    %154 = vector.extract_strided_slice %145 {offsets = [0, 0], sizes = [8, 8], strides = [1, 1]} : vector<8x32xf32> to vector<8x8xf32>
    %155 = arith.truncf %154 : vector<8x8xf32> to vector<8x8xbf16>
    %156 = vector.extract_strided_slice %146 {offsets = [0, 0], sizes = [8, 8], strides = [1, 1]} : vector<8x32xf32> to vector<8x8xf32>
    %157 = arith.truncf %156 : vector<8x8xf32> to vector<8x8xbf16>
    %cst_55 = arith.constant dense<0.000000e+00> : vector<8x8xf32>
    %158 = tpu.matmul %153, %155, %cst_55 {dimension_numbers = #tpu.dot_dimension_numbers<[1], [1], [0], [0], [0, 0, 1, 0], [], []>} : vector<8x8xbf16>, vector<8x8xbf16>, vector<8x8xf32> -> vector<8x8xf32>
    %cst_56 = arith.constant -1.000000e+06 : f32
    %159 = vector.broadcast %cst_56 : f32 to vector<8x8xf32>
    %160 = arith.select %151, %158, %159 : vector<8x8xi1>, vector<8x8xf32>
    %cst_57 = arith.constant dense<0xFF800000> : vector<8xf32>
    %161 = vector.multi_reduction <maximumf>, %160, %cst_57 [1] : vector<8x8xf32> to vector<8xf32>
    %162 = vector.shape_cast %161 : vector<8xf32> to vector<8x1xf32>
    %163 = vector.broadcast %162 : vector<8x1xf32> to vector<8x8xf32>
    %164 = arith.subf %160, %163 : vector<8x8xf32>
    %165 = math.exp %164 : vector<8x8xf32>
    %cst_58 = arith.constant dense<0.000000e+00> : vector<8xf32>
    %166 = vector.multi_reduction <add>, %165, %cst_58 [1] : vector<8x8xf32> to vector<8xf32>
    %167 = vector.shape_cast %166 : vector<8xf32> to vector<8x1xf32>
    %168 = tpu.reciprocal %167 {approx = true} : vector<8x1xf32> -> vector<8x1xf32>
    %169 = vector.broadcast %168 : vector<8x1xf32> to vector<8x8xf32>
    %170 = arith.mulf %165, %169 : vector<8x8xf32>
    %171 = arith.truncf %170 : vector<8x8xf32> to vector<8x8xbf16>
    %cst_59 = arith.constant dense<0.000000e+00> : vector<8x8xf32>
    %172 = tpu.matmul %171, %157, %cst_59 {dimension_numbers = #tpu.dot_dimension_numbers<[1], [0], [0], [1], [0, 0, 1, 1], [], []>} : vector<8x8xbf16>, vector<8x8xbf16>, vector<8x8xf32> -> vector<8x8xf32>
    %173 = vector.extract_strided_slice %144 {offsets = [0, 8], sizes = [8, 8], strides = [1, 1]} : vector<8x32xf32> to vector<8x8xf32>
    %174 = arith.truncf %173 : vector<8x8xf32> to vector<8x8xbf16>
    %175 = vector.extract_strided_slice %145 {offsets = [0, 8], sizes = [8, 8], strides = [1, 1]} : vector<8x32xf32> to vector<8x8xf32>
    %176 = arith.truncf %175 : vector<8x8xf32> to vector<8x8xbf16>
    %177 = vector.extract_strided_slice %146 {offsets = [0, 8], sizes = [8, 8], strides = [1, 1]} : vector<8x32xf32> to vector<8x8xf32>
    %178 = arith.truncf %177 : vector<8x8xf32> to vector<8x8xbf16>
    %cst_60 = arith.constant dense<0.000000e+00> : vector<8x8xf32>
    %179 = tpu.matmul %174, %176, %cst_60 {dimension_numbers = #tpu.dot_dimension_numbers<[1], [1], [0], [0], [0, 0, 1, 0], [], []>} : vector<8x8xbf16>, vector<8x8xbf16>, vector<8x8xf32> -> vector<8x8xf32>
    %cst_61 = arith.constant -1.000000e+06 : f32
    %180 = vector.broadcast %cst_61 : f32 to vector<8x8xf32>
    %181 = arith.select %151, %179, %180 : vector<8x8xi1>, vector<8x8xf32>
    %cst_62 = arith.constant dense<0xFF800000> : vector<8xf32>
    %182 = vector.multi_reduction <maximumf>, %181, %cst_62 [1] : vector<8x8xf32> to vector<8xf32>
    %183 = vector.shape_cast %182 : vector<8xf32> to vector<8x1xf32>
    %184 = vector.broadcast %183 : vector<8x1xf32> to vector<8x8xf32>
    %185 = arith.subf %181, %184 : vector<8x8xf32>
    %186 = math.exp %185 : vector<8x8xf32>
    %cst_63 = arith.constant dense<0.000000e+00> : vector<8xf32>
    %187 = vector.multi_reduction <add>, %186, %cst_63 [1] : vector<8x8xf32> to vector<8xf32>
    %188 = vector.shape_cast %187 : vector<8xf32> to vector<8x1xf32>
    %189 = tpu.reciprocal %188 {approx = true} : vector<8x1xf32> -> vector<8x1xf32>
    %190 = vector.broadcast %189 : vector<8x1xf32> to vector<8x8xf32>
    %191 = arith.mulf %186, %190 : vector<8x8xf32>
    %192 = arith.truncf %191 : vector<8x8xf32> to vector<8x8xbf16>
    %cst_64 = arith.constant dense<0.000000e+00> : vector<8x8xf32>
    %193 = tpu.matmul %192, %178, %cst_64 {dimension_numbers = #tpu.dot_dimension_numbers<[1], [0], [0], [1], [0, 0, 1, 1], [], []>} : vector<8x8xbf16>, vector<8x8xbf16>, vector<8x8xf32> -> vector<8x8xf32>
    %194 = vector.extract_strided_slice %144 {offsets = [0, 16], sizes = [8, 8], strides = [1, 1]} : vector<8x32xf32> to vector<8x8xf32>
    %195 = arith.truncf %194 : vector<8x8xf32> to vector<8x8xbf16>
    %196 = vector.extract_strided_slice %145 {offsets = [0, 16], sizes = [8, 8], strides = [1, 1]} : vector<8x32xf32> to vector<8x8xf32>
    %197 = arith.truncf %196 : vector<8x8xf32> to vector<8x8xbf16>
    %198 = vector.extract_strided_slice %146 {offsets = [0, 16], sizes = [8, 8], strides = [1, 1]} : vector<8x32xf32> to vector<8x8xf32>
    %199 = arith.truncf %198 : vector<8x8xf32> to vector<8x8xbf16>
    %cst_65 = arith.constant dense<0.000000e+00> : vector<8x8xf32>
    %200 = tpu.matmul %195, %197, %cst_65 {dimension_numbers = #tpu.dot_dimension_numbers<[1], [1], [0], [0], [0, 0, 1, 0], [], []>} : vector<8x8xbf16>, vector<8x8xbf16>, vector<8x8xf32> -> vector<8x8xf32>
    %cst_66 = arith.constant -1.000000e+06 : f32
    %201 = vector.broadcast %cst_66 : f32 to vector<8x8xf32>
    %202 = arith.select %151, %200, %201 : vector<8x8xi1>, vector<8x8xf32>
    %cst_67 = arith.constant dense<0xFF800000> : vector<8xf32>
    %203 = vector.multi_reduction <maximumf>, %202, %cst_67 [1] : vector<8x8xf32> to vector<8xf32>
    %204 = vector.shape_cast %203 : vector<8xf32> to vector<8x1xf32>
    %205 = vector.broadcast %204 : vector<8x1xf32> to vector<8x8xf32>
    %206 = arith.subf %202, %205 : vector<8x8xf32>
    %207 = math.exp %206 : vector<8x8xf32>
    %cst_68 = arith.constant dense<0.000000e+00> : vector<8xf32>
    %208 = vector.multi_reduction <add>, %207, %cst_68 [1] : vector<8x8xf32> to vector<8xf32>
    %209 = vector.shape_cast %208 : vector<8xf32> to vector<8x1xf32>
    %210 = tpu.reciprocal %209 {approx = true} : vector<8x1xf32> -> vector<8x1xf32>
    %211 = vector.broadcast %210 : vector<8x1xf32> to vector<8x8xf32>
    %212 = arith.mulf %207, %211 : vector<8x8xf32>
    %213 = arith.truncf %212 : vector<8x8xf32> to vector<8x8xbf16>
    %cst_69 = arith.constant dense<0.000000e+00> : vector<8x8xf32>
    %214 = tpu.matmul %213, %199, %cst_69 {dimension_numbers = #tpu.dot_dimension_numbers<[1], [0], [0], [1], [0, 0, 1, 1], [], []>} : vector<8x8xbf16>, vector<8x8xbf16>, vector<8x8xf32> -> vector<8x8xf32>
    %215 = vector.extract_strided_slice %144 {offsets = [0, 24], sizes = [8, 8], strides = [1, 1]} : vector<8x32xf32> to vector<8x8xf32>
    %216 = arith.truncf %215 : vector<8x8xf32> to vector<8x8xbf16>
    %217 = vector.extract_strided_slice %145 {offsets = [0, 24], sizes = [8, 8], strides = [1, 1]} : vector<8x32xf32> to vector<8x8xf32>
    %218 = arith.truncf %217 : vector<8x8xf32> to vector<8x8xbf16>
    %219 = vector.extract_strided_slice %146 {offsets = [0, 24], sizes = [8, 8], strides = [1, 1]} : vector<8x32xf32> to vector<8x8xf32>
    %220 = arith.truncf %219 : vector<8x8xf32> to vector<8x8xbf16>
    %cst_70 = arith.constant dense<0.000000e+00> : vector<8x8xf32>
    %221 = tpu.matmul %216, %218, %cst_70 {dimension_numbers = #tpu.dot_dimension_numbers<[1], [1], [0], [0], [0, 0, 1, 0], [], []>} : vector<8x8xbf16>, vector<8x8xbf16>, vector<8x8xf32> -> vector<8x8xf32>
    %cst_71 = arith.constant -1.000000e+06 : f32
    %222 = vector.broadcast %cst_71 : f32 to vector<8x8xf32>
    %223 = arith.select %151, %221, %222 : vector<8x8xi1>, vector<8x8xf32>
    %cst_72 = arith.constant dense<0xFF800000> : vector<8xf32>
    %224 = vector.multi_reduction <maximumf>, %223, %cst_72 [1] : vector<8x8xf32> to vector<8xf32>
    %225 = vector.shape_cast %224 : vector<8xf32> to vector<8x1xf32>
    %226 = vector.broadcast %225 : vector<8x1xf32> to vector<8x8xf32>
    %227 = arith.subf %223, %226 : vector<8x8xf32>
    %228 = math.exp %227 : vector<8x8xf32>
    %cst_73 = arith.constant dense<0.000000e+00> : vector<8xf32>
    %229 = vector.multi_reduction <add>, %228, %cst_73 [1] : vector<8x8xf32> to vector<8xf32>
    %230 = vector.shape_cast %229 : vector<8xf32> to vector<8x1xf32>
    %231 = tpu.reciprocal %230 {approx = true} : vector<8x1xf32> -> vector<8x1xf32>
    %232 = vector.broadcast %231 : vector<8x1xf32> to vector<8x8xf32>
    %233 = arith.mulf %228, %232 : vector<8x8xf32>
    %234 = arith.truncf %233 : vector<8x8xf32> to vector<8x8xbf16>
    %cst_74 = arith.constant dense<0.000000e+00> : vector<8x8xf32>
    %235 = tpu.matmul %234, %220, %cst_74 {dimension_numbers = #tpu.dot_dimension_numbers<[1], [0], [0], [1], [0, 0, 1, 1], [], []>} : vector<8x8xbf16>, vector<8x8xbf16>, vector<8x8xf32> -> vector<8x8xf32>
    %236 = tpu.concatenate %172, %193, %214, %235 in 1 : vector<8x8xf32>, vector<8x8xf32>, vector<8x8xf32>, vector<8x8xf32> -> vector<8x32xf32>
    %237 = arith.truncf %236 : vector<8x32xf32> to vector<8x32xbf16>
    %cst_75 = arith.constant dense<0.000000e+00> : vector<8x32xf32>
    %238 = tpu.matmul %237, %147, %cst_75 {dimension_numbers = #tpu.dot_dimension_numbers<[1], [0], [0], [1], [0, 0, 1, 1], [], []>} : vector<8x32xbf16>, vector<32x32xbf16>, vector<8x32xf32> -> vector<8x32xf32>
    %c0_76 = arith.constant 0 : index
    %c0_77 = arith.constant 0 : index
    %239 = vector.load %arg12[%c0_76, %c0_77] : memref<1x32xf32, #tpu.memory_space<vmem>>, vector<1x32xf32>
    %c0_78 = arith.constant 0 : index
    %c0_79 = arith.constant 0 : index
    %240 = vector.load %arg13[%c0_78, %c0_79] : memref<1x32xf32, #tpu.memory_space<vmem>>, vector<1x32xf32>
    %241 = arith.addf %134, %238 : vector<8x32xf32>
    %cst_80 = arith.constant dense<0.000000e+00> : vector<8xf32>
    %242 = vector.multi_reduction <add>, %241, %cst_80 [1] : vector<8x32xf32> to vector<8xf32>
    %243 = vector.shape_cast %242 : vector<8xf32> to vector<8x1xf32>
    %cst_81 = arith.constant 3.200000e+01 : f32
    %244 = vector.broadcast %cst_81 : f32 to vector<8x1xf32>
    %245 = arith.divf %243, %244 : vector<8x1xf32>
    %246 = vector.broadcast %245 : vector<8x1xf32> to vector<8x32xf32>
    %247 = arith.subf %241, %246 : vector<8x32xf32>
    %248 = arith.mulf %247, %247 : vector<8x32xf32>
    %cst_82 = arith.constant dense<0.000000e+00> : vector<8xf32>
    %249 = vector.multi_reduction <add>, %248, %cst_82 [1] : vector<8x32xf32> to vector<8xf32>
    %250 = vector.shape_cast %249 : vector<8xf32> to vector<8x1xf32>
    %cst_83 = arith.constant 3.200000e+01 : f32
    %251 = vector.broadcast %cst_83 : f32 to vector<8x1xf32>
    %252 = arith.divf %250, %251 : vector<8x1xf32>
    %253 = vector.broadcast %245 : vector<8x1xf32> to vector<8x32xf32>
    %254 = arith.subf %241, %253 : vector<8x32xf32>
    %cst_84 = arith.constant 9.99999974E-6 : f32
    %255 = vector.broadcast %cst_84 : f32 to vector<8x1xf32>
    %256 = arith.addf %252, %255 : vector<8x1xf32>
    %257 = math.rsqrt %256 : vector<8x1xf32>
    %258 = vector.broadcast %257 : vector<8x1xf32> to vector<8x32xf32>
    %259 = arith.mulf %254, %258 : vector<8x32xf32>
    %260 = vector.broadcast %239 : vector<1x32xf32> to vector<8x32xf32>
    %261 = arith.mulf %259, %260 : vector<8x32xf32>
    %262 = vector.broadcast %240 : vector<1x32xf32> to vector<8x32xf32>
    %263 = arith.addf %261, %262 : vector<8x32xf32>
    %264 = arith.truncf %263 : vector<8x32xf32> to vector<8x32xbf16>
    %c0_85 = arith.constant 0 : index
    %c0_86 = arith.constant 0 : index
    %265 = vector.load %arg14[%c0_85, %c0_86] : memref<32x64xbf16, #tpu.memory_space<vmem>>, vector<32x64xbf16>
    %cst_87 = arith.constant dense<0.000000e+00> : vector<8x64xf32>
    %266 = tpu.matmul %264, %265, %cst_87 {dimension_numbers = #tpu.dot_dimension_numbers<[1], [0], [0], [1], [0, 0, 1, 1], [], []>} : vector<8x32xbf16>, vector<32x64xbf16>, vector<8x64xf32> -> vector<8x64xf32>
    %c0_88 = arith.constant 0 : index
    %c0_89 = arith.constant 0 : index
    %267 = vector.load %arg15[%c0_88, %c0_89] : memref<1x64xf32, #tpu.memory_space<vmem>>, vector<1x64xf32>
    %268 = vector.broadcast %267 : vector<1x64xf32> to vector<8x64xf32>
    %269 = arith.addf %266, %268 : vector<8x64xf32>
    %cst_90 = arith.constant 0.000000e+00 : f32
    %270 = vector.broadcast %cst_90 : f32 to vector<8x64xf32>
    %271 = arith.maximumf %269, %270 : vector<8x64xf32>
    %272 = arith.truncf %271 : vector<8x64xf32> to vector<8x64xbf16>
    %c0_91 = arith.constant 0 : index
    %c0_92 = arith.constant 0 : index
    %273 = vector.load %arg16[%c0_91, %c0_92] : memref<64x32xbf16, #tpu.memory_space<vmem>>, vector<64x32xbf16>
    %cst_93 = arith.constant dense<0.000000e+00> : vector<8x32xf32>
    %274 = tpu.matmul %272, %273, %cst_93 {dimension_numbers = #tpu.dot_dimension_numbers<[1], [0], [0], [1], [0, 0, 1, 1], [], []>} : vector<8x64xbf16>, vector<64x32xbf16>, vector<8x32xf32> -> vector<8x32xf32>
    %c0_94 = arith.constant 0 : index
    %c0_95 = arith.constant 0 : index
    %275 = vector.load %arg17[%c0_94, %c0_95] : memref<1x32xf32, #tpu.memory_space<vmem>>, vector<1x32xf32>
    %276 = vector.broadcast %275 : vector<1x32xf32> to vector<8x32xf32>
    %277 = arith.addf %274, %276 : vector<8x32xf32>
    %c0_96 = arith.constant 0 : index
    %c0_97 = arith.constant 0 : index
    %278 = vector.load %arg18[%c0_96, %c0_97] : memref<1x32xf32, #tpu.memory_space<vmem>>, vector<1x32xf32>
    %c0_98 = arith.constant 0 : index
    %c0_99 = arith.constant 0 : index
    %279 = vector.load %arg19[%c0_98, %c0_99] : memref<1x32xf32, #tpu.memory_space<vmem>>, vector<1x32xf32>
    %280 = arith.addf %263, %277 : vector<8x32xf32>
    %cst_100 = arith.constant dense<0.000000e+00> : vector<8xf32>
    %281 = vector.multi_reduction <add>, %280, %cst_100 [1] : vector<8x32xf32> to vector<8xf32>
    %282 = vector.shape_cast %281 : vector<8xf32> to vector<8x1xf32>
    %cst_101 = arith.constant 3.200000e+01 : f32
    %283 = vector.broadcast %cst_101 : f32 to vector<8x1xf32>
    %284 = arith.divf %282, %283 : vector<8x1xf32>
    %285 = vector.broadcast %284 : vector<8x1xf32> to vector<8x32xf32>
    %286 = arith.subf %280, %285 : vector<8x32xf32>
    %287 = arith.mulf %286, %286 : vector<8x32xf32>
    %cst_102 = arith.constant dense<0.000000e+00> : vector<8xf32>
    %288 = vector.multi_reduction <add>, %287, %cst_102 [1] : vector<8x32xf32> to vector<8xf32>
    %289 = vector.shape_cast %288 : vector<8xf32> to vector<8x1xf32>
    %cst_103 = arith.constant 3.200000e+01 : f32
    %290 = vector.broadcast %cst_103 : f32 to vector<8x1xf32>
    %291 = arith.divf %289, %290 : vector<8x1xf32>
    %292 = vector.broadcast %284 : vector<8x1xf32> to vector<8x32xf32>
    %293 = arith.subf %280, %292 : vector<8x32xf32>
    %cst_104 = arith.constant 9.99999974E-6 : f32
    %294 = vector.broadcast %cst_104 : f32 to vector<8x1xf32>
    %295 = arith.addf %291, %294 : vector<8x1xf32>
    %296 = math.rsqrt %295 : vector<8x1xf32>
    %297 = vector.broadcast %296 : vector<8x1xf32> to vector<8x32xf32>
    %298 = arith.mulf %293, %297 : vector<8x32xf32>
    %299 = vector.broadcast %278 : vector<1x32xf32> to vector<8x32xf32>
    %300 = arith.mulf %298, %299 : vector<8x32xf32>
    %301 = vector.broadcast %279 : vector<1x32xf32> to vector<8x32xf32>
    %302 = arith.addf %300, %301 : vector<8x32xf32>
    %303 = arith.truncf %302 : vector<8x32xf32> to vector<8x32xbf16>
    %c0_105 = arith.constant 0 : index
    %c0_106 = arith.constant 0 : index
    %c0_107 = arith.constant 0 : index
    %304 = vector.load %arg20[%c0_105, %c0_106, %c0_107] : memref<1x8x32xbf16, #tpu.memory_space<vmem>>, vector<1x8x32xbf16>
    %305 = vector.shape_cast %304 : vector<1x8x32xbf16> to vector<8x32xbf16>
    %306 = vector.shape_cast %303 : vector<8x32xbf16> to vector<1x8x32xbf16>
    tpu.vector_store %arg20[%c0_105, %c0_106, %c0_107], %306 {strides = array<i32>} : memref<1x8x32xbf16, #tpu.memory_space<vmem>>, vector<1x8x32xbf16>,
    return
  }
  func.func @transform_0(%arg0: i32, %arg1: memref<2xi32, #tpu.memory_space<smem>>) -> (i32, i32, i32) {
    %c0_i32 = arith.constant 0 : i32
    %c0_i32_0 = arith.constant 0 : i32
    %c0_i32_1 = arith.constant 0 : i32
    return %arg0, %c0_i32, %c0_i32_0 : i32, i32, i32
  }
  func.func @transform_1(%arg0: i32, %arg1: memref<2xi32, #tpu.memory_space<smem>>) -> (i32, i32, i32) {
    %c0_i32 = arith.constant 0 : i32
    %c0_i32_0 = arith.constant 0 : i32
    %c0_i32_1 = arith.constant 0 : i32
    return %arg0, %c0_i32, %c0_i32_0 : i32, i32, i32
  }
  func.func @transform_2(%arg0: i32, %arg1: memref<2xi32, #tpu.memory_space<smem>>) -> (i32, i32) {
    %c0_i32 = arith.constant 0 : i32
    %c0_i32_0 = arith.constant 0 : i32
    %c0_i32_1 = arith.constant 0 : i32
    return %c0_i32, %c0_i32_0 : i32, i32
  }
  func.func @transform_3(%arg0: i32, %arg1: memref<2xi32, #tpu.memory_space<smem>>) -> (i32, i32) {
    %c0_i32 = arith.constant 0 : i32
    %c0_i32_0 = arith.constant 0 : i32
    %c0_i32_1 = arith.constant 0 : i32
    return %c0_i32, %c0_i32_0 : i32, i32
  }
  func.func @transform_4(%arg0: i32, %arg1: memref<2xi32, #tpu.memory_space<smem>>) -> (i32, i32) {
    %c0_i32 = arith.constant 0 : i32
    %c0_i32_0 = arith.constant 0 : i32
    %c0_i32_1 = arith.constant 0 : i32
    return %c0_i32, %c0_i32_0 : i32, i32
  }
  func.func @transform_5(%arg0: i32, %arg1: memref<2xi32, #tpu.memory_space<smem>>) -> (i32, i32) {
    %c0_i32 = arith.constant 0 : i32
    %c0_i32_0 = arith.constant 0 : i32
    %c0_i32_1 = arith.constant 0 : i32
    return %c0_i32, %c0_i32_0 : i32, i32
  }
  func.func @transform_6(%arg0: i32, %arg1: memref<2xi32, #tpu.memory_space<smem>>) -> (i32, i32) {
    %c0_i32 = arith.constant 0 : i32
    %c0_i32_0 = arith.constant 0 : i32
    %c0_i32_1 = arith.constant 0 : i32
    return %c0_i32, %c0_i32_0 : i32, i32
  }
  func.func @transform_7(%arg0: i32, %arg1: memref<2xi32, #tpu.memory_space<smem>>) -> (i32, i32) {
    %c0_i32 = arith.constant 0 : i32
    %c0_i32_0 = arith.constant 0 : i32
    %c0_i32_1 = arith.constant 0 : i32
    return %c0_i32, %c0_i32_0 : i32, i32
  }
  func.func @transform_8(%arg0: i32, %arg1: memref<2xi32, #tpu.memory_space<smem>>) -> (i32, i32) {
    %c0_i32 = arith.constant 0 : i32
    %c0_i32_0 = arith.constant 0 : i32
    %c0_i32_1 = arith.constant 0 : i32
    return %c0_i32, %c0_i32_0 : i32, i32
  }
  func.func @transform_9(%arg0: i32, %arg1: memref<2xi32, #tpu.memory_space<smem>>) -> (i32, i32) {
    %c0_i32 = arith.constant 0 : i32
    %c0_i32_0 = arith.constant 0 : i32
    %c0_i32_1 = arith.constant 0 : i32
    return %c0_i32, %c0_i32_0 : i32, i32
  }
  func.func @transform_10(%arg0: i32, %arg1: memref<2xi32, #tpu.memory_space<smem>>) -> (i32, i32) {
    %c0_i32 = arith.constant 0 : i32
    %c0_i32_0 = arith.constant 0 : i32
    %c0_i32_1 = arith.constant 0 : i32
    return %c0_i32, %c0_i32_0 : i32, i32
  }
  func.func @transform_11(%arg0: i32, %arg1: memref<2xi32, #tpu.memory_space<smem>>) -> (i32, i32) {
    %c0_i32 = arith.constant 0 : i32
    %c0_i32_0 = arith.constant 0 : i32
    %c0_i32_1 = arith.constant 0 : i32
    return %c0_i32, %c0_i32_0 : i32, i32
  }
  func.func @transform_12(%arg0: i32, %arg1: memref<2xi32, #tpu.memory_space<smem>>) -> (i32, i32) {
    %c0_i32 = arith.constant 0 : i32
    %c0_i32_0 = arith.constant 0 : i32
    %c0_i32_1 = arith.constant 0 : i32
    return %c0_i32, %c0_i32_0 : i32, i32
  }
  func.func @transform_13(%arg0: i32, %arg1: memref<2xi32, #tpu.memory_space<smem>>) -> (i32, i32) {
    %c0_i32 = arith.constant 0 : i32
    %c0_i32_0 = arith.constant 0 : i32
    %c0_i32_1 = arith.constant 0 : i32
    return %c0_i32, %c0_i32_0 : i32, i32
  }
  func.func @transform_14(%arg0: i32, %arg1: memref<2xi32, #tpu.memory_space<smem>>) -> (i32, i32) {
    %c0_i32 = arith.constant 0 : i32
    %c0_i32_0 = arith.constant 0 : i32
    %c0_i32_1 = arith.constant 0 : i32
    return %c0_i32, %c0_i32_0 : i32, i32
  }
  func.func @transform_15(%arg0: i32, %arg1: memref<2xi32, #tpu.memory_space<smem>>) -> (i32, i32) {
    %c0_i32 = arith.constant 0 : i32
    %c0_i32_0 = arith.constant 0 : i32
    %c0_i32_1 = arith.constant 0 : i32
    return %c0_i32, %c0_i32_0 : i32, i32
  }
  func.func @transform_16(%arg0: i32, %arg1: memref<2xi32, #tpu.memory_space<smem>>) -> (i32, i32) {
    %c0_i32 = arith.constant 0 : i32
    %c0_i32_0 = arith.constant 0 : i32
    %c0_i32_1 = arith.constant 0 : i32
    return %c0_i32, %c0_i32_0 : i32, i32
  }
  func.func @transform_17(%arg0: i32, %arg1: memref<2xi32, #tpu.memory_space<smem>>) -> (i32, i32) {
    %c0_i32 = arith.constant 0 : i32
    %c0_i32_0 = arith.constant 0 : i32
    %c0_i32_1 = arith.constant 0 : i32
    return %c0_i32, %c0_i32_0 : i32, i32
  }
  func.func @transform_18(%arg0: i32, %arg1: memref<2xi32, #tpu.memory_space<smem>>) -> (i32, i32, i32) {
    %c0_i32 = arith.constant 0 : i32
    %c0_i32_0 = arith.constant 0 : i32
    %c0_i32_1 = arith.constant 0 : i32
    return %arg0, %c0_i32, %c0_i32_0 : i32, i32, i32
  }
  func.func @transform_19(%arg0: i32, %arg1: memref<2xi32, #tpu.memory_space<smem>>) -> (i32, i32, i32) {
    %c0_i32 = arith.constant 0 : i32
    %c0_i32_0 = arith.constant 0 : i32
    %c0_i32_1 = arith.constant 0 : i32
    return %arg0, %c0_i32, %c0_i32_0 : i32, i32, i32
  }
}

</mosaic_0001>

<llo_original>
// kernel: decoder_forward.5
$region0: #{decoder_forward.5}
  #allocation0 [shape = 'u32[]', space=smem, size = 0x4, offset = 0x4, fixed_abs, tag = 'smem constant byte address 0x4 - core index']
  #allocation1 [shape = 'u32[72,128]{1,0:T(1,128)}', space=vmem, size = 0x9000, scoped, tag = 'internal scratch']
  %s0 = inlined_call_operand.vmem [shape: bf16[16,32], index: 0, kind: input, shape index: {}]
  %s1 = inlined_call_operand.vmem [shape: bf16[32,32], index: 1, kind: input, shape index: {}]
  %s2 = inlined_call_operand.vmem [shape: f32[1,32], index: 2, kind: input, shape index: {}]
  %s3 = inlined_call_operand.hbm [shape: f32[16,32], index: 3, kind: output, shape index: {}]
  %s4 = sld [smem:[#allocation0]]
  $region22: #{decoder_forward.5} parent=0
    _
  %s6 = ssub.s32 1, %s4
  %s7 = scalar_select 0, %s6, %s4
  $region1: #{decoder_forward.5} parent=0
    #allocation2 [shape = 'u8[8192]{0}', space=vmem, size = 0x2000, scoped, tag = 'output window, operand 0, single buffered']
    #allocation3 [shape = 's32[1]{0}', space=sflag, size = 0x4, scoped, tag = 'scoped memory for decoder_forward.5']
    %8 = vsyncpa [#allocation3], 0
    // Predicated region
    $region2: #{decoder_forward.5} parent=1 // pred_check
      _
    $region3: #{decoder_forward.5} parent=1 // pred_check_branch
      %10 = sbr.rel (0) target = $region5
    $region4: #{decoder_forward.5} parent=1 // pred_region
      _
    $region5: #{decoder_forward.5} parent=1 // pred_fallthru
      _
    // Predicated region
    $region6: #{decoder_forward.5} parent=1 // pred_check
      _
    $region7: #{decoder_forward.5} parent=1 // pred_check_branch
      %12 = sbr.rel (0) target = $region9
    $region8: #{decoder_forward.5} parent=1 // pred_region
      _
    $region9: #{decoder_forward.5} parent=1 // pred_fallthru
      _
    // Predicated region
    $region10: #{decoder_forward.5} parent=1 // pred_check
      _
    $region11: #{decoder_forward.5} parent=1 // pred_check_branch
      %14 = sbr.rel (0) target = $region13
    $region12: #{decoder_forward.5} parent=1 // pred_region
      _
    $region13: #{decoder_forward.5} parent=1 // pred_fallthru
      _
    %v16 = vld [vmem:[%s0] sm:$0xf]
    %v17 = vld [vmem:[%s0 + $0x4] sm:$0xf]
    %v18 = vld [vmem:[%s1] sm:$0xf]
    %v19 = vld [vmem:[%s1 + $0x4] sm:$0xf]
    %v20 = vld [vmem:[%s1 + $0x8] sm:$0xf]
    %v21 = vld [vmem:[%s1 + $0xc] sm:$0xf]
    %v22 = vld [vmem:[%s2] sm:$0x1]
    %v24 = vperm.slane %v22, 0
    %v28 = vunpack.c.l.b16 %v16
    %v29 = vunpack.c.l.b16 %v17
    %v30 = vpack.c.b16 %v29, %v28
    %v35 = vunpack.c.l.b16 %v18
    %v36 = vunpack.c.l.b16 %v19
    %v37 = vunpack.c.l.b16 %v20
    %v38 = vunpack.c.l.b16 %v21
    %v39 = vpack.c.b16 %v36, %v35
    %v40 = vpack.c.b16 %v38, %v37
    %vm43 = vcmask 261120
    %v45 = vsel %vm43, %v30, 0
    %47 = vmatpush.bf16.msra.mxu0 0
    %48 = vmatpush.bf16.msra.mxu0 0
    %49 = vmatpush.bf16.msra.mxu0 0
    %50 = vmatpush.bf16.msra.mxu0 0
    %51 = vmatpush.bf16.msra.mxu0 0
    %52 = vmatpush.bf16.msra.mxu0 0
    %53 = vmatpush.bf16.msra.mxu0 %v40
    %54 = vmatpush.bf16.msra.mxu0 %v39
    %55 = vmatmul.bf16.gmra.mxu0 %v45
    %v56 = vpop.f32.mrf.mxu0
    %v57 = vadd.f32 %v24, %v56
    %v58 = vpop.f32.mrf.mxu0
    %v59 = vadd.f32 %v24, %v58
    %60 = vdwg.mxu0
    %61 = vst.msk [vmem:[#allocation2] sm:$0xff] %vm43, %v57
    %62 = vst.msk [vmem:[#allocation2 + $0x8] sm:$0xff] %vm43, %v59
    // Predicated region
    $region14: #{decoder_forward.5} parent=1 // pred_check
      _
    $region15: #{decoder_forward.5} parent=1 // pred_check_branch
      %64 = sbr.rel (0) target = $region17
    $region16: #{decoder_forward.5} parent=1 // pred_region
      %66 = vsyncadd [#allocation3], 0
      %s67 = sshll.u32 [#allocation2], 4
      %s68 = int_to_ptr.vmem [resolvable:$true] %s67
      %s69 = sshll.u32 %s3, 4
      %s70 = int_to_ptr.hbm [resolvable:$true] %s69
      %75 = dma.vmem_to_hbm [thread:$0]  %s68, 256, %s70, [#allocation3], 128, 128, 8
    $region17: #{decoder_forward.5} parent=1 // pred_fallthru
      _
    // Predicated region
    $region18: #{decoder_forward.5} parent=1 // pred_check
      _
    $region19: #{decoder_forward.5} parent=1 // pred_check_branch
      %77 = sbr.rel (0) target = $region21
    $region20: #{decoder_forward.5} parent=1 // pred_region
      %79 = dma.done [#allocation3], 256
    $region21: #{decoder_forward.5} parent=1 // pred_fallthru
      _
    %80 = vsyncpa [#allocation3], 1

// kernel: decoder_forward.4
$region0: #{decoder_forward.4}
  #allocation0 [shape = 'u32[]', space=smem, size = 0x4, offset = 0x4, fixed_abs, tag = 'smem constant byte address 0x4 - core index']
  #allocation1 [shape = 'u32[72,128]{1,0:T(1,128)}', space=vmem, size = 0x9000, scoped, tag = 'internal scratch']
  #allocation2 [shape = 's32[1]{0}', space=sflag, size = 0x4, scoped, tag = 'scoped memory for decoder_forward.4']
  #allocation3 [shape = 'u8[512]{0}', space=smem, size = 0x200, scoped, tag = 'prefetched SMEM operand 0']
  %s0 = inlined_call_operand.vmem [shape: s32[2], index: 0, kind: input, shape index: {}]
  %s1 = inlined_call_operand.vmem [shape: bf16[2,8,32], index: 1, kind: input, shape index: {}]
  %s2 = inlined_call_operand.vmem [shape: bf16[2,8,32], index: 2, kind: input, shape index: {}]
  %s3 = inlined_call_operand.vmem [shape: bf16[32,96], index: 3, kind: input, shape index: {}]
  %s4 = inlined_call_operand.vmem [shape: bf16[32,32], index: 4, kind: input, shape index: {}]
  %s5 = inlined_call_operand.vmem [shape: f32[1,32], index: 5, kind: input, shape index: {}]
  %s6 = inlined_call_operand.vmem [shape: f32[1,32], index: 6, kind: input, shape index: {}]
  %s7 = inlined_call_operand.vmem [shape: bf16[32,32], index: 7, kind: input, shape index: {}]
  %s8 = inlined_call_operand.vmem [shape: bf16[32,64], index: 8, kind: input, shape index: {}]
  %s9 = inlined_call_operand.vmem [shape: bf16[32,32], index: 9, kind: input, shape index: {}]
  %s10 = inlined_call_operand.vmem [shape: f32[1,32], index: 10, kind: input, shape index: {}]
  %s11 = inlined_call_operand.vmem [shape: f32[1,32], index: 11, kind: input, shape index: {}]
  %s12 = inlined_call_operand.vmem [shape: bf16[32,64], index: 12, kind: input, shape index: {}]
  %s13 = inlined_call_operand.vmem [shape: f32[1,64], index: 13, kind: input, shape index: {}]
  %s14 = inlined_call_operand.vmem [shape: bf16[64,32], index: 14, kind: input, shape index: {}]
  %s15 = inlined_call_operand.vmem [shape: f32[1,32], index: 15, kind: input, shape index: {}]
  %s16 = inlined_call_operand.vmem [shape: f32[1,32], index: 16, kind: input, shape index: {}]
  %s17 = inlined_call_operand.vmem [shape: f32[1,32], index: 17, kind: input, shape index: {}]
  %s18 = inlined_call_operand.vmem [shape: bf16[2,8,32], index: 18, kind: output, shape index: {}]
  %s19 = sld [smem:[#allocation0]]
  $region101: #{decoder_forward.4} parent=0
    _
  %s21 = ssub.s32 1, %s19
  %s22 = scalar_select 0, %s21, %s19
  %s24 = sshll.u32 %s0, 4
  %s25 = int_to_ptr.vmem [resolvable:$true] %s24
  %27 = dma.vmem_to_smem %s25, 16, [#allocation3], [#allocation2]
  %29 = dma.done [#allocation2], 16
  %30 = sfence
  loop: start=0, step=1, limit=4
  $region2: #{decoder_forward.4} parent=0 // loop_pre_header
    _
  $region3: #{decoder_forward.4} parent=0 // loop_header
    %s32 = sphi 0, %s36
    %p33 = scmp.ge.s32.totalorder %s32, 4
    %s42 = sphi 0, %s44
    %s45 = sphi 0, %s42
    %s46 = sphi 0, %s45
    %s62 = sphi 0, %s46
    %s68 = sphi 0, %s70
    %s71 = sphi 0, %s68
    %s72 = sphi 0, %s71
    %s88 = sphi 0, %s72
    %s92 = sphi 0, %s92
    %s94 = sphi 0, %s92
    %s95 = sphi 0, %s94
    %s109 = sphi 0, %s95
    %s113 = sphi 0, %s113
    %s115 = sphi 0, %s113
    %s116 = sphi 0, %s115
    %s130 = sphi 0, %s116
    %s134 = sphi 0, %s134
    %s136 = sphi 0, %s134
    %s137 = sphi 0, %s136
    %s151 = sphi 0, %s137
    %s155 = sphi 0, %s155
    %s157 = sphi 0, %s155
    %s158 = sphi 0, %s157
    %s172 = sphi 0, %s158
    %s176 = sphi 0, %s176
    %s178 = sphi 0, %s176
    %s179 = sphi 0, %s178
    %s193 = sphi 0, %s179
    %s197 = sphi 0, %s197
    %s199 = sphi 0, %s197
    %s200 = sphi 0, %s199
    %s214 = sphi 0, %s200
    %s218 = sphi 0, %s218
    %s220 = sphi 0, %s218
    %s221 = sphi 0, %s220
    %s235 = sphi 0, %s221
    %s239 = sphi 0, %s239
    %s241 = sphi 0, %s239
    %s242 = sphi 0, %s241
    %s256 = sphi 0, %s242
    %s260 = sphi 0, %s260
    %s262 = sphi 0, %s260
    %s263 = sphi 0, %s262
    %s277 = sphi 0, %s263
    %s281 = sphi 0, %s281
    %s283 = sphi 0, %s281
    %s284 = sphi 0, %s283
    %s298 = sphi 0, %s284
    %s302 = sphi 0, %s302
    %s304 = sphi 0, %s302
    %s305 = sphi 0, %s304
    %s319 = sphi 0, %s305
    %s323 = sphi 0, %s323
    %s325 = sphi 0, %s323
    %s326 = sphi 0, %s325
    %s340 = sphi 0, %s326
    %s344 = sphi 0, %s344
    %s346 = sphi 0, %s344
    %s347 = sphi 0, %s346
    %s361 = sphi 0, %s347
    %s365 = sphi 0, %s365
    %s367 = sphi 0, %s365
    %s368 = sphi 0, %s367
    %s382 = sphi 0, %s368
    %s386 = sphi 0, %s386
    %s388 = sphi 0, %s386
    %s389 = sphi 0, %s388
    %s403 = sphi 0, %s389
    %s409 = sphi 0, %s411
    %s412 = sphi 0, %s409
    %s413 = sphi 0, %s412
    %s429 = sphi 0, %s413
  $region4: #{decoder_forward.4} parent=0 // loop_header_branch
    %35 = sbr.rel (%p33) target = $region8
  $region5: #{decoder_forward.4} parent=0 // loop_body
    %s37 = ssub.s32 %s32, 1
    %s38 = ssub.s32 %s32, 2
    %s39 = sadd.s32 %s32, 1
    %s40 = ssub.s32 %s32, %s39
    %p41 = scmp.eq.s32.totalorder %s40, 0
    %s43 = sadd.s32 %s42, 1
    %s44 = scalar_select %p41, %s42, %s43
    %p47 = pneg %p41
    %p48 = scmp.eq.s32.totalorder %s32, 1
    %p49 = por %p47, %p48
    %p50 = scmp.ne.s32.totalorder %s42, %s45
    %p51 = scmp.eq.s32.totalorder %s32, 0
    %p52 = por %p50, %p51
    %p53 = scmp.ne.s32.totalorder %s42, %s45
    %p54 = scmp.eq.s32.totalorder %s37, 1
    %p55 = por %p53, %p54
    %p56 = scmp.ne.s32.totalorder %s45, %s46
    %p57 = scmp.eq.s32.totalorder %s37, 0
    %p58 = por %p56, %p57
    %p59 = scmp.ne.s32.totalorder %s45, %s46
    %p60 = scmp.eq.s32.totalorder %s38, 1
    %p61 = por %p59, %p60
    %p63 = scmp.ne.s32.totalorder %s46, %s62
    %p64 = scmp.eq.s32.totalorder %s38, 0
    %p65 = por %p63, %p64
    %s66 = ssub.s32 %s32, %s39
    %p67 = scmp.eq.s32.totalorder %s66, 0
    %s69 = sadd.s32 %s68, 1
    %s70 = scalar_select %p67, %s68, %s69
    %p73 = pneg %p67
    %p74 = scmp.eq.s32.totalorder %s32, 1
    %p75 = por %p73, %p74
    %p76 = scmp.ne.s32.totalorder %s68, %s71
    %p77 = scmp.eq.s32.totalorder %s32, 0
    %p78 = por %p76, %p77
    %p79 = scmp.ne.s32.totalorder %s68, %s71
    %p80 = scmp.eq.s32.totalorder %s37, 1
    %p81 = por %p79, %p80
    %p82 = scmp.ne.s32.totalorder %s71, %s72
    %p83 = scmp.eq.s32.totalorder %s37, 0
    %p84 = por %p82, %p83
    %p85 = scmp.ne.s32.totalorder %s71, %s72
    %p86 = scmp.eq.s32.totalorder %s38, 1
    %p87 = por %p85, %p86
    %p89 = scmp.ne.s32.totalorder %s72, %s88
    %p90 = scmp.eq.s32.totalorder %s38, 0
    %p91 = por %p89, %p90
    %s93 = sadd.s32 %s92, 1
    %p96 = scmp.eq.s32.totalorder %s32, 1
    %p97 = scmp.ne.s32.totalorder %s92, %s94
    %p98 = scmp.eq.s32.totalorder %s32, 0
    %p99 = por %p97, %p98
    %p100 = scmp.ne.s32.totalorder %s92, %s94
    %p101 = scmp.eq.s32.totalorder %s37, 1
    %p102 = por %p100, %p101
    %p103 = scmp.ne.s32.totalorder %s94, %s95
    %p104 = scmp.eq.s32.totalorder %s37, 0
    %p105 = por %p103, %p104
    %p106 = scmp.ne.s32.totalorder %s94, %s95
    %p107 = scmp.eq.s32.totalorder %s38, 1
    %p108 = por %p106, %p107
    %p110 = scmp.ne.s32.totalorder %s95, %s109
    %p111 = scmp.eq.s32.totalorder %s38, 0
    %p112 = por %p110, %p111
    %s114 = sadd.s32 %s113, 1
    %p117 = scmp.eq.s32.totalorder %s32, 1
    %p118 = scmp.ne.s32.totalorder %s113, %s115
    %p119 = scmp.eq.s32.totalorder %s32, 0
    %p120 = por %p118, %p119
    %p121 = scmp.ne.s32.totalorder %s113, %s115
    %p122 = scmp.eq.s32.totalorder %s37, 1
    %p123 = por %p121, %p122
    %p124 = scmp.ne.s32.totalorder %s115, %s116
    %p125 = scmp.eq.s32.totalorder %s37, 0
    %p126 = por %p124, %p125
    %p127 = scmp.ne.s32.totalorder %s115, %s116
    %p128 = scmp.eq.s32.totalorder %s38, 1
    %p129 = por %p127, %p128
    %p131 = scmp.ne.s32.totalorder %s116, %s130
    %p132 = scmp.eq.s32.totalorder %s38, 0
    %p133 = por %p131, %p132
    %s135 = sadd.s32 %s134, 1
    %p138 = scmp.eq.s32.totalorder %s32, 1
    %p139 = scmp.ne.s32.totalorder %s134, %s136
    %p140 = scmp.eq.s32.totalorder %s32, 0
    %p141 = por %p139, %p140
    %p142 = scmp.ne.s32.totalorder %s134, %s136
    %p143 = scmp.eq.s32.totalorder %s37, 1
    %p144 = por %p142, %p143
    %p145 = scmp.ne.s32.totalorder %s136, %s137
    %p146 = scmp.eq.s32.totalorder %s37, 0
    %p147 = por %p145, %p146
    %p148 = scmp.ne.s32.totalorder %s136, %s137
    %p149 = scmp.eq.s32.totalorder %s38, 1
    %p150 = por %p148, %p149
    %p152 = scmp.ne.s32.totalorder %s137, %s151
    %p153 = scmp.eq.s32.totalorder %s38, 0
    %p154 = por %p152, %p153
    %s156 = sadd.s32 %s155, 1
    %p159 = scmp.eq.s32.totalorder %s32, 1
    %p160 = scmp.ne.s32.totalorder %s155, %s157
    %p161 = scmp.eq.s32.totalorder %s32, 0
    %p162 = por %p160, %p161
    %p163 = scmp.ne.s32.totalorder %s155, %s157
    %p164 = scmp.eq.s32.totalorder %s37, 1
    %p165 = por %p163, %p164
    %p166 = scmp.ne.s32.totalorder %s157, %s158
    %p167 = scmp.eq.s32.totalorder %s37, 0
    %p168 = por %p166, %p167
    %p169 = scmp.ne.s32.totalorder %s157, %s158
    %p170 = scmp.eq.s32.totalorder %s38, 1
    %p171 = por %p169, %p170
    %p173 = scmp.ne.s32.totalorder %s158, %s172
    %p174 = scmp.eq.s32.totalorder %s38, 0
    %p175 = por %p173, %p174
    %s177 = sadd.s32 %s176, 1
    %p180 = scmp.eq.s32.totalorder %s32, 1
    %p181 = scmp.ne.s32.totalorder %s176, %s178
    %p182 = scmp.eq.s32.totalorder %s32, 0
    %p183 = por %p181, %p182
    %p184 = scmp.ne.s32.totalorder %s176, %s178
    %p185 = scmp.eq.s32.totalorder %s37, 1
    %p186 = por %p184, %p185
    %p187 = scmp.ne.s32.totalorder %s178, %s179
    %p188 = scmp.eq.s32.totalorder %s37, 0
    %p189 = por %p187, %p188
    %p190 = scmp.ne.s32.totalorder %s178, %s179
    %p191 = scmp.eq.s32.totalorder %s38, 1
    %p192 = por %p190, %p191
    %p194 = scmp.ne.s32.totalorder %s179, %s193
    %p195 = scmp.eq.s32.totalorder %s38, 0
    %p196 = por %p194, %p195
    %s198 = sadd.s32 %s197, 1
    %p201 = scmp.eq.s32.totalorder %s32, 1
    %p202 = scmp.ne.s32.totalorder %s197, %s199
    %p203 = scmp.eq.s32.totalorder %s32, 0
    %p204 = por %p202, %p203
    %p205 = scmp.ne.s32.totalorder %s197, %s199
    %p206 = scmp.eq.s32.totalorder %s37, 1
    %p207 = por %p205, %p206
    %p208 = scmp.ne.s32.totalorder %s199, %s200
    %p209 = scmp.eq.s32.totalorder %s37, 0
    %p210 = por %p208, %p209
    %p211 = scmp.ne.s32.totalorder %s199, %s200
    %p212 = scmp.eq.s32.totalorder %s38, 1
    %p213 = por %p211, %p212
    %p215 = scmp.ne.s32.totalorder %s200, %s214
    %p216 = scmp.eq.s32.totalorder %s38, 0
    %p217 = por %p215, %p216
    %s219 = sadd.s32 %s218, 1
    %p222 = scmp.eq.s32.totalorder %s32, 1
    %p223 = scmp.ne.s32.totalorder %s218, %s220
    %p224 = scmp.eq.s32.totalorder %s32, 0
    %p225 = por %p223, %p224
    %p226 = scmp.ne.s32.totalorder %s218, %s220
    %p227 = scmp.eq.s32.totalorder %s37, 1
    %p228 = por %p226, %p227
    %p229 = scmp.ne.s32.totalorder %s220, %s221
    %p230 = scmp.eq.s32.totalorder %s37, 0
    %p231 = por %p229, %p230
    %p232 = scmp.ne.s32.totalorder %s220, %s221
    %p233 = scmp.eq.s32.totalorder %s38, 1
    %p234 = por %p232, %p233
    %p236 = scmp.ne.s32.totalorder %s221, %s235
    %p237 = scmp.eq.s32.totalorder %s38, 0
    %p238 = por %p236, %p237
    %s240 = sadd.s32 %s239, 1
    %p243 = scmp.eq.s32.totalorder %s32, 1
    %p244 = scmp.ne.s32.totalorder %s239, %s241
    %p245 = scmp.eq.s32.totalorder %s32, 0
    %p246 = por %p244, %p245
    %p247 = scmp.ne.s32.totalorder %s239, %s241
    %p248 = scmp.eq.s32.totalorder %s37, 1
    %p249 = por %p247, %p248
    %p250 = scmp.ne.s32.totalorder %s241, %s242
    %p251 = scmp.eq.s32.totalorder %s37, 0
    %p252 = por %p250, %p251
    %p253 = scmp.ne.s32.totalorder %s241, %s242
    %p254 = scmp.eq.s32.totalorder %s38, 1
    %p255 = por %p253, %p254
    %p257 = scmp.ne.s32.totalorder %s242, %s256
    %p258 = scmp.eq.s32.totalorder %s38, 0
    %p259 = por %p257, %p258
    %s261 = sadd.s32 %s260, 1
    %p264 = scmp.eq.s32.totalorder %s32, 1
    %p265 = scmp.ne.s32.totalorder %s260, %s262
    %p266 = scmp.eq.s32.totalorder %s32, 0
    %p267 = por %p265, %p266
    %p268 = scmp.ne.s32.totalorder %s260, %s262
    %p269 = scmp.eq.s32.totalorder %s37, 1
    %p270 = por %p268, %p269
    %p271 = scmp.ne.s32.totalorder %s262, %s263
    %p272 = scmp.eq.s32.totalorder %s37, 0
    %p273 = por %p271, %p272
    %p274 = scmp.ne.s32.totalorder %s262, %s263
    %p275 = scmp.eq.s32.totalorder %s38, 1
    %p276 = por %p274, %p275
    %p278 = scmp.ne.s32.totalorder %s263, %s277
    %p279 = scmp.eq.s32.totalorder %s38, 0
    %p280 = por %p278, %p279
    %s282 = sadd.s32 %s281, 1
    %p285 = scmp.eq.s32.totalorder %s32, 1
    %p286 = scmp.ne.s32.totalorder %s281, %s283
    %p287 = scmp.eq.s32.totalorder %s32, 0
    %p288 = por %p286, %p287
    %p289 = scmp.ne.s32.totalorder %s281, %s283
    %p290 = scmp.eq.s32.totalorder %s37, 1
    %p291 = por %p289, %p290
    %p292 = scmp.ne.s32.totalorder %s283, %s284
    %p293 = scmp.eq.s32.totalorder %s37, 0
    %p294 = por %p292, %p293
    %p295 = scmp.ne.s32.totalorder %s283, %s284
    %p296 = scmp.eq.s32.totalorder %s38, 1
    %p297 = por %p295, %p296
    %p299 = scmp.ne.s32.totalorder %s284, %s298
    %p300 = scmp.eq.s32.totalorder %s38, 0
    %p301 = por %p299, %p300
    %s303 = sadd.s32 %s302, 1
    %p306 = scmp.eq.s32.totalorder %s32, 1
    %p307 = scmp.ne.s32.totalorder %s302, %s304
    %p308 = scmp.eq.s32.totalorder %s32, 0
    %p309 = por %p307, %p308
    %p310 = scmp.ne.s32.totalorder %s302, %s304
    %p311 = scmp.eq.s32.totalorder %s37, 1
    %p312 = por %p310, %p311
    %p313 = scmp.ne.s32.totalorder %s304, %s305
    %p314 = scmp.eq.s32.totalorder %s37, 0
    %p315 = por %p313, %p314
    %p316 = scmp.ne.s32.totalorder %s304, %s305
    %p317 = scmp.eq.s32.totalorder %s38, 1
    %p318 = por %p316, %p317
    %p320 = scmp.ne.s32.totalorder %s305, %s319
    %p321 = scmp.eq.s32.totalorder %s38, 0
    %p322 = por %p320, %p321
    %s324 = sadd.s32 %s323, 1
    %p327 = scmp.eq.s32.totalorder %s32, 1
    %p328 = scmp.ne.s32.totalorder %s323, %s325
    %p329 = scmp.eq.s32.totalorder %s32, 0
    %p330 = por %p328, %p329
    %p331 = scmp.ne.s32.totalorder %s323, %s325
    %p332 = scmp.eq.s32.totalorder %s37, 1
    %p333 = por %p331, %p332
    %p334 = scmp.ne.s32.totalorder %s325, %s326
    %p335 = scmp.eq.s32.totalorder %s37, 0
    %p336 = por %p334, %p335
    %p337 = scmp.ne.s32.totalorder %s325, %s326
    %p338 = scmp.eq.s32.totalorder %s38, 1
    %p339 = por %p337, %p338
    %p341 = scmp.ne.s32.totalorder %s326, %s340
    %p342 = scmp.eq.s32.totalorder %s38, 0
    %p343 = por %p341, %p342
    %s345 = sadd.s32 %s344, 1
    %p348 = scmp.eq.s32.totalorder %s32, 1
    %p349 = scmp.ne.s32.totalorder %s344, %s346
    %p350 = scmp.eq.s32.totalorder %s32, 0
    %p351 = por %p349, %p350
    %p352 = scmp.ne.s32.totalorder %s344, %s346
    %p353 = scmp.eq.s32.totalorder %s37, 1
    %p354 = por %p352, %p353
    %p355 = scmp.ne.s32.totalorder %s346, %s347
    %p356 = scmp.eq.s32.totalorder %s37, 0
    %p357 = por %p355, %p356
    %p358 = scmp.ne.s32.totalorder %s346, %s347
    %p359 = scmp.eq.s32.totalorder %s38, 1
    %p360 = por %p358, %p359
    %p362 = scmp.ne.s32.totalorder %s347, %s361
    %p363 = scmp.eq.s32.totalorder %s38, 0
    %p364 = por %p362, %p363
    %s366 = sadd.s32 %s365, 1
    %p369 = scmp.eq.s32.totalorder %s32, 1
    %p370 = scmp.ne.s32.totalorder %s365, %s367
    %p371 = scmp.eq.s32.totalorder %s32, 0
    %p372 = por %p370, %p371
    %p373 = scmp.ne.s32.totalorder %s365, %s367
    %p374 = scmp.eq.s32.totalorder %s37, 1
    %p375 = por %p373, %p374
    %p376 = scmp.ne.s32.totalorder %s367, %s368
    %p377 = scmp.eq.s32.totalorder %s37, 0
    %p378 = por %p376, %p377
    %p379 = scmp.ne.s32.totalorder %s367, %s368
    %p380 = scmp.eq.s32.totalorder %s38, 1
    %p381 = por %p379, %p380
    %p383 = scmp.ne.s32.totalorder %s368, %s382
    %p384 = scmp.eq.s32.totalorder %s38, 0
    %p385 = por %p383, %p384
    %s387 = sadd.s32 %s386, 1
    %p390 = scmp.eq.s32.totalorder %s32, 1
    %p391 = scmp.ne.s32.totalorder %s386, %s388
    %p392 = scmp.eq.s32.totalorder %s32, 0
    %p393 = por %p391, %p392
    %p394 = scmp.ne.s32.totalorder %s386, %s388
    %p395 = scmp.eq.s32.totalorder %s37, 1
    %p396 = por %p394, %p395
    %p397 = scmp.ne.s32.totalorder %s388, %s389
    %p398 = scmp.eq.s32.totalorder %s37, 0
    %p399 = por %p397, %p398
    %p400 = scmp.ne.s32.totalorder %s388, %s389
    %p401 = scmp.eq.s32.totalorder %s38, 1
    %p402 = por %p400, %p401
    %p404 = scmp.ne.s32.totalorder %s389, %s403
    %p405 = scmp.eq.s32.totalorder %s38, 0
    %p406 = por %p404, %p405
    %s407 = ssub.s32 %s32, %s39
    %p408 = scmp.eq.s32.totalorder %s407, 0
    %s410 = sadd.s32 %s409, 1
    %s411 = scalar_select %p408, %s409, %s410
    %p414 = pneg %p408
    %p415 = scmp.eq.s32.totalorder %s32, 1
    %p416 = por %p414, %p415
    %p417 = scmp.ne.s32.totalorder %s409, %s412
    %p418 = scmp.eq.s32.totalorder %s32, 0
    %p419 = por %p417, %p418
    %p420 = scmp.ne.s32.totalorder %s409, %s412
    %p421 = scmp.eq.s32.totalorder %s37, 1
    %p422 = por %p420, %p421
    %p423 = scmp.ne.s32.totalorder %s412, %s413
    %p424 = scmp.eq.s32.totalorder %s37, 0
    %p425 = por %p423, %p424
    %p426 = scmp.ne.s32.totalorder %s412, %s413
    %p427 = scmp.eq.s32.totalorder %s38, 1
    %p428 = por %p426, %p427
    %p430 = scmp.ne.s32.totalorder %s413, %s429
    %p431 = scmp.eq.s32.totalorder %s38, 0
    %p432 = por %p430, %p431
    %p433 = scmp.le.s32.totalorder 1, %s32
    %p434 = scmp.lt.s32.totalorder %s32, 3
    %p435 = pnand %p433, %p434
    %p436 = pneg %p435
    // Predicated region
    $region9: #{decoder_forward.4} parent=5 // pred_check
      _
    $region10: #{decoder_forward.4} parent=5 // pred_check_branch
      %438 = sbr.rel (%p435) target = $region12
    $region11: #{decoder_forward.4} parent=5 // pred_region
      %s439 = ssub.s32 %s32, 1
      // Predicated region
      $region13: #{decoder_forward.4} parent=11 // pred_check
        %p440 = pneg %p105
      $region14: #{decoder_forward.4} parent=11 // pred_check_branch
        %442 = sbr.rel (%p440) target = $region16
      $region15: #{decoder_forward.4} parent=11 // pred_region
        _
      $region16: #{decoder_forward.4} parent=11 // pred_fallthru
        _
      // Predicated region
      $region17: #{decoder_forward.4} parent=11 // pred_check
        %p443 = pneg %p126
      $region18: #{decoder_forward.4} parent=11 // pred_check_branch
        %445 = sbr.rel (%p443) target = $region20
      $region19: #{decoder_forward.4} parent=11 // pred_region
        _
      $region20: #{decoder_forward.4} parent=11 // pred_fallthru
        _
      // Predicated region
      $region21: #{decoder_forward.4} parent=11 // pred_check
        %p446 = pneg %p147
      $region22: #{decoder_forward.4} parent=11 // pred_check_branch
        %448 = sbr.rel (%p446) target = $region24
      $region23: #{decoder_forward.4} parent=11 // pred_region
        _
      $region24: #{decoder_forward.4} parent=11 // pred_fallthru
        _
      // Predicated region
      $region25: #{decoder_forward.4} parent=11 // pred_check
        %p449 = pneg %p168
      $region26: #{decoder_forward.4} parent=11 // pred_check_branch
        %451 = sbr.rel (%p449) target = $region28
      $region27: #{decoder_forward.4} parent=11 // pred_region
        _
      $region28: #{decoder_forward.4} parent=11 // pred_fallthru
        _
      // Predicated region
      $region29: #{decoder_forward.4} parent=11 // pred_check
        %p452 = pneg %p189
      $region30: #{decoder_forward.4} parent=11 // pred_check_branch
        %454 = sbr.rel (%p452) target = $region32
      $region31: #{decoder_forward.4} parent=11 // pred_region
        _
      $region32: #{decoder_forward.4} parent=11 // pred_fallthru
        _
      // Predicated region
      $region33: #{decoder_forward.4} parent=11 // pred_check
        %p455 = pneg %p210
      $region34: #{decoder_forward.4} parent=11 // pred_check_branch
        %457 = sbr.rel (%p455) target = $region36
      $region35: #{decoder_forward.4} parent=11 // pred_region
        _
      $region36: #{decoder_forward.4} parent=11 // pred_fallthru
        _
      // Predicated region
      $region37: #{decoder_forward.4} parent=11 // pred_check
        %p458 = pneg %p231
      $region38: #{decoder_forward.4} parent=11 // pred_check_branch
        %460 = sbr.rel (%p458) target = $region40
      $region39: #{decoder_forward.4} parent=11 // pred_region
        _
      $region40: #{decoder_forward.4} parent=11 // pred_fallthru
        _
      // Predicated region
      $region41: #{decoder_forward.4} parent=11 // pred_check
        %p461 = pneg %p252
      $region42: #{decoder_forward.4} parent=11 // pred_check_branch
        %463 = sbr.rel (%p461) target = $region44
      $region43: #{decoder_forward.4} parent=11 // pred_region
        _
      $region44: #{decoder_forward.4} parent=11 // pred_fallthru
        _
      // Predicated region
      $region45: #{decoder_forward.4} parent=11 // pred_check
        %p464 = pneg %p273
      $region46: #{decoder_forward.4} parent=11 // pred_check_branch
        %466 = sbr.rel (%p464) target = $region48
      $region47: #{decoder_forward.4} parent=11 // pred_region
        _
      $region48: #{decoder_forward.4} parent=11 // pred_fallthru
        _
      // Predicated region
      $region49: #{decoder_forward.4} parent=11 // pred_check
        %p467 = pneg %p294
      $region50: #{decoder_forward.4} parent=11 // pred_check_branch
        %469 = sbr.rel (%p467) target = $region52
      $region51: #{decoder_forward.4} parent=11 // pred_region
        _
      $region52: #{decoder_forward.4} parent=11 // pred_fallthru
        _
      // Predicated region
      $region53: #{decoder_forward.4} parent=11 // pred_check
        %p470 = pneg %p315
      $region54: #{decoder_forward.4} parent=11 // pred_check_branch
        %472 = sbr.rel (%p470) target = $region56
      $region55: #{decoder_forward.4} parent=11 // pred_region
        _
      $region56: #{decoder_forward.4} parent=11 // pred_fallthru
        _
      // Predicated region
      $region57: #{decoder_forward.4} parent=11 // pred_check
        %p473 = pneg %p336
      $region58: #{decoder_forward.4} parent=11 // pred_check_branch
        %475 = sbr.rel (%p473) target = $region60
      $region59: #{decoder_forward.4} parent=11 // pred_region
        _
      $region60: #{decoder_forward.4} parent=11 // pred_fallthru
        _
      // Predicated region
      $region61: #{decoder_forward.4} parent=11 // pred_check
        %p476 = pneg %p357
      $region62: #{decoder_forward.4} parent=11 // pred_check_branch
        %478 = sbr.rel (%p476) target = $region64
      $region63: #{decoder_forward.4} parent=11 // pred_region
        _
      $region64: #{decoder_forward.4} parent=11 // pred_fallthru
        _
      // Predicated region
      $region65: #{decoder_forward.4} parent=11 // pred_check
        %p479 = pneg %p378
      $region66: #{decoder_forward.4} parent=11 // pred_check_branch
        %481 = sbr.rel (%p479) target = $region68
      $region67: #{decoder_forward.4} parent=11 // pred_region
        _
      $region68: #{decoder_forward.4} parent=11 // pred_fallthru
        _
      // Predicated region
      $region69: #{decoder_forward.4} parent=11 // pred_check
        %p482 = pneg %p399
      $region70: #{decoder_forward.4} parent=11 // pred_check_branch
        %484 = sbr.rel (%p482) target = $region72
      $region71: #{decoder_forward.4} parent=11 // pred_region
        _
      $region72: #{decoder_forward.4} parent=11 // pred_fallthru
        _
    $region12: #{decoder_forward.4} parent=5 // pred_fallthru
      _
    %p485 = scmp.lt.s32.totalorder %s32, 2
    // Predicated region
    $region73: #{decoder_forward.4} parent=5 // pred_check
      %p486 = pneg %p485
    $region74: #{decoder_forward.4} parent=5 // pred_check_branch
      %488 = sbr.rel (%p486) target = $region76
    $region75: #{decoder_forward.4} parent=5 // pred_region
      // Predicated region
      $region77: #{decoder_forward.4} parent=75 // pred_check
        %p489 = pneg %p52
      $region78: #{decoder_forward.4} parent=75 // pred_check_branch
        %491 = sbr.rel (%p489) target = $region80
      $region79: #{decoder_forward.4} parent=75 // pred_region
        %p492 = scmp.lt.s32.totalorder %s32, 1
        %s493 = scalar_select %p492, %s32, 1
        %s494 = smul.addr %s493, 4
        %s495 = scalar_lea.vmem %s1, %s494
      $region80: #{decoder_forward.4} parent=75 // pred_fallthru
        _
      // Predicated region
      $region81: #{decoder_forward.4} parent=75 // pred_check
        %p496 = pneg %p78
      $region82: #{decoder_forward.4} parent=75 // pred_check_branch
        %498 = sbr.rel (%p496) target = $region84
      $region83: #{decoder_forward.4} parent=75 // pred_region
        %p499 = scmp.lt.s32.totalorder %s32, 1
        %s500 = scalar_select %p499, %s32, 1
        %s501 = smul.addr %s500, 4
        %s502 = scalar_lea.vmem %s2, %s501
      $region84: #{decoder_forward.4} parent=75 // pred_fallthru
        _
    $region76: #{decoder_forward.4} parent=5 // pred_fallthru
      _
    %p503 = scmp.le.s32.totalorder 1, %s32
    %p504 = scmp.lt.s32.totalorder %s32, 3
    %p505 = pnand %p503, %p504
    %p506 = pneg %p505
    // Predicated region
    $region85: #{decoder_forward.4} parent=5 // pred_check
      _
    $region86: #{decoder_forward.4} parent=5 // pred_check_branch
      %508 = sbr.rel (%p505) target = $region88
    $region87: #{decoder_forward.4} parent=5 // pred_region
      %s509 = ssub.s32 %s32, 1
      %p510 = scmp.lt.s32.totalorder %s37, 1
      %s511 = scalar_select %p510, %s37, 1
      %s512 = smul.addr %s511, 4
      %s513 = scalar_lea.vmem %s1, %s512
      %p514 = pneg %p58
      %p515 = pneg %p55
      %p516 = scmp.lt.s32.totalorder %s37, 1
      %s517 = scalar_select %p516, %s37, 1
      %s518 = smul.addr %s517, 4
      %s519 = scalar_lea.vmem %s2, %s518
      %p520 = pneg %p84
      %p521 = pneg %p81
      %p522 = pneg %p105
      %p523 = pneg %p102
      %p524 = pneg %p126
      %p525 = pneg %p123
      %p526 = pneg %p147
      %p527 = pneg %p144
      %p528 = pneg %p168
      %p529 = pneg %p165
      %p530 = pneg %p189
      %p531 = pneg %p186
      %p532 = pneg %p210
      %p533 = pneg %p207
      %p534 = pneg %p231
      %p535 = pneg %p228
      %p536 = pneg %p252
      %p537 = pneg %p249
      %p538 = pneg %p273
      %p539 = pneg %p270
      %p540 = pneg %p294
      %p541 = pneg %p291
      %p542 = pneg %p315
      %p543 = pneg %p312
      %p544 = pneg %p336
      %p545 = pneg %p333
      %p546 = pneg %p357
      %p547 = pneg %p354
      %p548 = pneg %p378
      %p549 = pneg %p375
      %p550 = pneg %p399
      %p551 = pneg %p396
      %p552 = pneg %p425
      %p553 = pneg %p422
      %p554 = scmp.lt.s32.totalorder %s37, 1
      %s555 = scalar_select %p554, %s37, 1
      %s556 = smul.addr %s555, 4
      %s557 = scalar_lea.vmem %s18, %s556
      %p558 = scmp.lt.s32.totalorder %s37, 1
      %s559 = scalar_select %p558, %s37, 1
      %s560 = smul.addr %s559, 4
      %s561 = scalar_lea.vmem %s1, %s560
      %p562 = scmp.lt.s32.totalorder %s37, 1
      %s563 = scalar_select %p562, %s37, 1
      %s564 = smul.addr %s563, 4
      %s565 = scalar_lea.vmem %s2, %s564
      %p566 = scmp.lt.s32.totalorder %s37, 1
      %s567 = scalar_select %p566, %s37, 1
      %s568 = smul.addr %s567, 4
      %s569 = scalar_lea.vmem %s18, %s568
      %v571 = vld [vmem:[%s561] sm:$0xf]
      %v572 = vunpack.c.l.bf16 %v571
      %v573 = vld [vmem:[%s3] sm:$0xf]
      %v574 = vld [vmem:[%s3 + $0x4] sm:$0xf]
      %v575 = vld [vmem:[%s3 + $0x8] sm:$0xf]
      %v576 = vld [vmem:[%s3 + $0xc] sm:$0xf]
      %v581 = vunpack.c.l.b16 %v573
      %v582 = vunpack.c.l.b16 %v574
      %v583 = vunpack.c.l.b16 %v575
      %v584 = vunpack.c.l.b16 %v576
      %v585 = vpack.c.b16 %v582, %v581
      %v586 = vpack.c.b16 %v584, %v583
      %vm589 = vcmask 261120
      %v591 = vsel %vm589, %v571, 0
      %593 = vmatpush.bf16.msra.mxu0 0
      %594 = vmatpush.bf16.msra.mxu0 0
      %595 = vmatpush.bf16.msra.mxu0 0
      %596 = vmatpush.bf16.msra.mxu0 0
      %597 = vmatpush.bf16.msra.mxu0 0
      %598 = vmatpush.bf16.msra.mxu0 0
      %599 = vmatpush.bf16.msra.mxu0 %v586
      %600 = vmatpush.bf16.msra.mxu0 %v585
      %601 = vmatmul.bf16.gmra.mxu0 %v591
      %v602 = vpop.f32.mrf.mxu0
      %v603 = vadd.f32 0.0, %v602
      %v604 = vpop.f32.mrf.mxu0
      %605 = vdwg.mxu0
      %v606 = vlaneseq
      %v607 = vshrl.u32 %v606, 7
      %v608 = vlaneseq
      %v609 = vand.u32 %v608, 127
      %v610 = vmul.f32 %v603, 0.35355338
      %v611 = vld [vmem:[%s4] sm:$0xf]
      %v612 = vld [vmem:[%s4 + $0x4] sm:$0xf]
      %v613 = vld [vmem:[%s4 + $0x8] sm:$0xf]
      %v614 = vld [vmem:[%s4 + $0xc] sm:$0xf]
      %vm615 = vcmp.ge.s32.totalorder %v607, %v609
      %v616 = vpack.c.bf16 %v610, %v610
      %v617 = vpack.c.bf16 %v603, %v603
      %619 = vrot.lane.b32.xlu0 %v617, 96
      %v620 = vpop.permute.xlu0 %619
      %vm621 = vcmask 64512
      %v623 = vsel %vm621, %v616, 0
      %v626 = vsel %vm621, %v620, 0
      %628 = vmatpush.bf16.xpose.msra.mxu0 0
      %629 = vmatpush.bf16.xpose.msra.mxu0 0
      %630 = vmatpush.bf16.xpose.msra.mxu0 0
      %631 = vmatpush.bf16.xpose.msra.mxu0 0
      %632 = vmatpush.bf16.xpose.msra.mxu0 0
      %633 = vmatpush.bf16.xpose.msra.mxu0 0
      %634 = vmatpush.bf16.xpose.msra.mxu0 0
      %635 = vmatpush.bf16.xpose.msra.mxu0 %v626
      %636 = vmatmul.bf16.gmra.mxu0 %v623
      %v637 = vpop.f32.mrf.mxu0
      %v638 = vadd.f32 0.0, %v637
      %v639 = vpop.f32.mrf.mxu0
      %640 = vdwg.mxu0
      %v641 = vsel %vm615, %v638, -1000000.0
      %v642 = vsel %vm621, %v641, -inf
      %643 = vmax.xlane.f32.xlu0 %v642
      %v644 = vpop.xlane.xlu0 %643
      %v645 = vsub.f32 %v641, %v644
      %v646 = vmul.f32 %v645, 1.442695
      %v647 = vpow.pop %v646
      %v648 = vsel %vm621, %v647, 0.0
      %649 = vadd.xlane.f32.xlu0 %v648
      %v650 = vpop.xlane.xlu0 %649
      %v651 = vrcp.pop %v650
      %v652 = vmul.f32 %v647, %v651
      %v653 = vpack.c.bf16 %v652, %v652
      %654 = vrot.lane.b32.xlu0 %v617, 64
      %v655 = vpop.permute.xlu0 %654
      %v657 = vsel %vm621, %v653, 0
      %vm659 = vcmask 1043456
      %v661 = vsel %vm659, %v655, 0
      %663 = vmatpush.bf16.msra.mxu0 0
      %664 = vmatpush.bf16.msra.mxu0 0
      %665 = vmatpush.bf16.msra.mxu0 0
      %666 = vmatpush.bf16.msra.mxu0 0
      %667 = vmatpush.bf16.msra.mxu0 0
      %668 = vmatpush.bf16.msra.mxu0 0
      %669 = vmatpush.bf16.msra.mxu0 0
      %670 = vmatpush.bf16.msra.mxu0 %v661
      %671 = vmatmul.bf16.gmra.mxu0 %v657
      %v672 = vpop.f32.mrf.mxu0
      %v673 = vadd.f32 0.0, %v672
      %v674 = vpop.f32.mrf.mxu0
      %675 = vdwg.mxu0
      %677 = vrot.lane.b32.xlu0 %v616, 120
      %v678 = vpop.permute.xlu0 %677
      %679 = vrot.lane.b32.xlu0 %v617, 88
      %v680 = vpop.permute.xlu0 %679
      %v682 = vsel %vm621, %v678, 0
      %v685 = vsel %vm621, %v680, 0
      %687 = vmatpush.bf16.xpose.msra.mxu0 0
      %688 = vmatpush.bf16.xpose.msra.mxu0 0
      %689 = vmatpush.bf16.xpose.msra.mxu0 0
      %690 = vmatpush.bf16.xpose.msra.mxu0 0
      %691 = vmatpush.bf16.xpose.msra.mxu0 0
      %692 = vmatpush.bf16.xpose.msra.mxu0 0
      %693 = vmatpush.bf16.xpose.msra.mxu0 0
      %694 = vmatpush.bf16.xpose.msra.mxu0 %v685
      %695 = vmatmul.bf16.gmra.mxu0 %v682
      %v696 = vpop.f32.mrf.mxu0
      %v697 = vadd.f32 0.0, %v696
      %v698 = vpop.f32.mrf.mxu0
      %699 = vdwg.mxu0
      %v700 = vsel %vm615, %v697, -1000000.0
      %v701 = vsel %vm621, %v700, -inf
      %702 = vmax.xlane.f32.xlu0 %v701
      %v703 = vpop.xlane.xlu0 %702
      %v704 = vsub.f32 %v700, %v703
      %v705 = vmul.f32 %v704, 1.442695
      %v706 = vpow.pop %v705
      %v707 = vsel %vm621, %v706, 0.0
      %708 = vadd.xlane.f32.xlu0 %v707
      %v709 = vpop.xlane.xlu0 %708
      %v710 = vrcp.pop %v709
      %v711 = vmul.f32 %v706, %v710
      %v712 = vpack.c.bf16 %v711, %v711
      %713 = vrot.lane.b32.xlu0 %v617, 56
      %v714 = vpop.permute.xlu0 %713
      %v716 = vsel %vm621, %v712, 0
      %v719 = vsel %vm659, %v714, 0
      %721 = vmatpush.bf16.msra.mxu0 0
      %722 = vmatpush.bf16.msra.mxu0 0
      %723 = vmatpush.bf16.msra.mxu0 0
      %724 = vmatpush.bf16.msra.mxu0 0
      %725 = vmatpush.bf16.msra.mxu0 0
      %726 = vmatpush.bf16.msra.mxu0 0
      %727 = vmatpush.bf16.msra.mxu0 0
      %728 = vmatpush.bf16.msra.mxu0 %v719
      %729 = vmatmul.bf16.gmra.mxu0 %v716
      %v730 = vpop.f32.mrf.mxu0
      %v731 = vadd.f32 0.0, %v730
      %v732 = vpop.f32.mrf.mxu0
      %733 = vdwg.mxu0
      %734 = vrot.lane.b32.xlu0 %v616, 112
      %v735 = vpop.permute.xlu0 %734
      %736 = vrot.lane.b32.xlu0 %v617, 80
      %v737 = vpop.permute.xlu0 %736
      %v739 = vsel %vm621, %v735, 0
      %v742 = vsel %vm621, %v737, 0
      %744 = vmatpush.bf16.xpose.msra.mxu0 0
      %745 = vmatpush.bf16.xpose.msra.mxu0 0
      %746 = vmatpush.bf16.xpose.msra.mxu0 0
      %747 = vmatpush.bf16.xpose.msra.mxu0 0
      %748 = vmatpush.bf16.xpose.msra.mxu0 0
      %749 = vmatpush.bf16.xpose.msra.mxu0 0
      %750 = vmatpush.bf16.xpose.msra.mxu0 0
      %751 = vmatpush.bf16.xpose.msra.mxu0 %v742
      %752 = vmatmul.bf16.gmra.mxu0 %v739
      %v753 = vpop.f32.mrf.mxu0
      %v754 = vadd.f32 0.0, %v753
      %v755 = vpop.f32.mrf.mxu0
      %756 = vdwg.mxu0
      %v757 = vsel %vm615, %v754, -1000000.0
      %v758 = vsel %vm621, %v757, -inf
      %759 = vmax.xlane.f32.xlu0 %v758
      %v760 = vpop.xlane.xlu0 %759
      %v761 = vsub.f32 %v757, %v760
      %v762 = vmul.f32 %v761, 1.442695
      %v763 = vpow.pop %v762
      %v764 = vsel %vm621, %v763, 0.0
      %765 = vadd.xlane.f32.xlu0 %v764
      %v766 = vpop.xlane.xlu0 %765
      %v767 = vrcp.pop %v766
      %v768 = vmul.f32 %v763, %v767
      %v769 = vpack.c.bf16 %v768, %v768
      %770 = vrot.lane.b32.xlu0 %v617, 48
      %v771 = vpop.permute.xlu0 %770
      %v773 = vsel %vm621, %v769, 0
      %v776 = vsel %vm659, %v771, 0
      %778 = vmatpush.bf16.msra.mxu0 0
      %779 = vmatpush.bf16.msra.mxu0 0
      %780 = vmatpush.bf16.msra.mxu0 0
      %781 = vmatpush.bf16.msra.mxu0 0
      %782 = vmatpush.bf16.msra.mxu0 0
      %783 = vmatpush.bf16.msra.mxu0 0
      %784 = vmatpush.bf16.msra.mxu0 0
      %785 = vmatpush.bf16.msra.mxu0 %v776
      %786 = vmatmul.bf16.gmra.mxu0 %v773
      %v787 = vpop.f32.mrf.mxu0
      %v788 = vadd.f32 0.0, %v787
      %v789 = vpop.f32.mrf.mxu0
      %790 = vdwg.mxu0
      %791 = vrot.lane.b32.xlu0 %v616, 104
      %v792 = vpop.permute.xlu0 %791
      %793 = vrot.lane.b32.xlu0 %v617, 72
      %v794 = vpop.permute.xlu0 %793
      %v796 = vsel %vm621, %v792, 0
      %v799 = vsel %vm621, %v794, 0
      %801 = vmatpush.bf16.xpose.msra.mxu0 0
      %802 = vmatpush.bf16.xpose.msra.mxu0 0
      %803 = vmatpush.bf16.xpose.msra.mxu0 0
      %804 = vmatpush.bf16.xpose.msra.mxu0 0
      %805 = vmatpush.bf16.xpose.msra.mxu0 0
      %806 = vmatpush.bf16.xpose.msra.mxu0 0
      %807 = vmatpush.bf16.xpose.msra.mxu0 0
      %808 = vmatpush.bf16.xpose.msra.mxu0 %v799
      %809 = vmatmul.bf16.gmra.mxu0 %v796
      %v810 = vpop.f32.mrf.mxu0
      %v811 = vadd.f32 0.0, %v810
      %v812 = vpop.f32.mrf.mxu0
      %813 = vdwg.mxu0
      %v814 = vsel %vm615, %v811, -1000000.0
      %v815 = vsel %vm621, %v814, -inf
      %816 = vmax.xlane.f32.xlu0 %v815
      %v817 = vpop.xlane.xlu0 %816
      %v818 = vsub.f32 %v814, %v817
      %v819 = vmul.f32 %v818, 1.442695
      %v820 = vpow.pop %v819
      %v821 = vsel %vm621, %v820, 0.0
      %822 = vadd.xlane.f32.xlu0 %v821
      %v823 = vpop.xlane.xlu0 %822
      %v824 = vrcp.pop %v823
      %v825 = vmul.f32 %v820, %v824
      %v826 = vpack.c.bf16 %v825, %v825
      %827 = vrot.lane.b32.xlu0 %v617, 40
      %v828 = vpop.permute.xlu0 %827
      %v830 = vsel %vm621, %v826, 0
      %v833 = vsel %vm659, %v828, 0
      %835 = vmatpush.bf16.msra.mxu0 0
      %836 = vmatpush.bf16.msra.mxu0 0
      %837 = vmatpush.bf16.msra.mxu0 0
      %838 = vmatpush.bf16.msra.mxu0 0
      %839 = vmatpush.bf16.msra.mxu0 0
      %840 = vmatpush.bf16.msra.mxu0 0
      %841 = vmatpush.bf16.msra.mxu0 0
      %842 = vmatpush.bf16.msra.mxu0 %v833
      %843 = vmatmul.bf16.gmra.mxu0 %v830
      %v844 = vpop.f32.mrf.mxu0
      %v845 = vadd.f32 0.0, %v844
      %v846 = vpop.f32.mrf.mxu0
      %847 = vdwg.mxu0
      %849 = vrot.lane.b32.xlu0 %v731, 8
      %v850 = vpop.permute.xlu0 %849
      %853 = vrot.lane.b32.xlu0 %v788, 16
      %v854 = vpop.permute.xlu0 %853
      %857 = vrot.lane.b32.xlu0 %v845, 24
      %v858 = vpop.permute.xlu0 %857
      %v860 = vsel %vm621, %v673, %v850
      %vm861 = vcmask 130048
      %v862 = vsel %vm861, %v860, %v854
      %vm863 = vcmask 195584
      %v864 = vsel %vm863, %v862, %v858
      %v865 = vpack.c.bf16 %v864, %v864
      %v870 = vunpack.c.l.b16 %v611
      %v871 = vunpack.c.l.b16 %v612
      %v872 = vunpack.c.l.b16 %v613
      %v873 = vunpack.c.l.b16 %v614
      %v874 = vpack.c.b16 %v871, %v870
      %v875 = vpack.c.b16 %v873, %v872
      %v879 = vsel %vm589, %v865, 0
      %881 = vmatpush.bf16.msra.mxu0 0
      %882 = vmatpush.bf16.msra.mxu0 0
      %883 = vmatpush.bf16.msra.mxu0 0
      %884 = vmatpush.bf16.msra.mxu0 0
      %885 = vmatpush.bf16.msra.mxu0 0
      %886 = vmatpush.bf16.msra.mxu0 0
      %887 = vmatpush.bf16.msra.mxu0 %v875
      %888 = vmatpush.bf16.msra.mxu0 %v874
      %889 = vmatmul.bf16.gmra.mxu0 %v879
      %v890 = vpop.f32.mrf.mxu0
      %v891 = vadd.f32 0.0, %v890
      %v892 = vpop.f32.mrf.mxu0
      %893 = vdwg.mxu0
      %v894 = vld [vmem:[%s5] sm:$0x1]
      %v895 = vld [vmem:[%s6] sm:$0x1]
      %v896 = vadd.f32 %v572, %v891
      %v897 = vsel %vm589, %v896, 0.0
      %898 = vadd.xlane.f32.xlu0 %v897
      %v899 = vpop.xlane.xlu0 %898
      %v900 = vrcp.pop 32.0
      %v901 = vmul.f32 32.0, %v900
      %v902 = vsub.f32 1.0, %v901
      %v903 = vmul.f32 %v900, %v902
      %v904 = vadd.f32 %v900, %v903
      %vm905 = vweird.f32 %v900
      %v906 = vsel %vm905, %v900, %v904
      %v907 = vmul.f32 %v899, %v906
      %v908 = vsub.f32 %v896, %v907
      %v909 = vmul.f32 %v908, %v908
      %v910 = vsel %vm589, %v909, 0.0
      %911 = vadd.xlane.f32.xlu0 %v910
      %v912 = vpop.xlane.xlu0 %911
      %v913 = vmul.f32 %v912, %v906
      %v914 = vadd.f32 %v913, 1e-05
      %v915 = vrsqrt.pop %v914
      %v916 = vmul.f32 %v915, %v914
      %v917 = vmul.f32 %v916, %v915
      %v918 = vmul.f32 0.5, %v917
      %v919 = vsub.f32 1.5, %v918
      %v920 = vmul.f32 %v915, %v919
      %vm921 = vweird.f32 %v914
      %vm922 = vweird.f32 %v915
      %vm923 = vmor %vm921, %vm922
      %v924 = vsel %vm923, %v915, %v920
      %v925 = vmul.f32 %v908, %v924
      %v927 = vperm.slane %v894, 0
      %v929 = vmul.f32 %v925, %v927
      %v931 = vperm.slane %v895, 0
      %v933 = vadd.f32 %v929, %v931
      %v934 = vpack.c.bf16 %v933, %v933
      %v935 = vld [vmem:[%s7] sm:$0xf]
      %v936 = vld [vmem:[%s7 + $0x4] sm:$0xf]
      %v937 = vld [vmem:[%s7 + $0x8] sm:$0xf]
      %v938 = vld [vmem:[%s7 + $0xc] sm:$0xf]
      %v943 = vunpack.c.l.b16 %v935
      %v944 = vunpack.c.l.b16 %v936
      %v945 = vunpack.c.l.b16 %v937
      %v946 = vunpack.c.l.b16 %v938
      %v947 = vpack.c.b16 %v944, %v943
      %v948 = vpack.c.b16 %v946, %v945
      %v952 = vsel %vm589, %v934, 0
      %954 = vmatpush.bf16.msra.mxu0 0
      %955 = vmatpush.bf16.msra.mxu0 0
      %956 = vmatpush.bf16.msra.mxu0 0
      %957 = vmatpush.bf16.msra.mxu0 0
      %958 = vmatpush.bf16.msra.mxu0 0
      %959 = vmatpush.bf16.msra.mxu0 0
      %960 = vmatpush.bf16.msra.mxu0 %v948
      %961 = vmatpush.bf16.msra.mxu0 %v947
      %962 = vmatmul.bf16.gmra.mxu0 %v952
      %v963 = vpop.f32.mrf.mxu0
      %v964 = vadd.f32 0.0, %v963
      %v965 = vpop.f32.mrf.mxu0
      %966 = vdwg.mxu0
      %v967 = vld [vmem:[%s565] sm:$0xf]
      %v968 = vld [vmem:[%s8] sm:$0xf]
      %v969 = vld [vmem:[%s8 + $0x4] sm:$0xf]
      %v970 = vld [vmem:[%s8 + $0x8] sm:$0xf]
      %v971 = vld [vmem:[%s8 + $0xc] sm:$0xf]
      %v976 = vunpack.c.l.b16 %v968
      %v977 = vunpack.c.l.b16 %v969
      %v978 = vunpack.c.l.b16 %v970
      %v979 = vunpack.c.l.b16 %v971
      %v980 = vpack.c.b16 %v977, %v976
      %v981 = vpack.c.b16 %v979, %v978
      %v985 = vsel %vm589, %v967, 0
      %987 = vmatpush.bf16.msra.mxu0 0
      %988 = vmatpush.bf16.msra.mxu0 0
      %989 = vmatpush.bf16.msra.mxu0 0
      %990 = vmatpush.bf16.msra.mxu0 0
      %991 = vmatpush.bf16.msra.mxu0 0
      %992 = vmatpush.bf16.msra.mxu0 0
      %993 = vmatpush.bf16.msra.mxu0 %v981
      %994 = vmatpush.bf16.msra.mxu0 %v980
      %995 = vmatmul.bf16.gmra.mxu0 %v985
      %v996 = vpop.f32.mrf.mxu0
      %v997 = vadd.f32 0.0, %v996
      %v998 = vpop.f32.mrf.mxu0
      %999 = vdwg.mxu0
      %v1000 = vmul.f32 %v964, 0.35355338
      %v1001 = vld [vmem:[%s9] sm:$0xf]
      %v1002 = vld [vmem:[%s9 + $0x4] sm:$0xf]
      %v1003 = vld [vmem:[%s9 + $0x8] sm:$0xf]
      %v1004 = vld [vmem:[%s9 + $0xc] sm:$0xf]
      %s1005 = sld [smem:[#allocation3 + %s37]]
      %v1006 = vstv %s1005
      %vm1007 = vcmp.lt.s32.totalorder %v609, %v1006
      %v1008 = vpack.c.bf16 %v1000, %v1000
      %v1009 = vpack.c.bf16 %v997, %v997
      %v1011 = vsel %vm621, %v1008, 0
      %v1014 = vsel %vm621, %v1009, 0
      %1016 = vmatpush.bf16.xpose.msra.mxu0 0
      %1017 = vmatpush.bf16.xpose.msra.mxu0 0
      %1018 = vmatpush.bf16.xpose.msra.mxu0 0
      %1019 = vmatpush.bf16.xpose.msra.mxu0 0
      %1020 = vmatpush.bf16.xpose.msra.mxu0 0
      %1021 = vmatpush.bf16.xpose.msra.mxu0 0
      %1022 = vmatpush.bf16.xpose.msra.mxu0 0
      %1023 = vmatpush.bf16.xpose.msra.mxu0 %v1014
      %1024 = vmatmul.bf16.gmra.mxu0 %v1011
      %v1025 = vpop.f32.mrf.mxu0
      %v1026 = vadd.f32 0.0, %v1025
      %v1027 = vpop.f32.mrf.mxu0
      %1028 = vdwg.mxu0
      %v1029 = vsel %vm1007, %v1026, -1000000.0
      %v1030 = vsel %vm621, %v1029, -inf
      %1031 = vmax.xlane.f32.xlu0 %v1030
      %v1032 = vpop.xlane.xlu0 %1031
      %v1033 = vsub.f32 %v1029, %v1032
      %v1034 = vmul.f32 %v1033, 1.442695
      %v1035 = vpow.pop %v1034
      %v1036 = vsel %vm621, %v1035, 0.0
      %1037 = vadd.xlane.f32.xlu0 %v1036
      %v1038 = vpop.xlane.xlu0 %1037
      %v1039 = vrcp.pop %v1038
      %v1040 = vmul.f32 %v1035, %v1039
      %v1041 = vpack.c.bf16 %v1040, %v1040
      %1043 = vrot.lane.b32.xlu0 %v1009, 96
      %v1044 = vpop.permute.xlu0 %1043
      %v1046 = vsel %vm621, %v1041, 0
      %v1049 = vsel %vm659, %v1044, 0
      %1051 = vmatpush.bf16.msra.mxu0 0
      %1052 = vmatpush.bf16.msra.mxu0 0
      %1053 = vmatpush.bf16.msra.mxu0 0
      %1054 = vmatpush.bf16.msra.mxu0 0
      %1055 = vmatpush.bf16.msra.mxu0 0
      %1056 = vmatpush.bf16.msra.mxu0 0
      %1057 = vmatpush.bf16.msra.mxu0 0
      %1058 = vmatpush.bf16.msra.mxu0 %v1049
      %1059 = vmatmul.bf16.gmra.mxu0 %v1046
      %v1060 = vpop.f32.mrf.mxu0
      %v1061 = vadd.f32 0.0, %v1060
      %v1062 = vpop.f32.mrf.mxu0
      %1063 = vdwg.mxu0
      %1065 = vrot.lane.b32.xlu0 %v1008, 120
      %v1066 = vpop.permute.xlu0 %1065
      %1067 = vrot.lane.b32.xlu0 %v1009, 120
      %v1068 = vpop.permute.xlu0 %1067
      %v1070 = vsel %vm621, %v1066, 0
      %v1073 = vsel %vm621, %v1068, 0
      %1075 = vmatpush.bf16.xpose.msra.mxu0 0
      %1076 = vmatpush.bf16.xpose.msra.mxu0 0
      %1077 = vmatpush.bf16.xpose.msra.mxu0 0
      %1078 = vmatpush.bf16.xpose.msra.mxu0 0
      %1079 = vmatpush.bf16.xpose.msra.mxu0 0
      %1080 = vmatpush.bf16.xpose.msra.mxu0 0
      %1081 = vmatpush.bf16.xpose.msra.mxu0 0
      %1082 = vmatpush.bf16.xpose.msra.mxu0 %v1073
      %1083 = vmatmul.bf16.gmra.mxu0 %v1070
      %v1084 = vpop.f32.mrf.mxu0
      %v1085 = vadd.f32 0.0, %v1084
      %v1086 = vpop.f32.mrf.mxu0
      %1087 = vdwg.mxu0
      %v1088 = vsel %vm1007, %v1085, -1000000.0
      %v1089 = vsel %vm621, %v1088, -inf
      %1090 = vmax.xlane.f32.xlu0 %v1089
      %v1091 = vpop.xlane.xlu0 %1090
      %v1092 = vsub.f32 %v1088, %v1091
      %v1093 = vmul.f32 %v1092, 1.442695
      %v1094 = vpow.pop %v1093
      %v1095 = vsel %vm621, %v1094, 0.0
      %1096 = vadd.xlane.f32.xlu0 %v1095
      %v1097 = vpop.xlane.xlu0 %1096
      %v1098 = vrcp.pop %v1097
      %v1099 = vmul.f32 %v1094, %v1098
      %v1100 = vpack.c.bf16 %v1099, %v1099
      %1101 = vrot.lane.b32.xlu0 %v1009, 88
      %v1102 = vpop.permute.xlu0 %1101
      %v1104 = vsel %vm621, %v1100, 0
      %v1107 = vsel %vm659, %v1102, 0
      %1109 = vmatpush.bf16.msra.mxu0 0
      %1110 = vmatpush.bf16.msra.mxu0 0
      %1111 = vmatpush.bf16.msra.mxu0 0
      %1112 = vmatpush.bf16.msra.mxu0 0
      %1113 = vmatpush.bf16.msra.mxu0 0
      %1114 = vmatpush.bf16.msra.mxu0 0
      %1115 = vmatpush.bf16.msra.mxu0 0
      %1116 = vmatpush.bf16.msra.mxu0 %v1107
      %1117 = vmatmul.bf16.gmra.mxu0 %v1104
      %v1118 = vpop.f32.mrf.mxu0
      %v1119 = vadd.f32 0.0, %v1118
      %v1120 = vpop.f32.mrf.mxu0
      %1121 = vdwg.mxu0
      %1122 = vrot.lane.b32.xlu0 %v1008, 112
      %v1123 = vpop.permute.xlu0 %1122
      %1124 = vrot.lane.b32.xlu0 %v1009, 112
      %v1125 = vpop.permute.xlu0 %1124
      %v1127 = vsel %vm621, %v1123, 0
      %v1130 = vsel %vm621, %v1125, 0
      %1132 = vmatpush.bf16.xpose.msra.mxu0 0
      %1133 = vmatpush.bf16.xpose.msra.mxu0 0
      %1134 = vmatpush.bf16.xpose.msra.mxu0 0
      %1135 = vmatpush.bf16.xpose.msra.mxu0 0
      %1136 = vmatpush.bf16.xpose.msra.mxu0 0
      %1137 = vmatpush.bf16.xpose.msra.mxu0 0
      %1138 = vmatpush.bf16.xpose.msra.mxu0 0
      %1139 = vmatpush.bf16.xpose.msra.mxu0 %v1130
      %1140 = vmatmul.bf16.gmra.mxu0 %v1127
      %v1141 = vpop.f32.mrf.mxu0
      %v1142 = vadd.f32 0.0, %v1141
      %v1143 = vpop.f32.mrf.mxu0
      %1144 = vdwg.mxu0
      %v1145 = vsel %vm1007, %v1142, -1000000.0
      %v1146 = vsel %vm621, %v1145, -inf
      %1147 = vmax.xlane.f32.xlu0 %v1146
      %v1148 = vpop.xlane.xlu0 %1147
      %v1149 = vsub.f32 %v1145, %v1148
      %v1150 = vmul.f32 %v1149, 1.442695
      %v1151 = vpow.pop %v1150
      %v1152 = vsel %vm621, %v1151, 0.0
      %1153 = vadd.xlane.f32.xlu0 %v1152
      %v1154 = vpop.xlane.xlu0 %1153
      %v1155 = vrcp.pop %v1154
      %v1156 = vmul.f32 %v1151, %v1155
      %v1157 = vpack.c.bf16 %v1156, %v1156
      %1158 = vrot.lane.b32.xlu0 %v1009, 80
      %v1159 = vpop.permute.xlu0 %1158
      %v1161 = vsel %vm621, %v1157, 0
      %v1164 = vsel %vm659, %v1159, 0
      %1166 = vmatpush.bf16.msra.mxu0 0
      %1167 = vmatpush.bf16.msra.mxu0 0
      %1168 = vmatpush.bf16.msra.mxu0 0
      %1169 = vmatpush.bf16.msra.mxu0 0
      %1170 = vmatpush.bf16.msra.mxu0 0
      %1171 = vmatpush.bf16.msra.mxu0 0
      %1172 = vmatpush.bf16.msra.mxu0 0
      %1173 = vmatpush.bf16.msra.mxu0 %v1164
      %1174 = vmatmul.bf16.gmra.mxu0 %v1161
      %v1175 = vpop.f32.mrf.mxu0
      %v1176 = vadd.f32 0.0, %v1175
      %v1177 = vpop.f32.mrf.mxu0
      %1178 = vdwg.mxu0
      %1179 = vrot.lane.b32.xlu0 %v1008, 104
      %v1180 = vpop.permute.xlu0 %1179
      %1181 = vrot.lane.b32.xlu0 %v1009, 104
      %v1182 = vpop.permute.xlu0 %1181
      %v1184 = vsel %vm621, %v1180, 0
      %v1187 = vsel %vm621, %v1182, 0
      %1189 = vmatpush.bf16.xpose.msra.mxu0 0
      %1190 = vmatpush.bf16.xpose.msra.mxu0 0
      %1191 = vmatpush.bf16.xpose.msra.mxu0 0
      %1192 = vmatpush.bf16.xpose.msra.mxu0 0
      %1193 = vmatpush.bf16.xpose.msra.mxu0 0
      %1194 = vmatpush.bf16.xpose.msra.mxu0 0
      %1195 = vmatpush.bf16.xpose.msra.mxu0 0
      %1196 = vmatpush.bf16.xpose.msra.mxu0 %v1187
      %1197 = vmatmul.bf16.gmra.mxu0 %v1184
      %v1198 = vpop.f32.mrf.mxu0
      %v1199 = vadd.f32 0.0, %v1198
      %v1200 = vpop.f32.mrf.mxu0
      %1201 = vdwg.mxu0
      %v1202 = vsel %vm1007, %v1199, -1000000.0
      %v1203 = vsel %vm621, %v1202, -inf
      %1204 = vmax.xlane.f32.xlu0 %v1203
      %v1205 = vpop.xlane.xlu0 %1204
      %v1206 = vsub.f32 %v1202, %v1205
      %v1207 = vmul.f32 %v1206, 1.442695
      %v1208 = vpow.pop %v1207
      %v1209 = vsel %vm621, %v1208, 0.0
      %1210 = vadd.xlane.f32.xlu0 %v1209
      %v1211 = vpop.xlane.xlu0 %1210
      %v1212 = vrcp.pop %v1211
      %v1213 = vmul.f32 %v1208, %v1212
      %v1214 = vpack.c.bf16 %v1213, %v1213
      %1215 = vrot.lane.b32.xlu0 %v1009, 72
      %v1216 = vpop.permute.xlu0 %1215
      %v1218 = vsel %vm621, %v1214, 0
      %v1221 = vsel %vm659, %v1216, 0
      %1223 = vmatpush.bf16.msra.mxu0 0
      %1224 = vmatpush.bf16.msra.mxu0 0
      %1225 = vmatpush.bf16.msra.mxu0 0
      %1226 = vmatpush.bf16.msra.mxu0 0
      %1227 = vmatpush.bf16.msra.mxu0 0
      %1228 = vmatpush.bf16.msra.mxu0 0
      %1229 = vmatpush.bf16.msra.mxu0 0
      %1230 = vmatpush.bf16.msra.mxu0 %v1221
      %1231 = vmatmul.bf16.gmra.mxu0 %v1218
      %v1232 = vpop.f32.mrf.mxu0
      %v1233 = vadd.f32 0.0, %v1232
      %v1234 = vpop.f32.mrf.mxu0
      %1235 = vdwg.mxu0
      %1237 = vrot.lane.b32.xlu0 %v1119, 8
      %v1238 = vpop.permute.xlu0 %1237
      %1241 = vrot.lane.b32.xlu0 %v1176, 16
      %v1242 = vpop.permute.xlu0 %1241
      %1245 = vrot.lane.b32.xlu0 %v1233, 24
      %v1246 = vpop.permute.xlu0 %1245
      %v1248 = vsel %vm621, %v1061, %v1238
      %v1249 = vsel %vm861, %v1248, %v1242
      %v1250 = vsel %vm863, %v1249, %v1246
      %v1251 = vpack.c.bf16 %v1250, %v1250
      %v1256 = vunpack.c.l.b16 %v1001
      %v1257 = vunpack.c.l.b16 %v1002
      %v1258 = vunpack.c.l.b16 %v1003
      %v1259 = vunpack.c.l.b16 %v1004
      %v1260 = vpack.c.b16 %v1257, %v1256
      %v1261 = vpack.c.b16 %v1259, %v1258
      %v1265 = vsel %vm589, %v1251, 0
      %1267 = vmatpush.bf16.msra.mxu0 0
      %1268 = vmatpush.bf16.msra.mxu0 0
      %1269 = vmatpush.bf16.msra.mxu0 0
      %1270 = vmatpush.bf16.msra.mxu0 0
      %1271 = vmatpush.bf16.msra.mxu0 0
      %1272 = vmatpush.bf16.msra.mxu0 0
      %1273 = vmatpush.bf16.msra.mxu0 %v1261
      %1274 = vmatpush.bf16.msra.mxu0 %v1260
      %1275 = vmatmul.bf16.gmra.mxu0 %v1265
      %v1276 = vpop.f32.mrf.mxu0
      %v1277 = vadd.f32 0.0, %v1276
      %v1278 = vpop.f32.mrf.mxu0
      %1279 = vdwg.mxu0
      %v1280 = vld [vmem:[%s10] sm:$0x1]
      %v1281 = vld [vmem:[%s11] sm:$0x1]
      %v1282 = vadd.f32 %v933, %v1277
      %v1283 = vsel %vm589, %v1282, 0.0
      %1284 = vadd.xlane.f32.xlu0 %v1283
      %v1285 = vpop.xlane.xlu0 %1284
      %v1286 = vmul.f32 %v1285, %v906
      %v1287 = vsub.f32 %v1282, %v1286
      %v1288 = vmul.f32 %v1287, %v1287
      %v1289 = vsel %vm589, %v1288, 0.0
      %1290 = vadd.xlane.f32.xlu0 %v1289
      %v1291 = vpop.xlane.xlu0 %1290
      %v1292 = vmul.f32 %v1291, %v906
      %v1293 = vadd.f32 %v1292, 1e-05
      %v1294 = vrsqrt.pop %v1293
      %v1295 = vmul.f32 %v1294, %v1293
      %v1296 = vmul.f32 %v1295, %v1294
      %v1297 = vmul.f32 0.5, %v1296
      %v1298 = vsub.f32 1.5, %v1297
      %v1299 = vmul.f32 %v1294, %v1298
      %vm1300 = vweird.f32 %v1293
      %vm1301 = vweird.f32 %v1294
      %vm1302 = vmor %vm1300, %vm1301
      %v1303 = vsel %vm1302, %v1294, %v1299
      %v1304 = vmul.f32 %v1287, %v1303
      %v1306 = vperm.slane %v1280, 0
      %v1308 = vmul.f32 %v1304, %v1306
      %v1310 = vperm.slane %v1281, 0
      %v1312 = vadd.f32 %v1308, %v1310
      %v1313 = vpack.c.bf16 %v1312, %v1312
      %v1314 = vld [vmem:[%s12] sm:$0xf]
      %v1315 = vld [vmem:[%s12 + $0x4] sm:$0xf]
      %v1316 = vld [vmem:[%s12 + $0x8] sm:$0xf]
      %v1317 = vld [vmem:[%s12 + $0xc] sm:$0xf]
      %v1318 = vld [vmem:[%s13] sm:$0x1]
      %v1320 = vperm.slane %v1318, 0
      %v1326 = vunpack.c.l.b16 %v1314
      %v1327 = vunpack.c.l.b16 %v1315
      %v1328 = vunpack.c.l.b16 %v1316
      %v1329 = vunpack.c.l.b16 %v1317
      %v1330 = vpack.c.b16 %v1327, %v1326
      %v1331 = vpack.c.b16 %v1329, %v1328
      %v1335 = vsel %vm589, %v1313, 0
      %1337 = vmatpush.bf16.msra.mxu0 0
      %1338 = vmatpush.bf16.msra.mxu0 0
      %1339 = vmatpush.bf16.msra.mxu0 0
      %1340 = vmatpush.bf16.msra.mxu0 0
      %1341 = vmatpush.bf16.msra.mxu0 0
      %1342 = vmatpush.bf16.msra.mxu0 0
      %1343 = vmatpush.bf16.msra.mxu0 %v1331
      %1344 = vmatpush.bf16.msra.mxu0 %v1330
      %1345 = vmatmul.bf16.gmra.mxu0 %v1335
      %v1346 = vpop.f32.mrf.mxu0
      %v1347 = vadd.f32 %v1320, %v1346
      %v1348 = vpop.f32.mrf.mxu0
      %1349 = vdwg.mxu0
      %v1350 = vmax.f32 %v1347, 0.0
      %v1351 = vpack.c.bf16 %v1350, %v1350
      %v1352 = vld [vmem:[%s14] sm:$0xf]
      %v1353 = vld [vmem:[%s14 + $0x4] sm:$0xf]
      %v1354 = vld [vmem:[%s14 + $0x8] sm:$0xf]
      %v1355 = vld [vmem:[%s14 + $0xc] sm:$0xf]
      %v1356 = vld [vmem:[%s14 + $0x10] sm:$0xf]
      %v1357 = vld [vmem:[%s14 + $0x14] sm:$0xf]
      %v1358 = vld [vmem:[%s14 + $0x18] sm:$0xf]
      %v1359 = vld [vmem:[%s14 + $0x1c] sm:$0xf]
      %v1360 = vld [vmem:[%s15] sm:$0x1]
      %v1362 = vperm.slane %v1360, 0
      %v1372 = vunpack.c.l.b16 %v1352
      %v1373 = vunpack.c.l.b16 %v1353
      %v1374 = vunpack.c.l.b16 %v1354
      %v1375 = vunpack.c.l.b16 %v1355
      %v1376 = vunpack.c.l.b16 %v1356
      %v1377 = vunpack.c.l.b16 %v1357
      %v1378 = vunpack.c.l.b16 %v1358
      %v1379 = vunpack.c.l.b16 %v1359
      %v1380 = vpack.c.b16 %v1373, %v1372
      %v1381 = vpack.c.b16 %v1375, %v1374
      %v1382 = vpack.c.b16 %v1377, %v1376
      %v1383 = vpack.c.b16 %v1379, %v1378
      %vm1388 = vcmask 523264
      %v1390 = vsel %vm1388, %v1351, 0
      %1392 = vmatpush.bf16.msra.mxu0 0
      %1393 = vmatpush.bf16.msra.mxu0 0
      %1394 = vmatpush.bf16.msra.mxu0 0
      %1395 = vmatpush.bf16.msra.mxu0 0
      %1396 = vmatpush.bf16.msra.mxu0 %v1383
      %1397 = vmatpush.bf16.msra.mxu0 %v1382
      %1398 = vmatpush.bf16.msra.mxu0 %v1381
      %1399 = vmatpush.bf16.msra.mxu0 %v1380
      %1400 = vmatmul.bf16.gmra.mxu0 %v1390
      %v1401 = vpop.f32.mrf.mxu0
      %v1402 = vadd.f32 %v1362, %v1401
      %v1403 = vpop.f32.mrf.mxu0
      %1404 = vdwg.mxu0
      %v1405 = vld [vmem:[%s16] sm:$0x1]
      %v1406 = vld [vmem:[%s17] sm:$0x1]
      %v1407 = vadd.f32 %v1312, %v1402
      %v1408 = vsel %vm589, %v1407, 0.0
      %1409 = vadd.xlane.f32.xlu0 %v1408
      %v1410 = vpop.xlane.xlu0 %1409
      %v1411 = vmul.f32 %v1410, %v906
      %v1412 = vsub.f32 %v1407, %v1411
      %v1413 = vmul.f32 %v1412, %v1412
      %v1414 = vsel %vm589, %v1413, 0.0
      %1415 = vadd.xlane.f32.xlu0 %v1414
      %v1416 = vpop.xlane.xlu0 %1415
      %v1417 = vmul.f32 %v1416, %v906
      %v1418 = vadd.f32 %v1417, 1e-05
      %v1419 = vrsqrt.pop %v1418
      %v1420 = vmul.f32 %v1419, %v1418
      %v1421 = vmul.f32 %v1420, %v1419
      %v1422 = vmul.f32 0.5, %v1421
      %v1423 = vsub.f32 1.5, %v1422
      %v1424 = vmul.f32 %v1419, %v1423
      %vm1425 = vweird.f32 %v1418
      %vm1426 = vweird.f32 %v1419
      %vm1427 = vmor %vm1425, %vm1426
      %v1428 = vsel %vm1427, %v1419, %v1424
      %v1429 = vmul.f32 %v1412, %v1428
      %v1431 = vperm.slane %v1405, 0
      %v1433 = vmul.f32 %v1429, %v1431
      %v1435 = vperm.slane %v1406, 0
      %v1437 = vadd.f32 %v1433, %v1435
      %v1438 = vpack.c.bf16 %v1437, %v1437
      %vm1439 = vcmask 257024
      %1440 = vst.msk [vmem:[%s569] sm:$0xf] %vm1439, %v1438
      %p1441 = scmp.lt.s32.totalorder %s37, 1
      %s1442 = scalar_select %p1441, %s37, 1
      %s1443 = smul.addr %s1442, 4
      %s1444 = scalar_lea.vmem %s18, %s1443
      // Predicated region
      $region89: #{decoder_forward.4} parent=87 // pred_check
        %p1445 = pneg %p422
      $region90: #{decoder_forward.4} parent=87 // pred_check_branch
        %1447 = sbr.rel (%p1445) target = $region92
      $region91: #{decoder_forward.4} parent=87 // pred_region
        _
      $region92: #{decoder_forward.4} parent=87 // pred_fallthru
        _
    $region88: #{decoder_forward.4} parent=5 // pred_fallthru
      _
    %p1448 = scmp.le.s32.totalorder 2, %s32
    // Predicated region
    $region93: #{decoder_forward.4} parent=5 // pred_check
      %p1449 = pneg %p1448
    $region94: #{decoder_forward.4} parent=5 // pred_check_branch
      %1451 = sbr.rel (%p1449) target = $region96
    $region95: #{decoder_forward.4} parent=5 // pred_region
      %s1452 = ssub.s32 %s32, 2
      // Predicated region
      $region97: #{decoder_forward.4} parent=95 // pred_check
        %p1453 = pneg %p428
      $region98: #{decoder_forward.4} parent=95 // pred_check_branch
        %1455 = sbr.rel (%p1453) target = $region100
      $region99: #{decoder_forward.4} parent=95 // pred_region
        %p1456 = scmp.lt.s32.totalorder %s38, 1
        %s1457 = scalar_select %p1456, %s38, 1
        %s1458 = smul.addr %s1457, 4
        %s1459 = scalar_lea.vmem %s18, %s1458
      $region100: #{decoder_forward.4} parent=95 // pred_fallthru
        _
    $region96: #{decoder_forward.4} parent=5 // pred_fallthru
      _
  $region6: #{decoder_forward.4} parent=0 // loop_footer
    %s36 = sadd.s32 1, %s32
  $region7: #{decoder_forward.4} parent=0 // loop_footer_branch
    %31 = sbr.rel target = $region3
  $region8: #{decoder_forward.4} parent=0 // loop_exit
    _

// kernel: decoder_forward.3
$region0: #{decoder_forward.3}
  #allocation0 [shape = 'u32[]', space=smem, size = 0x4, offset = 0x4, fixed_abs, tag = 'smem constant byte address 0x4 - core index']
  #allocation1 [shape = 'u32[72,128]{1,0:T(1,128)}', space=vmem, size = 0x9000, scoped, tag = 'internal scratch']
  #allocation2 [shape = 's32[1]{0}', space=sflag, size = 0x4, scoped, tag = 'scoped memory for decoder_forward.3']
  #allocation3 [shape = 'u8[512]{0}', space=smem, size = 0x200, scoped, tag = 'prefetched SMEM operand 0']
  %s0 = inlined_call_operand.vmem [shape: s32[2], index: 0, kind: input, shape index: {}]
  %s1 = inlined_call_operand.vmem [shape: bf16[2,8,32], index: 1, kind: input, shape index: {}]
  %s2 = inlined_call_operand.vmem [shape: bf16[2,8,32], index: 2, kind: input, shape index: {}]
  %s3 = inlined_call_operand.vmem [shape: f32[8,32], index: 3, kind: input, shape index: {}]
  %s4 = inlined_call_operand.vmem [shape: bf16[32,96], index: 4, kind: input, shape index: {}]
  %s5 = inlined_call_operand.vmem [shape: bf16[32,32], index: 5, kind: input, shape index: {}]
  %s6 = inlined_call_operand.vmem [shape: f32[1,32], index: 6, kind: input, shape index: {}]
  %s7 = inlined_call_operand.vmem [shape: f32[1,32], index: 7, kind: input, shape index: {}]
  %s8 = inlined_call_operand.vmem [shape: bf16[32,32], index: 8, kind: input, shape index: {}]
  %s9 = inlined_call_operand.vmem [shape: bf16[32,64], index: 9, kind: input, shape index: {}]
  %s10 = inlined_call_operand.vmem [shape: bf16[32,32], index: 10, kind: input, shape index: {}]
  %s11 = inlined_call_operand.vmem [shape: f32[1,32], index: 11, kind: input, shape index: {}]
  %s12 = inlined_call_operand.vmem [shape: f32[1,32], index: 12, kind: input, shape index: {}]
  %s13 = inlined_call_operand.vmem [shape: bf16[32,64], index: 13, kind: input, shape index: {}]
  %s14 = inlined_call_operand.vmem [shape: f32[1,64], index: 14, kind: input, shape index: {}]
  %s15 = inlined_call_operand.vmem [shape: bf16[64,32], index: 15, kind: input, shape index: {}]
  %s16 = inlined_call_operand.vmem [shape: f32[1,32], index: 16, kind: input, shape index: {}]
  %s17 = inlined_call_operand.vmem [shape: f32[1,32], index: 17, kind: input, shape index: {}]
  %s18 = inlined_call_operand.vmem [shape: f32[1,32], index: 18, kind: input, shape index: {}]
  %s19 = inlined_call_operand.vmem [shape: bf16[2,8,32], index: 19, kind: output, shape index: {0}]
  %s20 = inlined_call_operand.hbm [shape: bf16[2,8,32], index: 20, kind: output, shape index: {1}]
  %21 = xla_tuple %s19, %s20
  %s22 = sld [smem:[#allocation0]]
  $region113: #{decoder_forward.3} parent=0
    _
  %s24 = ssub.s32 1, %s22
  %s25 = scalar_select 0, %s24, %s22
  %s27 = sshll.u32 %s0, 4
  %s28 = int_to_ptr.vmem [resolvable:$true] %s27
  %30 = dma.vmem_to_smem %s28, 16, [#allocation3], [#allocation2]
  %32 = dma.done [#allocation2], 16
  %33 = sfence
  $region1: #{decoder_forward.3} parent=0
    #allocation4 [shape = 'u8[4096]{0}', space=vmem, size = 0x1000, scoped, tag = 'output window, operand 1']
    #allocation5 [shape = 's32[2]{0}', space=sflag, size = 0x8, scoped, tag = 'scoped memory for decoder_forward.3']
    %34 = vsyncpa [#allocation5], 0
    %s35 = scalar_lea.sflag [#allocation5], 1
    %36 = vsyncpa %s35, 0
    loop: start=0, step=1, limit=4
    $region2: #{decoder_forward.3} parent=1 // loop_pre_header
      _
    $region3: #{decoder_forward.3} parent=1 // loop_header
      %s38 = sphi 0, %s42
      %p39 = scmp.ge.s32.totalorder %s38, 4
      %s48 = sphi 0, %s50
      %s51 = sphi 0, %s48
      %s52 = sphi 0, %s51
      %s68 = sphi 0, %s52
      %s74 = sphi 0, %s76
      %s77 = sphi 0, %s74
      %s78 = sphi 0, %s77
      %s94 = sphi 0, %s78
      %s98 = sphi 0, %s98
      %s100 = sphi 0, %s98
      %s101 = sphi 0, %s100
      %s115 = sphi 0, %s101
      %s119 = sphi 0, %s119
      %s121 = sphi 0, %s119
      %s122 = sphi 0, %s121
      %s136 = sphi 0, %s122
      %s140 = sphi 0, %s140
      %s142 = sphi 0, %s140
      %s143 = sphi 0, %s142
      %s157 = sphi 0, %s143
      %s161 = sphi 0, %s161
      %s163 = sphi 0, %s161
      %s164 = sphi 0, %s163
      %s178 = sphi 0, %s164
      %s182 = sphi 0, %s182
      %s184 = sphi 0, %s182
      %s185 = sphi 0, %s184
      %s199 = sphi 0, %s185
      %s203 = sphi 0, %s203
      %s205 = sphi 0, %s203
      %s206 = sphi 0, %s205
      %s220 = sphi 0, %s206
      %s224 = sphi 0, %s224
      %s226 = sphi 0, %s224
      %s227 = sphi 0, %s226
      %s241 = sphi 0, %s227
      %s245 = sphi 0, %s245
      %s247 = sphi 0, %s245
      %s248 = sphi 0, %s247
      %s262 = sphi 0, %s248
      %s266 = sphi 0, %s266
      %s268 = sphi 0, %s266
      %s269 = sphi 0, %s268
      %s283 = sphi 0, %s269
      %s287 = sphi 0, %s287
      %s289 = sphi 0, %s287
      %s290 = sphi 0, %s289
      %s304 = sphi 0, %s290
      %s308 = sphi 0, %s308
      %s310 = sphi 0, %s308
      %s311 = sphi 0, %s310
      %s325 = sphi 0, %s311
      %s329 = sphi 0, %s329
      %s331 = sphi 0, %s329
      %s332 = sphi 0, %s331
      %s346 = sphi 0, %s332
      %s350 = sphi 0, %s350
      %s352 = sphi 0, %s350
      %s353 = sphi 0, %s352
      %s367 = sphi 0, %s353
      %s371 = sphi 0, %s371
      %s373 = sphi 0, %s371
      %s374 = sphi 0, %s373
      %s388 = sphi 0, %s374
      %s392 = sphi 0, %s392
      %s394 = sphi 0, %s392
      %s395 = sphi 0, %s394
      %s409 = sphi 0, %s395
      %s413 = sphi 0, %s413
      %s415 = sphi 0, %s413
      %s416 = sphi 0, %s415
      %s430 = sphi 0, %s416
      %s436 = sphi 0, %s438
      %s439 = sphi 0, %s436
      %s440 = sphi 0, %s439
      %s456 = sphi 0, %s440
      %s462 = sphi 0, %s464
      %s465 = sphi 0, %s462
      %s466 = sphi 0, %s465
      %s482 = sphi 0, %s466
    $region4: #{decoder_forward.3} parent=1 // loop_header_branch
      %41 = sbr.rel (%p39) target = $region8
    $region5: #{decoder_forward.3} parent=1 // loop_body
      %s43 = ssub.s32 %s38, 1
      %s44 = ssub.s32 %s38, 2
      %s45 = sadd.s32 %s38, 1
      %s46 = ssub.s32 %s38, %s45
      %p47 = scmp.eq.s32.totalorder %s46, 0
      %s49 = sadd.s32 %s48, 1
      %s50 = scalar_select %p47, %s48, %s49
      %p53 = pneg %p47
      %p54 = scmp.eq.s32.totalorder %s38, 1
      %p55 = por %p53, %p54
      %p56 = scmp.ne.s32.totalorder %s48, %s51
      %p57 = scmp.eq.s32.totalorder %s38, 0
      %p58 = por %p56, %p57
      %p59 = scmp.ne.s32.totalorder %s48, %s51
      %p60 = scmp.eq.s32.totalorder %s43, 1
      %p61 = por %p59, %p60
      %p62 = scmp.ne.s32.totalorder %s51, %s52
      %p63 = scmp.eq.s32.totalorder %s43, 0
      %p64 = por %p62, %p63
      %p65 = scmp.ne.s32.totalorder %s51, %s52
      %p66 = scmp.eq.s32.totalorder %s44, 1
      %p67 = por %p65, %p66
      %p69 = scmp.ne.s32.totalorder %s52, %s68
      %p70 = scmp.eq.s32.totalorder %s44, 0
      %p71 = por %p69, %p70
      %s72 = ssub.s32 %s38, %s45
      %p73 = scmp.eq.s32.totalorder %s72, 0
      %s75 = sadd.s32 %s74, 1
      %s76 = scalar_select %p73, %s74, %s75
      %p79 = pneg %p73
      %p80 = scmp.eq.s32.totalorder %s38, 1
      %p81 = por %p79, %p80
      %p82 = scmp.ne.s32.totalorder %s74, %s77
      %p83 = scmp.eq.s32.totalorder %s38, 0
      %p84 = por %p82, %p83
      %p85 = scmp.ne.s32.totalorder %s74, %s77
      %p86 = scmp.eq.s32.totalorder %s43, 1
      %p87 = por %p85, %p86
      %p88 = scmp.ne.s32.totalorder %s77, %s78
      %p89 = scmp.eq.s32.totalorder %s43, 0
      %p90 = por %p88, %p89
      %p91 = scmp.ne.s32.totalorder %s77, %s78
      %p92 = scmp.eq.s32.totalorder %s44, 1
      %p93 = por %p91, %p92
      %p95 = scmp.ne.s32.totalorder %s78, %s94
      %p96 = scmp.eq.s32.totalorder %s44, 0
      %p97 = por %p95, %p96
      %s99 = sadd.s32 %s98, 1
      %p102 = scmp.eq.s32.totalorder %s38, 1
      %p103 = scmp.ne.s32.totalorder %s98, %s100
      %p104 = scmp.eq.s32.totalorder %s38, 0
      %p105 = por %p103, %p104
      %p106 = scmp.ne.s32.totalorder %s98, %s100
      %p107 = scmp.eq.s32.totalorder %s43, 1
      %p108 = por %p106, %p107
      %p109 = scmp.ne.s32.totalorder %s100, %s101
      %p110 = scmp.eq.s32.totalorder %s43, 0
      %p111 = por %p109, %p110
      %p112 = scmp.ne.s32.totalorder %s100, %s101
      %p113 = scmp.eq.s32.totalorder %s44, 1
      %p114 = por %p112, %p113
      %p116 = scmp.ne.s32.totalorder %s101, %s115
      %p117 = scmp.eq.s32.totalorder %s44, 0
      %p118 = por %p116, %p117
      %s120 = sadd.s32 %s119, 1
      %p123 = scmp.eq.s32.totalorder %s38, 1
      %p124 = scmp.ne.s32.totalorder %s119, %s121
      %p125 = scmp.eq.s32.totalorder %s38, 0
      %p126 = por %p124, %p125
      %p127 = scmp.ne.s32.totalorder %s119, %s121
      %p128 = scmp.eq.s32.totalorder %s43, 1
      %p129 = por %p127, %p128
      %p130 = scmp.ne.s32.totalorder %s121, %s122
      %p131 = scmp.eq.s32.totalorder %s43, 0
      %p132 = por %p130, %p131
      %p133 = scmp.ne.s32.totalorder %s121, %s122
      %p134 = scmp.eq.s32.totalorder %s44, 1
      %p135 = por %p133, %p134
      %p137 = scmp.ne.s32.totalorder %s122, %s136
      %p138 = scmp.eq.s32.totalorder %s44, 0
      %p139 = por %p137, %p138
      %s141 = sadd.s32 %s140, 1
      %p144 = scmp.eq.s32.totalorder %s38, 1
      %p145 = scmp.ne.s32.totalorder %s140, %s142
      %p146 = scmp.eq.s32.totalorder %s38, 0
      %p147 = por %p145, %p146
      %p148 = scmp.ne.s32.totalorder %s140, %s142
      %p149 = scmp.eq.s32.totalorder %s43, 1
      %p150 = por %p148, %p149
      %p151 = scmp.ne.s32.totalorder %s142, %s143
      %p152 = scmp.eq.s32.totalorder %s43, 0
      %p153 = por %p151, %p152
      %p154 = scmp.ne.s32.totalorder %s142, %s143
      %p155 = scmp.eq.s32.totalorder %s44, 1
      %p156 = por %p154, %p155
      %p158 = scmp.ne.s32.totalorder %s143, %s157
      %p159 = scmp.eq.s32.totalorder %s44, 0
      %p160 = por %p158, %p159
      %s162 = sadd.s32 %s161, 1
      %p165 = scmp.eq.s32.totalorder %s38, 1
      %p166 = scmp.ne.s32.totalorder %s161, %s163
      %p167 = scmp.eq.s32.totalorder %s38, 0
      %p168 = por %p166, %p167
      %p169 = scmp.ne.s32.totalorder %s161, %s163
      %p170 = scmp.eq.s32.totalorder %s43, 1
      %p171 = por %p169, %p170
      %p172 = scmp.ne.s32.totalorder %s163, %s164
      %p173 = scmp.eq.s32.totalorder %s43, 0
      %p174 = por %p172, %p173
      %p175 = scmp.ne.s32.totalorder %s163, %s164
      %p176 = scmp.eq.s32.totalorder %s44, 1
      %p177 = por %p175, %p176
      %p179 = scmp.ne.s32.totalorder %s164, %s178
      %p180 = scmp.eq.s32.totalorder %s44, 0
      %p181 = por %p179, %p180
      %s183 = sadd.s32 %s182, 1
      %p186 = scmp.eq.s32.totalorder %s38, 1
      %p187 = scmp.ne.s32.totalorder %s182, %s184
      %p188 = scmp.eq.s32.totalorder %s38, 0
      %p189 = por %p187, %p188
      %p190 = scmp.ne.s32.totalorder %s182, %s184
      %p191 = scmp.eq.s32.totalorder %s43, 1
      %p192 = por %p190, %p191
      %p193 = scmp.ne.s32.totalorder %s184, %s185
      %p194 = scmp.eq.s32.totalorder %s43, 0
      %p195 = por %p193, %p194
      %p196 = scmp.ne.s32.totalorder %s184, %s185
      %p197 = scmp.eq.s32.totalorder %s44, 1
      %p198 = por %p196, %p197
      %p200 = scmp.ne.s32.totalorder %s185, %s199
      %p201 = scmp.eq.s32.totalorder %s44, 0
      %p202 = por %p200, %p201
      %s204 = sadd.s32 %s203, 1
      %p207 = scmp.eq.s32.totalorder %s38, 1
      %p208 = scmp.ne.s32.totalorder %s203, %s205
      %p209 = scmp.eq.s32.totalorder %s38, 0
      %p210 = por %p208, %p209
      %p211 = scmp.ne.s32.totalorder %s203, %s205
      %p212 = scmp.eq.s32.totalorder %s43, 1
      %p213 = por %p211, %p212
      %p214 = scmp.ne.s32.totalorder %s205, %s206
      %p215 = scmp.eq.s32.totalorder %s43, 0
      %p216 = por %p214, %p215
      %p217 = scmp.ne.s32.totalorder %s205, %s206
      %p218 = scmp.eq.s32.totalorder %s44, 1
      %p219 = por %p217, %p218
      %p221 = scmp.ne.s32.totalorder %s206, %s220
      %p222 = scmp.eq.s32.totalorder %s44, 0
      %p223 = por %p221, %p222
      %s225 = sadd.s32 %s224, 1
      %p228 = scmp.eq.s32.totalorder %s38, 1
      %p229 = scmp.ne.s32.totalorder %s224, %s226
      %p230 = scmp.eq.s32.totalorder %s38, 0
      %p231 = por %p229, %p230
      %p232 = scmp.ne.s32.totalorder %s224, %s226
      %p233 = scmp.eq.s32.totalorder %s43, 1
      %p234 = por %p232, %p233
      %p235 = scmp.ne.s32.totalorder %s226, %s227
      %p236 = scmp.eq.s32.totalorder %s43, 0
      %p237 = por %p235, %p236
      %p238 = scmp.ne.s32.totalorder %s226, %s227
      %p239 = scmp.eq.s32.totalorder %s44, 1
      %p240 = por %p238, %p239
      %p242 = scmp.ne.s32.totalorder %s227, %s241
      %p243 = scmp.eq.s32.totalorder %s44, 0
      %p244 = por %p242, %p243
      %s246 = sadd.s32 %s245, 1
      %p249 = scmp.eq.s32.totalorder %s38, 1
      %p250 = scmp.ne.s32.totalorder %s245, %s247
      %p251 = scmp.eq.s32.totalorder %s38, 0
      %p252 = por %p250, %p251
      %p253 = scmp.ne.s32.totalorder %s245, %s247
      %p254 = scmp.eq.s32.totalorder %s43, 1
      %p255 = por %p253, %p254
      %p256 = scmp.ne.s32.totalorder %s247, %s248
      %p257 = scmp.eq.s32.totalorder %s43, 0
      %p258 = por %p256, %p257
      %p259 = scmp.ne.s32.totalorder %s247, %s248
      %p260 = scmp.eq.s32.totalorder %s44, 1
      %p261 = por %p259, %p260
      %p263 = scmp.ne.s32.totalorder %s248, %s262
      %p264 = scmp.eq.s32.totalorder %s44, 0
      %p265 = por %p263, %p264
      %s267 = sadd.s32 %s266, 1
      %p270 = scmp.eq.s32.totalorder %s38, 1
      %p271 = scmp.ne.s32.totalorder %s266, %s268
      %p272 = scmp.eq.s32.totalorder %s38, 0
      %p273 = por %p271, %p272
      %p274 = scmp.ne.s32.totalorder %s266, %s268
      %p275 = scmp.eq.s32.totalorder %s43, 1
      %p276 = por %p274, %p275
      %p277 = scmp.ne.s32.totalorder %s268, %s269
      %p278 = scmp.eq.s32.totalorder %s43, 0
      %p279 = por %p277, %p278
      %p280 = scmp.ne.s32.totalorder %s268, %s269
      %p281 = scmp.eq.s32.totalorder %s44, 1
      %p282 = por %p280, %p281
      %p284 = scmp.ne.s32.totalorder %s269, %s283
      %p285 = scmp.eq.s32.totalorder %s44, 0
      %p286 = por %p284, %p285
      %s288 = sadd.s32 %s287, 1
      %p291 = scmp.eq.s32.totalorder %s38, 1
      %p292 = scmp.ne.s32.totalorder %s287, %s289
      %p293 = scmp.eq.s32.totalorder %s38, 0
      %p294 = por %p292, %p293
      %p295 = scmp.ne.s32.totalorder %s287, %s289
      %p296 = scmp.eq.s32.totalorder %s43, 1
      %p297 = por %p295, %p296
      %p298 = scmp.ne.s32.totalorder %s289, %s290
      %p299 = scmp.eq.s32.totalorder %s43, 0
      %p300 = por %p298, %p299
      %p301 = scmp.ne.s32.totalorder %s289, %s290
      %p302 = scmp.eq.s32.totalorder %s44, 1
      %p303 = por %p301, %p302
      %p305 = scmp.ne.s32.totalorder %s290, %s304
      %p306 = scmp.eq.s32.totalorder %s44, 0
      %p307 = por %p305, %p306
      %s309 = sadd.s32 %s308, 1
      %p312 = scmp.eq.s32.totalorder %s38, 1
      %p313 = scmp.ne.s32.totalorder %s308, %s310
      %p314 = scmp.eq.s32.totalorder %s38, 0
      %p315 = por %p313, %p314
      %p316 = scmp.ne.s32.totalorder %s308, %s310
      %p317 = scmp.eq.s32.totalorder %s43, 1
      %p318 = por %p316, %p317
      %p319 = scmp.ne.s32.totalorder %s310, %s311
      %p320 = scmp.eq.s32.totalorder %s43, 0
      %p321 = por %p319, %p320
      %p322 = scmp.ne.s32.totalorder %s310, %s311
      %p323 = scmp.eq.s32.totalorder %s44, 1
      %p324 = por %p322, %p323
      %p326 = scmp.ne.s32.totalorder %s311, %s325
      %p327 = scmp.eq.s32.totalorder %s44, 0
      %p328 = por %p326, %p327
      %s330 = sadd.s32 %s329, 1
      %p333 = scmp.eq.s32.totalorder %s38, 1
      %p334 = scmp.ne.s32.totalorder %s329, %s331
      %p335 = scmp.eq.s32.totalorder %s38, 0
      %p336 = por %p334, %p335
      %p337 = scmp.ne.s32.totalorder %s329, %s331
      %p338 = scmp.eq.s32.totalorder %s43, 1
      %p339 = por %p337, %p338
      %p340 = scmp.ne.s32.totalorder %s331, %s332
      %p341 = scmp.eq.s32.totalorder %s43, 0
      %p342 = por %p340, %p341
      %p343 = scmp.ne.s32.totalorder %s331, %s332
      %p344 = scmp.eq.s32.totalorder %s44, 1
      %p345 = por %p343, %p344
      %p347 = scmp.ne.s32.totalorder %s332, %s346
      %p348 = scmp.eq.s32.totalorder %s44, 0
      %p349 = por %p347, %p348
      %s351 = sadd.s32 %s350, 1
      %p354 = scmp.eq.s32.totalorder %s38, 1
      %p355 = scmp.ne.s32.totalorder %s350, %s352
      %p356 = scmp.eq.s32.totalorder %s38, 0
      %p357 = por %p355, %p356
      %p358 = scmp.ne.s32.totalorder %s350, %s352
      %p359 = scmp.eq.s32.totalorder %s43, 1
      %p360 = por %p358, %p359
      %p361 = scmp.ne.s32.totalorder %s352, %s353
      %p362 = scmp.eq.s32.totalorder %s43, 0
      %p363 = por %p361, %p362
      %p364 = scmp.ne.s32.totalorder %s352, %s353
      %p365 = scmp.eq.s32.totalorder %s44, 1
      %p366 = por %p364, %p365
      %p368 = scmp.ne.s32.totalorder %s353, %s367
      %p369 = scmp.eq.s32.totalorder %s44, 0
      %p370 = por %p368, %p369
      %s372 = sadd.s32 %s371, 1
      %p375 = scmp.eq.s32.totalorder %s38, 1
      %p376 = scmp.ne.s32.totalorder %s371, %s373
      %p377 = scmp.eq.s32.totalorder %s38, 0
      %p378 = por %p376, %p377
      %p379 = scmp.ne.s32.totalorder %s371, %s373
      %p380 = scmp.eq.s32.totalorder %s43, 1
      %p381 = por %p379, %p380
      %p382 = scmp.ne.s32.totalorder %s373, %s374
      %p383 = scmp.eq.s32.totalorder %s43, 0
      %p384 = por %p382, %p383
      %p385 = scmp.ne.s32.totalorder %s373, %s374
      %p386 = scmp.eq.s32.totalorder %s44, 1
      %p387 = por %p385, %p386
      %p389 = scmp.ne.s32.totalorder %s374, %s388
      %p390 = scmp.eq.s32.totalorder %s44, 0
      %p391 = por %p389, %p390
      %s393 = sadd.s32 %s392, 1
      %p396 = scmp.eq.s32.totalorder %s38, 1
      %p397 = scmp.ne.s32.totalorder %s392, %s394
      %p398 = scmp.eq.s32.totalorder %s38, 0
      %p399 = por %p397, %p398
      %p400 = scmp.ne.s32.totalorder %s392, %s394
      %p401 = scmp.eq.s32.totalorder %s43, 1
      %p402 = por %p400, %p401
      %p403 = scmp.ne.s32.totalorder %s394, %s395
      %p404 = scmp.eq.s32.totalorder %s43, 0
      %p405 = por %p403, %p404
      %p406 = scmp.ne.s32.totalorder %s394, %s395
      %p407 = scmp.eq.s32.totalorder %s44, 1
      %p408 = por %p406, %p407
      %p410 = scmp.ne.s32.totalorder %s395, %s409
      %p411 = scmp.eq.s32.totalorder %s44, 0
      %p412 = por %p410, %p411
      %s414 = sadd.s32 %s413, 1
      %p417 = scmp.eq.s32.totalorder %s38, 1
      %p418 = scmp.ne.s32.totalorder %s413, %s415
      %p419 = scmp.eq.s32.totalorder %s38, 0
      %p420 = por %p418, %p419
      %p421 = scmp.ne.s32.totalorder %s413, %s415
      %p422 = scmp.eq.s32.totalorder %s43, 1
      %p423 = por %p421, %p422
      %p424 = scmp.ne.s32.totalorder %s415, %s416
      %p425 = scmp.eq.s32.totalorder %s43, 0
      %p426 = por %p424, %p425
      %p427 = scmp.ne.s32.totalorder %s415, %s416
      %p428 = scmp.eq.s32.totalorder %s44, 1
      %p429 = por %p427, %p428
      %p431 = scmp.ne.s32.totalorder %s416, %s430
      %p432 = scmp.eq.s32.totalorder %s44, 0
      %p433 = por %p431, %p432
      %s434 = ssub.s32 %s38, %s45
      %p435 = scmp.eq.s32.totalorder %s434, 0
      %s437 = sadd.s32 %s436, 1
      %s438 = scalar_select %p435, %s436, %s437
      %p441 = pneg %p435
      %p442 = scmp.eq.s32.totalorder %s38, 1
      %p443 = por %p441, %p442
      %p444 = scmp.ne.s32.totalorder %s436, %s439
      %p445 = scmp.eq.s32.totalorder %s38, 0
      %p446 = por %p444, %p445
      %p447 = scmp.ne.s32.totalorder %s436, %s439
      %p448 = scmp.eq.s32.totalorder %s43, 1
      %p449 = por %p447, %p448
      %p450 = scmp.ne.s32.totalorder %s439, %s440
      %p451 = scmp.eq.s32.totalorder %s43, 0
      %p452 = por %p450, %p451
      %p453 = scmp.ne.s32.totalorder %s439, %s440
      %p454 = scmp.eq.s32.totalorder %s44, 1
      %p455 = por %p453, %p454
      %p457 = scmp.ne.s32.totalorder %s440, %s456
      %p458 = scmp.eq.s32.totalorder %s44, 0
      %p459 = por %p457, %p458
      %s460 = ssub.s32 %s38, %s45
      %p461 = scmp.eq.s32.totalorder %s460, 0
      %s463 = sadd.s32 %s462, 1
      %s464 = scalar_select %p461, %s462, %s463
      %p467 = pneg %p461
      %p468 = scmp.eq.s32.totalorder %s38, 1
      %p469 = por %p467, %p468
      %p470 = scmp.ne.s32.totalorder %s462, %s465
      %p471 = scmp.eq.s32.totalorder %s38, 0
      %p472 = por %p470, %p471
      %p473 = scmp.ne.s32.totalorder %s462, %s465
      %p474 = scmp.eq.s32.totalorder %s43, 1
      %p475 = por %p473, %p474
      %p476 = scmp.ne.s32.totalorder %s465, %s466
      %p477 = scmp.eq.s32.totalorder %s43, 0
      %p478 = por %p476, %p477
      %p479 = scmp.ne.s32.totalorder %s465, %s466
      %p480 = scmp.eq.s32.totalorder %s44, 1
      %p481 = por %p479, %p480
      %p483 = scmp.ne.s32.totalorder %s466, %s482
      %p484 = scmp.eq.s32.totalorder %s44, 0
      %p485 = por %p483, %p484
      %p486 = scmp.le.s32.totalorder 1, %s38
      %p487 = scmp.lt.s32.totalorder %s38, 3
      %p488 = pnand %p486, %p487
      %p489 = pneg %p488
      // Predicated region
      $region9: #{decoder_forward.3} parent=5 // pred_check
        _
      $region10: #{decoder_forward.3} parent=5 // pred_check_branch
        %491 = sbr.rel (%p488) target = $region12
      $region11: #{decoder_forward.3} parent=5 // pred_region
        %s492 = ssub.s32 %s38, 1
        // Predicated region
        $region13: #{decoder_forward.3} parent=11 // pred_check
          %p493 = pneg %p111
        $region14: #{decoder_forward.3} parent=11 // pred_check_branch
          %495 = sbr.rel (%p493) target = $region16
        $region15: #{decoder_forward.3} parent=11 // pred_region
          _
        $region16: #{decoder_forward.3} parent=11 // pred_fallthru
          _
        // Predicated region
        $region17: #{decoder_forward.3} parent=11 // pred_check
          %p496 = pneg %p132
        $region18: #{decoder_forward.3} parent=11 // pred_check_branch
          %498 = sbr.rel (%p496) target = $region20
        $region19: #{decoder_forward.3} parent=11 // pred_region
          _
        $region20: #{decoder_forward.3} parent=11 // pred_fallthru
          _
        // Predicated region
        $region21: #{decoder_forward.3} parent=11 // pred_check
          %p499 = pneg %p153
        $region22: #{decoder_forward.3} parent=11 // pred_check_branch
          %501 = sbr.rel (%p499) target = $region24
        $region23: #{decoder_forward.3} parent=11 // pred_region
          _
        $region24: #{decoder_forward.3} parent=11 // pred_fallthru
          _
        // Predicated region
        $region25: #{decoder_forward.3} parent=11 // pred_check
          %p502 = pneg %p174
        $region26: #{decoder_forward.3} parent=11 // pred_check_branch
          %504 = sbr.rel (%p502) target = $region28
        $region27: #{decoder_forward.3} parent=11 // pred_region
          _
        $region28: #{decoder_forward.3} parent=11 // pred_fallthru
          _
        // Predicated region
        $region29: #{decoder_forward.3} parent=11 // pred_check
          %p505 = pneg %p195
        $region30: #{decoder_forward.3} parent=11 // pred_check_branch
          %507 = sbr.rel (%p505) target = $region32
        $region31: #{decoder_forward.3} parent=11 // pred_region
          _
        $region32: #{decoder_forward.3} parent=11 // pred_fallthru
          _
        // Predicated region
        $region33: #{decoder_forward.3} parent=11 // pred_check
          %p508 = pneg %p216
        $region34: #{decoder_forward.3} parent=11 // pred_check_branch
          %510 = sbr.rel (%p508) target = $region36
        $region35: #{decoder_forward.3} parent=11 // pred_region
          _
        $region36: #{decoder_forward.3} parent=11 // pred_fallthru
          _
        // Predicated region
        $region37: #{decoder_forward.3} parent=11 // pred_check
          %p511 = pneg %p237
        $region38: #{decoder_forward.3} parent=11 // pred_check_branch
          %513 = sbr.rel (%p511) target = $region40
        $region39: #{decoder_forward.3} parent=11 // pred_region
          _
        $region40: #{decoder_forward.3} parent=11 // pred_fallthru
          _
        // Predicated region
        $region41: #{decoder_forward.3} parent=11 // pred_check
          %p514 = pneg %p258
        $region42: #{decoder_forward.3} parent=11 // pred_check_branch
          %516 = sbr.rel (%p514) target = $region44
        $region43: #{decoder_forward.3} parent=11 // pred_region
          _
        $region44: #{decoder_forward.3} parent=11 // pred_fallthru
          _
        // Predicated region
        $region45: #{decoder_forward.3} parent=11 // pred_check
          %p517 = pneg %p279
        $region46: #{decoder_forward.3} parent=11 // pred_check_branch
          %519 = sbr.rel (%p517) target = $region48
        $region47: #{decoder_forward.3} parent=11 // pred_region
          _
        $region48: #{decoder_forward.3} parent=11 // pred_fallthru
          _
        // Predicated region
        $region49: #{decoder_forward.3} parent=11 // pred_check
          %p520 = pneg %p300
        $region50: #{decoder_forward.3} parent=11 // pred_check_branch
          %522 = sbr.rel (%p520) target = $region52
        $region51: #{decoder_forward.3} parent=11 // pred_region
          _
        $region52: #{decoder_forward.3} parent=11 // pred_fallthru
          _
        // Predicated region
        $region53: #{decoder_forward.3} parent=11 // pred_check
          %p523 = pneg %p321
        $region54: #{decoder_forward.3} parent=11 // pred_check_branch
          %525 = sbr.rel (%p523) target = $region56
        $region55: #{decoder_forward.3} parent=11 // pred_region
          _
        $region56: #{decoder_forward.3} parent=11 // pred_fallthru
          _
        // Predicated region
        $region57: #{decoder_forward.3} parent=11 // pred_check
          %p526 = pneg %p342
        $region58: #{decoder_forward.3} parent=11 // pred_check_branch
          %528 = sbr.rel (%p526) target = $region60
        $region59: #{decoder_forward.3} parent=11 // pred_region
          _
        $region60: #{decoder_forward.3} parent=11 // pred_fallthru
          _
        // Predicated region
        $region61: #{decoder_forward.3} parent=11 // pred_check
          %p529 = pneg %p363
        $region62: #{decoder_forward.3} parent=11 // pred_check_branch
          %531 = sbr.rel (%p529) target = $region64
        $region63: #{decoder_forward.3} parent=11 // pred_region
          _
        $region64: #{decoder_forward.3} parent=11 // pred_fallthru
          _
        // Predicated region
        $region65: #{decoder_forward.3} parent=11 // pred_check
          %p532 = pneg %p384
        $region66: #{decoder_forward.3} parent=11 // pred_check_branch
          %534 = sbr.rel (%p532) target = $region68
        $region67: #{decoder_forward.3} parent=11 // pred_region
          _
        $region68: #{decoder_forward.3} parent=11 // pred_fallthru
          _
        // Predicated region
        $region69: #{decoder_forward.3} parent=11 // pred_check
          %p535 = pneg %p405
        $region70: #{decoder_forward.3} parent=11 // pred_check_branch
          %537 = sbr.rel (%p535) target = $region72
        $region71: #{decoder_forward.3} parent=11 // pred_region
          _
        $region72: #{decoder_forward.3} parent=11 // pred_fallthru
          _
        // Predicated region
        $region73: #{decoder_forward.3} parent=11 // pred_check
          %p538 = pneg %p426
        $region74: #{decoder_forward.3} parent=11 // pred_check_branch
          %540 = sbr.rel (%p538) target = $region76
        $region75: #{decoder_forward.3} parent=11 // pred_region
          _
        $region76: #{decoder_forward.3} parent=11 // pred_fallthru
          _
      $region12: #{decoder_forward.3} parent=5 // pred_fallthru
        _
      %p541 = scmp.lt.s32.totalorder %s38, 2
      // Predicated region
      $region77: #{decoder_forward.3} parent=5 // pred_check
        %p542 = pneg %p541
      $region78: #{decoder_forward.3} parent=5 // pred_check_branch
        %544 = sbr.rel (%p542) target = $region80
      $region79: #{decoder_forward.3} parent=5 // pred_region
        // Predicated region
        $region81: #{decoder_forward.3} parent=79 // pred_check
          %p545 = pneg %p58
        $region82: #{decoder_forward.3} parent=79 // pred_check_branch
          %547 = sbr.rel (%p545) target = $region84
        $region83: #{decoder_forward.3} parent=79 // pred_region
          %p548 = scmp.lt.s32.totalorder %s38, 1
          %s549 = scalar_select %p548, %s38, 1
          %s550 = smul.addr %s549, 4
          %s551 = scalar_lea.vmem %s1, %s550
        $region84: #{decoder_forward.3} parent=79 // pred_fallthru
          _
        // Predicated region
        $region85: #{decoder_forward.3} parent=79 // pred_check
          %p552 = pneg %p84
        $region86: #{decoder_forward.3} parent=79 // pred_check_branch
          %554 = sbr.rel (%p552) target = $region88
        $region87: #{decoder_forward.3} parent=79 // pred_region
          %p555 = scmp.lt.s32.totalorder %s38, 1
          %s556 = scalar_select %p555, %s38, 1
          %s557 = smul.addr %s556, 4
          %s558 = scalar_lea.vmem %s2, %s557
        $region88: #{decoder_forward.3} parent=79 // pred_fallthru
          _
      $region80: #{decoder_forward.3} parent=5 // pred_fallthru
        _
      %p559 = scmp.le.s32.totalorder 1, %s38
      %p560 = scmp.lt.s32.totalorder %s38, 3
      %p561 = pnand %p559, %p560
      %p562 = pneg %p561
      // Predicated region
      $region89: #{decoder_forward.3} parent=5 // pred_check
        _
      $region90: #{decoder_forward.3} parent=5 // pred_check_branch
        %564 = sbr.rel (%p561) target = $region92
      $region91: #{decoder_forward.3} parent=5 // pred_region
        %s565 = ssub.s32 %s38, 1
        %p566 = scmp.lt.s32.totalorder %s43, 1
        %s567 = scalar_select %p566, %s43, 1
        %s568 = smul.addr %s567, 4
        %s569 = scalar_lea.vmem %s1, %s568
        %p570 = pneg %p64
        %p571 = pneg %p61
        %p572 = scmp.lt.s32.totalorder %s43, 1
        %s573 = scalar_select %p572, %s43, 1
        %s574 = smul.addr %s573, 4
        %s575 = scalar_lea.vmem %s2, %s574
        %p576 = pneg %p90
        %p577 = pneg %p87
        %p578 = pneg %p111
        %p579 = pneg %p108
        %p580 = pneg %p132
        %p581 = pneg %p129
        %p582 = pneg %p153
        %p583 = pneg %p150
        %p584 = pneg %p174
        %p585 = pneg %p171
        %p586 = pneg %p195
        %p587 = pneg %p192
        %p588 = pneg %p216
        %p589 = pneg %p213
        %p590 = pneg %p237
        %p591 = pneg %p234
        %p592 = pneg %p258
        %p593 = pneg %p255
        %p594 = pneg %p279
        %p595 = pneg %p276
        %p596 = pneg %p300
        %p597 = pneg %p297
        %p598 = pneg %p321
        %p599 = pneg %p318
        %p600 = pneg %p342
        %p601 = pneg %p339
        %p602 = pneg %p363
        %p603 = pneg %p360
        %p604 = pneg %p384
        %p605 = pneg %p381
        %p606 = pneg %p405
        %p607 = pneg %p402
        %p608 = pneg %p426
        %p609 = pneg %p423
        %p610 = pneg %p452
        %p611 = pneg %p449
        %p612 = scmp.lt.s32.totalorder %s43, 1
        %s613 = scalar_select %p612, %s43, 1
        %s614 = smul.addr %s613, 4
        %s615 = scalar_lea.vmem %s19, %s614
        %p616 = pneg %p478
        %p617 = pneg %p475
        %s618 = sand.u32 %s465, 1
        %s619 = scalar_lea.sflag [#allocation5], %s618
        %s620 = sand.u32 %s465, 1
        %s621 = smul.addr %s620, 4
        %s622 = scalar_lea.vmem [#allocation4], %s621
        %p623 = scmp.lt.s32.totalorder %s43, 1
        %s624 = scalar_select %p623, %s43, 1
        %s625 = smul.addr %s624, 4
        %s626 = scalar_lea.vmem %s1, %s625
        %p627 = scmp.lt.s32.totalorder %s43, 1
        %s628 = scalar_select %p627, %s43, 1
        %s629 = smul.addr %s628, 4
        %s630 = scalar_lea.vmem %s2, %s629
        %p631 = scmp.lt.s32.totalorder %s43, 1
        %s632 = scalar_select %p631, %s43, 1
        %s633 = smul.addr %s632, 4
        %s634 = scalar_lea.vmem %s19, %s633
        %v636 = vld [vmem:[%s626] sm:$0xf]
        %v637 = vunpack.c.l.bf16 %v636
        %v638 = vmul.f32 %v637, 5.656854
        %v639 = vld [vmem:[%s3] sm:$0xff]
        %v640 = vadd.f32 %v638, %v639
        %v641 = vpack.c.bf16 %v640, %v640
        %vm642 = vcmask 257024
        %643 = vst.msk [vmem:[%s622] sm:$0xf] %vm642, %v641
        %v644 = vld [vmem:[%s4] sm:$0xf]
        %v645 = vld [vmem:[%s4 + $0x4] sm:$0xf]
        %v646 = vld [vmem:[%s4 + $0x8] sm:$0xf]
        %v647 = vld [vmem:[%s4 + $0xc] sm:$0xf]
        %v652 = vunpack.c.l.b16 %v644
        %v653 = vunpack.c.l.b16 %v645
        %v654 = vunpack.c.l.b16 %v646
        %v655 = vunpack.c.l.b16 %v647
        %v656 = vpack.c.b16 %v653, %v652
        %v657 = vpack.c.b16 %v655, %v654
        %vm660 = vcmask 261120
        %v662 = vsel %vm660, %v641, 0
        %664 = vmatpush.bf16.msra.mxu0 0
        %665 = vmatpush.bf16.msra.mxu0 0
        %666 = vmatpush.bf16.msra.mxu0 0
        %667 = vmatpush.bf16.msra.mxu0 0
        %668 = vmatpush.bf16.msra.mxu0 0
        %669 = vmatpush.bf16.msra.mxu0 0
        %670 = vmatpush.bf16.msra.mxu0 %v657
        %671 = vmatpush.bf16.msra.mxu0 %v656
        %672 = vmatmul.bf16.gmra.mxu0 %v662
        %v673 = vpop.f32.mrf.mxu0
        %v674 = vadd.f32 0.0, %v673
        %v675 = vpop.f32.mrf.mxu0
        %676 = vdwg.mxu0
        %v677 = vlaneseq
        %v678 = vshrl.u32 %v677, 7
        %v679 = vlaneseq
        %v680 = vand.u32 %v679, 127
        %v681 = vmul.f32 %v674, 0.35355338
        %v682 = vld [vmem:[%s5] sm:$0xf]
        %v683 = vld [vmem:[%s5 + $0x4] sm:$0xf]
        %v684 = vld [vmem:[%s5 + $0x8] sm:$0xf]
        %v685 = vld [vmem:[%s5 + $0xc] sm:$0xf]
        %vm686 = vcmp.ge.s32.totalorder %v678, %v680
        %v687 = vpack.c.bf16 %v681, %v681
        %v688 = vpack.c.bf16 %v674, %v674
        %690 = vrot.lane.b32.xlu0 %v688, 96
        %v691 = vpop.permute.xlu0 %690
        %vm692 = vcmask 64512
        %v694 = vsel %vm692, %v687, 0
        %v697 = vsel %vm692, %v691, 0
        %699 = vmatpush.bf16.xpose.msra.mxu0 0
        %700 = vmatpush.bf16.xpose.msra.mxu0 0
        %701 = vmatpush.bf16.xpose.msra.mxu0 0
        %702 = vmatpush.bf16.xpose.msra.mxu0 0
        %703 = vmatpush.bf16.xpose.msra.mxu0 0
        %704 = vmatpush.bf16.xpose.msra.mxu0 0
        %705 = vmatpush.bf16.xpose.msra.mxu0 0
        %706 = vmatpush.bf16.xpose.msra.mxu0 %v697
        %707 = vmatmul.bf16.gmra.mxu0 %v694
        %v708 = vpop.f32.mrf.mxu0
        %v709 = vadd.f32 0.0, %v708
        %v710 = vpop.f32.mrf.mxu0
        %711 = vdwg.mxu0
        %v712 = vsel %vm686, %v709, -1000000.0
        %v713 = vsel %vm692, %v712, -inf
        %714 = vmax.xlane.f32.xlu0 %v713
        %v715 = vpop.xlane.xlu0 %714
        %v716 = vsub.f32 %v712, %v715
        %v717 = vmul.f32 %v716, 1.442695
        %v718 = vpow.pop %v717
        %v719 = vsel %vm692, %v718, 0.0
        %720 = vadd.xlane.f32.xlu0 %v719
        %v721 = vpop.xlane.xlu0 %720
        %v722 = vrcp.pop %v721
        %v723 = vmul.f32 %v718, %v722
        %v724 = vpack.c.bf16 %v723, %v723
        %725 = vrot.lane.b32.xlu0 %v688, 64
        %v726 = vpop.permute.xlu0 %725
        %v728 = vsel %vm692, %v724, 0
        %vm730 = vcmask 1043456
        %v732 = vsel %vm730, %v726, 0
        %734 = vmatpush.bf16.msra.mxu0 0
        %735 = vmatpush.bf16.msra.mxu0 0
        %736 = vmatpush.bf16.msra.mxu0 0
        %737 = vmatpush.bf16.msra.mxu0 0
        %738 = vmatpush.bf16.msra.mxu0 0
        %739 = vmatpush.bf16.msra.mxu0 0
        %740 = vmatpush.bf16.msra.mxu0 0
        %741 = vmatpush.bf16.msra.mxu0 %v732
        %742 = vmatmul.bf16.gmra.mxu0 %v728
        %v743 = vpop.f32.mrf.mxu0
        %v744 = vadd.f32 0.0, %v743
        %v745 = vpop.f32.mrf.mxu0
        %746 = vdwg.mxu0
        %748 = vrot.lane.b32.xlu0 %v687, 120
        %v749 = vpop.permute.xlu0 %748
        %750 = vrot.lane.b32.xlu0 %v688, 88
        %v751 = vpop.permute.xlu0 %750
        %v753 = vsel %vm692, %v749, 0
        %v756 = vsel %vm692, %v751, 0
        %758 = vmatpush.bf16.xpose.msra.mxu0 0
        %759 = vmatpush.bf16.xpose.msra.mxu0 0
        %760 = vmatpush.bf16.xpose.msra.mxu0 0
        %761 = vmatpush.bf16.xpose.msra.mxu0 0
        %762 = vmatpush.bf16.xpose.msra.mxu0 0
        %763 = vmatpush.bf16.xpose.msra.mxu0 0
        %764 = vmatpush.bf16.xpose.msra.mxu0 0
        %765 = vmatpush.bf16.xpose.msra.mxu0 %v756
        %766 = vmatmul.bf16.gmra.mxu0 %v753
        %v767 = vpop.f32.mrf.mxu0
        %v768 = vadd.f32 0.0, %v767
        %v769 = vpop.f32.mrf.mxu0
        %770 = vdwg.mxu0
        %v771 = vsel %vm686, %v768, -1000000.0
        %v772 = vsel %vm692, %v771, -inf
        %773 = vmax.xlane.f32.xlu0 %v772
        %v774 = vpop.xlane.xlu0 %773
        %v775 = vsub.f32 %v771, %v774
        %v776 = vmul.f32 %v775, 1.442695
        %v777 = vpow.pop %v776
        %v778 = vsel %vm692, %v777, 0.0
        %779 = vadd.xlane.f32.xlu0 %v778
        %v780 = vpop.xlane.xlu0 %779
        %v781 = vrcp.pop %v780
        %v782 = vmul.f32 %v777, %v781
        %v783 = vpack.c.bf16 %v782, %v782
        %784 = vrot.lane.b32.xlu0 %v688, 56
        %v785 = vpop.permute.xlu0 %784
        %v787 = vsel %vm692, %v783, 0
        %v790 = vsel %vm730, %v785, 0
        %792 = vmatpush.bf16.msra.mxu0 0
        %793 = vmatpush.bf16.msra.mxu0 0
        %794 = vmatpush.bf16.msra.mxu0 0
        %795 = vmatpush.bf16.msra.mxu0 0
        %796 = vmatpush.bf16.msra.mxu0 0
        %797 = vmatpush.bf16.msra.mxu0 0
        %798 = vmatpush.bf16.msra.mxu0 0
        %799 = vmatpush.bf16.msra.mxu0 %v790
        %800 = vmatmul.bf16.gmra.mxu0 %v787
        %v801 = vpop.f32.mrf.mxu0
        %v802 = vadd.f32 0.0, %v801
        %v803 = vpop.f32.mrf.mxu0
        %804 = vdwg.mxu0
        %805 = vrot.lane.b32.xlu0 %v687, 112
        %v806 = vpop.permute.xlu0 %805
        %807 = vrot.lane.b32.xlu0 %v688, 80
        %v808 = vpop.permute.xlu0 %807
        %v810 = vsel %vm692, %v806, 0
        %v813 = vsel %vm692, %v808, 0
        %815 = vmatpush.bf16.xpose.msra.mxu0 0
        %816 = vmatpush.bf16.xpose.msra.mxu0 0
        %817 = vmatpush.bf16.xpose.msra.mxu0 0
        %818 = vmatpush.bf16.xpose.msra.mxu0 0
        %819 = vmatpush.bf16.xpose.msra.mxu0 0
        %820 = vmatpush.bf16.xpose.msra.mxu0 0
        %821 = vmatpush.bf16.xpose.msra.mxu0 0
        %822 = vmatpush.bf16.xpose.msra.mxu0 %v813
        %823 = vmatmul.bf16.gmra.mxu0 %v810
        %v824 = vpop.f32.mrf.mxu0
        %v825 = vadd.f32 0.0, %v824
        %v826 = vpop.f32.mrf.mxu0
        %827 = vdwg.mxu0
        %v828 = vsel %vm686, %v825, -1000000.0
        %v829 = vsel %vm692, %v828, -inf
        %830 = vmax.xlane.f32.xlu0 %v829
        %v831 = vpop.xlane.xlu0 %830
        %v832 = vsub.f32 %v828, %v831
        %v833 = vmul.f32 %v832, 1.442695
        %v834 = vpow.pop %v833
        %v835 = vsel %vm692, %v834, 0.0
        %836 = vadd.xlane.f32.xlu0 %v835
        %v837 = vpop.xlane.xlu0 %836
        %v838 = vrcp.pop %v837
        %v839 = vmul.f32 %v834, %v838
        %v840 = vpack.c.bf16 %v839, %v839
        %841 = vrot.lane.b32.xlu0 %v688, 48
        %v842 = vpop.permute.xlu0 %841
        %v844 = vsel %vm692, %v840, 0
        %v847 = vsel %vm730, %v842, 0
        %849 = vmatpush.bf16.msra.mxu0 0
        %850 = vmatpush.bf16.msra.mxu0 0
        %851 = vmatpush.bf16.msra.mxu0 0
        %852 = vmatpush.bf16.msra.mxu0 0
        %853 = vmatpush.bf16.msra.mxu0 0
        %854 = vmatpush.bf16.msra.mxu0 0
        %855 = vmatpush.bf16.msra.mxu0 0
        %856 = vmatpush.bf16.msra.mxu0 %v847
        %857 = vmatmul.bf16.gmra.mxu0 %v844
        %v858 = vpop.f32.mrf.mxu0
        %v859 = vadd.f32 0.0, %v858
        %v860 = vpop.f32.mrf.mxu0
        %861 = vdwg.mxu0
        %862 = vrot.lane.b32.xlu0 %v687, 104
        %v863 = vpop.permute.xlu0 %862
        %864 = vrot.lane.b32.xlu0 %v688, 72
        %v865 = vpop.permute.xlu0 %864
        %v867 = vsel %vm692, %v863, 0
        %v870 = vsel %vm692, %v865, 0
        %872 = vmatpush.bf16.xpose.msra.mxu0 0
        %873 = vmatpush.bf16.xpose.msra.mxu0 0
        %874 = vmatpush.bf16.xpose.msra.mxu0 0
        %875 = vmatpush.bf16.xpose.msra.mxu0 0
        %876 = vmatpush.bf16.xpose.msra.mxu0 0
        %877 = vmatpush.bf16.xpose.msra.mxu0 0
        %878 = vmatpush.bf16.xpose.msra.mxu0 0
        %879 = vmatpush.bf16.xpose.msra.mxu0 %v870
        %880 = vmatmul.bf16.gmra.mxu0 %v867
        %v881 = vpop.f32.mrf.mxu0
        %v882 = vadd.f32 0.0, %v881
        %v883 = vpop.f32.mrf.mxu0
        %884 = vdwg.mxu0
        %v885 = vsel %vm686, %v882, -1000000.0
        %v886 = vsel %vm692, %v885, -inf
        %887 = vmax.xlane.f32.xlu0 %v886
        %v888 = vpop.xlane.xlu0 %887
        %v889 = vsub.f32 %v885, %v888
        %v890 = vmul.f32 %v889, 1.442695
        %v891 = vpow.pop %v890
        %v892 = vsel %vm692, %v891, 0.0
        %893 = vadd.xlane.f32.xlu0 %v892
        %v894 = vpop.xlane.xlu0 %893
        %v895 = vrcp.pop %v894
        %v896 = vmul.f32 %v891, %v895
        %v897 = vpack.c.bf16 %v896, %v896
        %898 = vrot.lane.b32.xlu0 %v688, 40
        %v899 = vpop.permute.xlu0 %898
        %v901 = vsel %vm692, %v897, 0
        %v904 = vsel %vm730, %v899, 0
        %906 = vmatpush.bf16.msra.mxu0 0
        %907 = vmatpush.bf16.msra.mxu0 0
        %908 = vmatpush.bf16.msra.mxu0 0
        %909 = vmatpush.bf16.msra.mxu0 0
        %910 = vmatpush.bf16.msra.mxu0 0
        %911 = vmatpush.bf16.msra.mxu0 0
        %912 = vmatpush.bf16.msra.mxu0 0
        %913 = vmatpush.bf16.msra.mxu0 %v904
        %914 = vmatmul.bf16.gmra.mxu0 %v901
        %v915 = vpop.f32.mrf.mxu0
        %v916 = vadd.f32 0.0, %v915
        %v917 = vpop.f32.mrf.mxu0
        %918 = vdwg.mxu0
        %920 = vrot.lane.b32.xlu0 %v802, 8
        %v921 = vpop.permute.xlu0 %920
        %924 = vrot.lane.b32.xlu0 %v859, 16
        %v925 = vpop.permute.xlu0 %924
        %928 = vrot.lane.b32.xlu0 %v916, 24
        %v929 = vpop.permute.xlu0 %928
        %v931 = vsel %vm692, %v744, %v921
        %vm932 = vcmask 130048
        %v933 = vsel %vm932, %v931, %v925
        %vm934 = vcmask 195584
        %v935 = vsel %vm934, %v933, %v929
        %v936 = vpack.c.bf16 %v935, %v935
        %v941 = vunpack.c.l.b16 %v682
        %v942 = vunpack.c.l.b16 %v683
        %v943 = vunpack.c.l.b16 %v684
        %v944 = vunpack.c.l.b16 %v685
        %v945 = vpack.c.b16 %v942, %v941
        %v946 = vpack.c.b16 %v944, %v943
        %v950 = vsel %vm660, %v936, 0
        %952 = vmatpush.bf16.msra.mxu0 0
        %953 = vmatpush.bf16.msra.mxu0 0
        %954 = vmatpush.bf16.msra.mxu0 0
        %955 = vmatpush.bf16.msra.mxu0 0
        %956 = vmatpush.bf16.msra.mxu0 0
        %957 = vmatpush.bf16.msra.mxu0 0
        %958 = vmatpush.bf16.msra.mxu0 %v946
        %959 = vmatpush.bf16.msra.mxu0 %v945
        %960 = vmatmul.bf16.gmra.mxu0 %v950
        %v961 = vpop.f32.mrf.mxu0
        %v962 = vadd.f32 0.0, %v961
        %v963 = vpop.f32.mrf.mxu0
        %964 = vdwg.mxu0
        %v965 = vld [vmem:[%s6] sm:$0x1]
        %v966 = vld [vmem:[%s7] sm:$0x1]
        %v967 = vadd.f32 %v640, %v962
        %v968 = vsel %vm660, %v967, 0.0
        %969 = vadd.xlane.f32.xlu0 %v968
        %v970 = vpop.xlane.xlu0 %969
        %v971 = vrcp.pop 32.0
        %v972 = vmul.f32 32.0, %v971
        %v973 = vsub.f32 1.0, %v972
        %v974 = vmul.f32 %v971, %v973
        %v975 = vadd.f32 %v971, %v974
        %vm976 = vweird.f32 %v971
        %v977 = vsel %vm976, %v971, %v975
        %v978 = vmul.f32 %v970, %v977
        %v979 = vsub.f32 %v967, %v978
        %v980 = vmul.f32 %v979, %v979
        %v981 = vsel %vm660, %v980, 0.0
        %982 = vadd.xlane.f32.xlu0 %v981
        %v983 = vpop.xlane.xlu0 %982
        %v984 = vmul.f32 %v983, %v977
        %v985 = vadd.f32 %v984, 1e-05
        %v986 = vrsqrt.pop %v985
        %v987 = vmul.f32 %v986, %v985
        %v988 = vmul.f32 %v987, %v986
        %v989 = vmul.f32 0.5, %v988
        %v990 = vsub.f32 1.5, %v989
        %v991 = vmul.f32 %v986, %v990
        %vm992 = vweird.f32 %v985
        %vm993 = vweird.f32 %v986
        %vm994 = vmor %vm992, %vm993
        %v995 = vsel %vm994, %v986, %v991
        %v996 = vmul.f32 %v979, %v995
        %v998 = vperm.slane %v965, 0
        %v1000 = vmul.f32 %v996, %v998
        %v1002 = vperm.slane %v966, 0
        %v1004 = vadd.f32 %v1000, %v1002
        %v1005 = vpack.c.bf16 %v1004, %v1004
        %v1006 = vld [vmem:[%s8] sm:$0xf]
        %v1007 = vld [vmem:[%s8 + $0x4] sm:$0xf]
        %v1008 = vld [vmem:[%s8 + $0x8] sm:$0xf]
        %v1009 = vld [vmem:[%s8 + $0xc] sm:$0xf]
        %v1014 = vunpack.c.l.b16 %v1006
        %v1015 = vunpack.c.l.b16 %v1007
        %v1016 = vunpack.c.l.b16 %v1008
        %v1017 = vunpack.c.l.b16 %v1009
        %v1018 = vpack.c.b16 %v1015, %v1014
        %v1019 = vpack.c.b16 %v1017, %v1016
        %v1023 = vsel %vm660, %v1005, 0
        %1025 = vmatpush.bf16.msra.mxu0 0
        %1026 = vmatpush.bf16.msra.mxu0 0
        %1027 = vmatpush.bf16.msra.mxu0 0
        %1028 = vmatpush.bf16.msra.mxu0 0
        %1029 = vmatpush.bf16.msra.mxu0 0
        %1030 = vmatpush.bf16.msra.mxu0 0
        %1031 = vmatpush.bf16.msra.mxu0 %v1019
        %1032 = vmatpush.bf16.msra.mxu0 %v1018
        %1033 = vmatmul.bf16.gmra.mxu0 %v1023
        %v1034 = vpop.f32.mrf.mxu0
        %v1035 = vadd.f32 0.0, %v1034
        %v1036 = vpop.f32.mrf.mxu0
        %1037 = vdwg.mxu0
        %v1038 = vld [vmem:[%s630] sm:$0xf]
        %v1039 = vld [vmem:[%s9] sm:$0xf]
        %v1040 = vld [vmem:[%s9 + $0x4] sm:$0xf]
        %v1041 = vld [vmem:[%s9 + $0x8] sm:$0xf]
        %v1042 = vld [vmem:[%s9 + $0xc] sm:$0xf]
        %v1047 = vunpack.c.l.b16 %v1039
        %v1048 = vunpack.c.l.b16 %v1040
        %v1049 = vunpack.c.l.b16 %v1041
        %v1050 = vunpack.c.l.b16 %v1042
        %v1051 = vpack.c.b16 %v1048, %v1047
        %v1052 = vpack.c.b16 %v1050, %v1049
        %v1056 = vsel %vm660, %v1038, 0
        %1058 = vmatpush.bf16.msra.mxu0 0
        %1059 = vmatpush.bf16.msra.mxu0 0
        %1060 = vmatpush.bf16.msra.mxu0 0
        %1061 = vmatpush.bf16.msra.mxu0 0
        %1062 = vmatpush.bf16.msra.mxu0 0
        %1063 = vmatpush.bf16.msra.mxu0 0
        %1064 = vmatpush.bf16.msra.mxu0 %v1052
        %1065 = vmatpush.bf16.msra.mxu0 %v1051
        %1066 = vmatmul.bf16.gmra.mxu0 %v1056
        %v1067 = vpop.f32.mrf.mxu0
        %v1068 = vadd.f32 0.0, %v1067
        %v1069 = vpop.f32.mrf.mxu0
        %1070 = vdwg.mxu0
        %v1071 = vmul.f32 %v1035, 0.35355338
        %v1072 = vld [vmem:[%s10] sm:$0xf]
        %v1073 = vld [vmem:[%s10 + $0x4] sm:$0xf]
        %v1074 = vld [vmem:[%s10 + $0x8] sm:$0xf]
        %v1075 = vld [vmem:[%s10 + $0xc] sm:$0xf]
        %s1076 = sld [smem:[#allocation3 + %s43]]
        %v1077 = vstv %s1076
        %vm1078 = vcmp.lt.s32.totalorder %v680, %v1077
        %v1079 = vpack.c.bf16 %v1071, %v1071
        %v1080 = vpack.c.bf16 %v1068, %v1068
        %v1082 = vsel %vm692, %v1079, 0
        %v1085 = vsel %vm692, %v1080, 0
        %1087 = vmatpush.bf16.xpose.msra.mxu0 0
        %1088 = vmatpush.bf16.xpose.msra.mxu0 0
        %1089 = vmatpush.bf16.xpose.msra.mxu0 0
        %1090 = vmatpush.bf16.xpose.msra.mxu0 0
        %1091 = vmatpush.bf16.xpose.msra.mxu0 0
        %1092 = vmatpush.bf16.xpose.msra.mxu0 0
        %1093 = vmatpush.bf16.xpose.msra.mxu0 0
        %1094 = vmatpush.bf16.xpose.msra.mxu0 %v1085
        %1095 = vmatmul.bf16.gmra.mxu0 %v1082
        %v1096 = vpop.f32.mrf.mxu0
        %v1097 = vadd.f32 0.0, %v1096
        %v1098 = vpop.f32.mrf.mxu0
        %1099 = vdwg.mxu0
        %v1100 = vsel %vm1078, %v1097, -1000000.0
        %v1101 = vsel %vm692, %v1100, -inf
        %1102 = vmax.xlane.f32.xlu0 %v1101
        %v1103 = vpop.xlane.xlu0 %1102
        %v1104 = vsub.f32 %v1100, %v1103
        %v1105 = vmul.f32 %v1104, 1.442695
        %v1106 = vpow.pop %v1105
        %v1107 = vsel %vm692, %v1106, 0.0
        %1108 = vadd.xlane.f32.xlu0 %v1107
        %v1109 = vpop.xlane.xlu0 %1108
        %v1110 = vrcp.pop %v1109
        %v1111 = vmul.f32 %v1106, %v1110
        %v1112 = vpack.c.bf16 %v1111, %v1111
        %1114 = vrot.lane.b32.xlu0 %v1080, 96
        %v1115 = vpop.permute.xlu0 %1114
        %v1117 = vsel %vm692, %v1112, 0
        %v1120 = vsel %vm730, %v1115, 0
        %1122 = vmatpush.bf16.msra.mxu0 0
        %1123 = vmatpush.bf16.msra.mxu0 0
        %1124 = vmatpush.bf16.msra.mxu0 0
        %1125 = vmatpush.bf16.msra.mxu0 0
        %1126 = vmatpush.bf16.msra.mxu0 0
        %1127 = vmatpush.bf16.msra.mxu0 0
        %1128 = vmatpush.bf16.msra.mxu0 0
        %1129 = vmatpush.bf16.msra.mxu0 %v1120
        %1130 = vmatmul.bf16.gmra.mxu0 %v1117
        %v1131 = vpop.f32.mrf.mxu0
        %v1132 = vadd.f32 0.0, %v1131
        %v1133 = vpop.f32.mrf.mxu0
        %1134 = vdwg.mxu0
        %1136 = vrot.lane.b32.xlu0 %v1079, 120
        %v1137 = vpop.permute.xlu0 %1136
        %1138 = vrot.lane.b32.xlu0 %v1080, 120
        %v1139 = vpop.permute.xlu0 %1138
        %v1141 = vsel %vm692, %v1137, 0
        %v1144 = vsel %vm692, %v1139, 0
        %1146 = vmatpush.bf16.xpose.msra.mxu0 0
        %1147 = vmatpush.bf16.xpose.msra.mxu0 0
        %1148 = vmatpush.bf16.xpose.msra.mxu0 0
        %1149 = vmatpush.bf16.xpose.msra.mxu0 0
        %1150 = vmatpush.bf16.xpose.msra.mxu0 0
        %1151 = vmatpush.bf16.xpose.msra.mxu0 0
        %1152 = vmatpush.bf16.xpose.msra.mxu0 0
        %1153 = vmatpush.bf16.xpose.msra.mxu0 %v1144
        %1154 = vmatmul.bf16.gmra.mxu0 %v1141
        %v1155 = vpop.f32.mrf.mxu0
        %v1156 = vadd.f32 0.0, %v1155
        %v1157 = vpop.f32.mrf.mxu0
        %1158 = vdwg.mxu0
        %v1159 = vsel %vm1078, %v1156, -1000000.0
        %v1160 = vsel %vm692, %v1159, -inf
        %1161 = vmax.xlane.f32.xlu0 %v1160
        %v1162 = vpop.xlane.xlu0 %1161
        %v1163 = vsub.f32 %v1159, %v1162
        %v1164 = vmul.f32 %v1163, 1.442695
        %v1165 = vpow.pop %v1164
        %v1166 = vsel %vm692, %v1165, 0.0
        %1167 = vadd.xlane.f32.xlu0 %v1166
        %v1168 = vpop.xlane.xlu0 %1167
        %v1169 = vrcp.pop %v1168
        %v1170 = vmul.f32 %v1165, %v1169
        %v1171 = vpack.c.bf16 %v1170, %v1170
        %1172 = vrot.lane.b32.xlu0 %v1080, 88
        %v1173 = vpop.permute.xlu0 %1172
        %v1175 = vsel %vm692, %v1171, 0
        %v1178 = vsel %vm730, %v1173, 0
        %1180 = vmatpush.bf16.msra.mxu0 0
        %1181 = vmatpush.bf16.msra.mxu0 0
        %1182 = vmatpush.bf16.msra.mxu0 0
        %1183 = vmatpush.bf16.msra.mxu0 0
        %1184 = vmatpush.bf16.msra.mxu0 0
        %1185 = vmatpush.bf16.msra.mxu0 0
        %1186 = vmatpush.bf16.msra.mxu0 0
        %1187 = vmatpush.bf16.msra.mxu0 %v1178
        %1188 = vmatmul.bf16.gmra.mxu0 %v1175
        %v1189 = vpop.f32.mrf.mxu0
        %v1190 = vadd.f32 0.0, %v1189
        %v1191 = vpop.f32.mrf.mxu0
        %1192 = vdwg.mxu0
        %1193 = vrot.lane.b32.xlu0 %v1079, 112
        %v1194 = vpop.permute.xlu0 %1193
        %1195 = vrot.lane.b32.xlu0 %v1080, 112
        %v1196 = vpop.permute.xlu0 %1195
        %v1198 = vsel %vm692, %v1194, 0
        %v1201 = vsel %vm692, %v1196, 0
        %1203 = vmatpush.bf16.xpose.msra.mxu0 0
        %1204 = vmatpush.bf16.xpose.msra.mxu0 0
        %1205 = vmatpush.bf16.xpose.msra.mxu0 0
        %1206 = vmatpush.bf16.xpose.msra.mxu0 0
        %1207 = vmatpush.bf16.xpose.msra.mxu0 0
        %1208 = vmatpush.bf16.xpose.msra.mxu0 0
        %1209 = vmatpush.bf16.xpose.msra.mxu0 0
        %1210 = vmatpush.bf16.xpose.msra.mxu0 %v1201
        %1211 = vmatmul.bf16.gmra.mxu0 %v1198
        %v1212 = vpop.f32.mrf.mxu0
        %v1213 = vadd.f32 0.0, %v1212
        %v1214 = vpop.f32.mrf.mxu0
        %1215 = vdwg.mxu0
        %v1216 = vsel %vm1078, %v1213, -1000000.0
        %v1217 = vsel %vm692, %v1216, -inf
        %1218 = vmax.xlane.f32.xlu0 %v1217
        %v1219 = vpop.xlane.xlu0 %1218
        %v1220 = vsub.f32 %v1216, %v1219
        %v1221 = vmul.f32 %v1220, 1.442695
        %v1222 = vpow.pop %v1221
        %v1223 = vsel %vm692, %v1222, 0.0
        %1224 = vadd.xlane.f32.xlu0 %v1223
        %v1225 = vpop.xlane.xlu0 %1224
        %v1226 = vrcp.pop %v1225
        %v1227 = vmul.f32 %v1222, %v1226
        %v1228 = vpack.c.bf16 %v1227, %v1227
        %1229 = vrot.lane.b32.xlu0 %v1080, 80
        %v1230 = vpop.permute.xlu0 %1229
        %v1232 = vsel %vm692, %v1228, 0
        %v1235 = vsel %vm730, %v1230, 0
        %1237 = vmatpush.bf16.msra.mxu0 0
        %1238 = vmatpush.bf16.msra.mxu0 0
        %1239 = vmatpush.bf16.msra.mxu0 0
        %1240 = vmatpush.bf16.msra.mxu0 0
        %1241 = vmatpush.bf16.msra.mxu0 0
        %1242 = vmatpush.bf16.msra.mxu0 0
        %1243 = vmatpush.bf16.msra.mxu0 0
        %1244 = vmatpush.bf16.msra.mxu0 %v1235
        %1245 = vmatmul.bf16.gmra.mxu0 %v1232
        %v1246 = vpop.f32.mrf.mxu0
        %v1247 = vadd.f32 0.0, %v1246
        %v1248 = vpop.f32.mrf.mxu0
        %1249 = vdwg.mxu0
        %1250 = vrot.lane.b32.xlu0 %v1079, 104
        %v1251 = vpop.permute.xlu0 %1250
        %1252 = vrot.lane.b32.xlu0 %v1080, 104
        %v1253 = vpop.permute.xlu0 %1252
        %v1255 = vsel %vm692, %v1251, 0
        %v1258 = vsel %vm692, %v1253, 0
        %1260 = vmatpush.bf16.xpose.msra.mxu0 0
        %1261 = vmatpush.bf16.xpose.msra.mxu0 0
        %1262 = vmatpush.bf16.xpose.msra.mxu0 0
        %1263 = vmatpush.bf16.xpose.msra.mxu0 0
        %1264 = vmatpush.bf16.xpose.msra.mxu0 0
        %1265 = vmatpush.bf16.xpose.msra.mxu0 0
        %1266 = vmatpush.bf16.xpose.msra.mxu0 0
        %1267 = vmatpush.bf16.xpose.msra.mxu0 %v1258
        %1268 = vmatmul.bf16.gmra.mxu0 %v1255
        %v1269 = vpop.f32.mrf.mxu0
        %v1270 = vadd.f32 0.0, %v1269
        %v1271 = vpop.f32.mrf.mxu0
        %1272 = vdwg.mxu0
        %v1273 = vsel %vm1078, %v1270, -1000000.0
        %v1274 = vsel %vm692, %v1273, -inf
        %1275 = vmax.xlane.f32.xlu0 %v1274
        %v1276 = vpop.xlane.xlu0 %1275
        %v1277 = vsub.f32 %v1273, %v1276
        %v1278 = vmul.f32 %v1277, 1.442695
        %v1279 = vpow.pop %v1278
        %v1280 = vsel %vm692, %v1279, 0.0
        %1281 = vadd.xlane.f32.xlu0 %v1280
        %v1282 = vpop.xlane.xlu0 %1281
        %v1283 = vrcp.pop %v1282
        %v1284 = vmul.f32 %v1279, %v1283
        %v1285 = vpack.c.bf16 %v1284, %v1284
        %1286 = vrot.lane.b32.xlu0 %v1080, 72
        %v1287 = vpop.permute.xlu0 %1286
        %v1289 = vsel %vm692, %v1285, 0
        %v1292 = vsel %vm730, %v1287, 0
        %1294 = vmatpush.bf16.msra.mxu0 0
        %1295 = vmatpush.bf16.msra.mxu0 0
        %1296 = vmatpush.bf16.msra.mxu0 0
        %1297 = vmatpush.bf16.msra.mxu0 0
        %1298 = vmatpush.bf16.msra.mxu0 0
        %1299 = vmatpush.bf16.msra.mxu0 0
        %1300 = vmatpush.bf16.msra.mxu0 0
        %1301 = vmatpush.bf16.msra.mxu0 %v1292
        %1302 = vmatmul.bf16.gmra.mxu0 %v1289
        %v1303 = vpop.f32.mrf.mxu0
        %v1304 = vadd.f32 0.0, %v1303
        %v1305 = vpop.f32.mrf.mxu0
        %1306 = vdwg.mxu0
        %1308 = vrot.lane.b32.xlu0 %v1190, 8
        %v1309 = vpop.permute.xlu0 %1308
        %1312 = vrot.lane.b32.xlu0 %v1247, 16
        %v1313 = vpop.permute.xlu0 %1312
        %1316 = vrot.lane.b32.xlu0 %v1304, 24
        %v1317 = vpop.permute.xlu0 %1316
        %v1319 = vsel %vm692, %v1132, %v1309
        %v1320 = vsel %vm932, %v1319, %v1313
        %v1321 = vsel %vm934, %v1320, %v1317
        %v1322 = vpack.c.bf16 %v1321, %v1321
        %v1327 = vunpack.c.l.b16 %v1072
        %v1328 = vunpack.c.l.b16 %v1073
        %v1329 = vunpack.c.l.b16 %v1074
        %v1330 = vunpack.c.l.b16 %v1075
        %v1331 = vpack.c.b16 %v1328, %v1327
        %v1332 = vpack.c.b16 %v1330, %v1329
        %v1336 = vsel %vm660, %v1322, 0
        %1338 = vmatpush.bf16.msra.mxu0 0
        %1339 = vmatpush.bf16.msra.mxu0 0
        %1340 = vmatpush.bf16.msra.mxu0 0
        %1341 = vmatpush.bf16.msra.mxu0 0
        %1342 = vmatpush.bf16.msra.mxu0 0
        %1343 = vmatpush.bf16.msra.mxu0 0
        %1344 = vmatpush.bf16.msra.mxu0 %v1332
        %1345 = vmatpush.bf16.msra.mxu0 %v1331
        %1346 = vmatmul.bf16.gmra.mxu0 %v1336
        %v1347 = vpop.f32.mrf.mxu0
        %v1348 = vadd.f32 0.0, %v1347
        %v1349 = vpop.f32.mrf.mxu0
        %1350 = vdwg.mxu0
        %v1351 = vld [vmem:[%s11] sm:$0x1]
        %v1352 = vld [vmem:[%s12] sm:$0x1]
        %v1353 = vadd.f32 %v1004, %v1348
        %v1354 = vsel %vm660, %v1353, 0.0
        %1355 = vadd.xlane.f32.xlu0 %v1354
        %v1356 = vpop.xlane.xlu0 %1355
        %v1357 = vmul.f32 %v1356, %v977
        %v1358 = vsub.f32 %v1353, %v1357
        %v1359 = vmul.f32 %v1358, %v1358
        %v1360 = vsel %vm660, %v1359, 0.0
        %1361 = vadd.xlane.f32.xlu0 %v1360
        %v1362 = vpop.xlane.xlu0 %1361
        %v1363 = vmul.f32 %v1362, %v977
        %v1364 = vadd.f32 %v1363, 1e-05
        %v1365 = vrsqrt.pop %v1364
        %v1366 = vmul.f32 %v1365, %v1364
        %v1367 = vmul.f32 %v1366, %v1365
        %v1368 = vmul.f32 0.5, %v1367
        %v1369 = vsub.f32 1.5, %v1368
        %v1370 = vmul.f32 %v1365, %v1369
        %vm1371 = vweird.f32 %v1364
        %vm1372 = vweird.f32 %v1365
        %vm1373 = vmor %vm1371, %vm1372
        %v1374 = vsel %vm1373, %v1365, %v1370
        %v1375 = vmul.f32 %v1358, %v1374
        %v1377 = vperm.slane %v1351, 0
        %v1379 = vmul.f32 %v1375, %v1377
        %v1381 = vperm.slane %v1352, 0
        %v1383 = vadd.f32 %v1379, %v1381
        %v1384 = vpack.c.bf16 %v1383, %v1383
        %v1385 = vld [vmem:[%s13] sm:$0xf]
        %v1386 = vld [vmem:[%s13 + $0x4] sm:$0xf]
        %v1387 = vld [vmem:[%s13 + $0x8] sm:$0xf]
        %v1388 = vld [vmem:[%s13 + $0xc] sm:$0xf]
        %v1389 = vld [vmem:[%s14] sm:$0x1]
        %v1391 = vperm.slane %v1389, 0
        %v1397 = vunpack.c.l.b16 %v1385
        %v1398 = vunpack.c.l.b16 %v1386
        %v1399 = vunpack.c.l.b16 %v1387
        %v1400 = vunpack.c.l.b16 %v1388
        %v1401 = vpack.c.b16 %v1398, %v1397
        %v1402 = vpack.c.b16 %v1400, %v1399
        %v1406 = vsel %vm660, %v1384, 0
        %1408 = vmatpush.bf16.msra.mxu0 0
        %1409 = vmatpush.bf16.msra.mxu0 0
        %1410 = vmatpush.bf16.msra.mxu0 0
        %1411 = vmatpush.bf16.msra.mxu0 0
        %1412 = vmatpush.bf16.msra.mxu0 0
        %1413 = vmatpush.bf16.msra.mxu0 0
        %1414 = vmatpush.bf16.msra.mxu0 %v1402
        %1415 = vmatpush.bf16.msra.mxu0 %v1401
        %1416 = vmatmul.bf16.gmra.mxu0 %v1406
        %v1417 = vpop.f32.mrf.mxu0
        %v1418 = vadd.f32 %v1391, %v1417
        %v1419 = vpop.f32.mrf.mxu0
        %1420 = vdwg.mxu0
        %v1421 = vmax.f32 %v1418, 0.0
        %v1422 = vpack.c.bf16 %v1421, %v1421
        %v1423 = vld [vmem:[%s15] sm:$0xf]
        %v1424 = vld [vmem:[%s15 + $0x4] sm:$0xf]
        %v1425 = vld [vmem:[%s15 + $0x8] sm:$0xf]
        %v1426 = vld [vmem:[%s15 + $0xc] sm:$0xf]
        %v1427 = vld [vmem:[%s15 + $0x10] sm:$0xf]
        %v1428 = vld [vmem:[%s15 + $0x14] sm:$0xf]
        %v1429 = vld [vmem:[%s15 + $0x18] sm:$0xf]
        %v1430 = vld [vmem:[%s15 + $0x1c] sm:$0xf]
        %v1431 = vld [vmem:[%s16] sm:$0x1]
        %v1433 = vperm.slane %v1431, 0
        %v1443 = vunpack.c.l.b16 %v1423
        %v1444 = vunpack.c.l.b16 %v1424
        %v1445 = vunpack.c.l.b16 %v1425
        %v1446 = vunpack.c.l.b16 %v1426
        %v1447 = vunpack.c.l.b16 %v1427
        %v1448 = vunpack.c.l.b16 %v1428
        %v1449 = vunpack.c.l.b16 %v1429
        %v1450 = vunpack.c.l.b16 %v1430
        %v1451 = vpack.c.b16 %v1444, %v1443
        %v1452 = vpack.c.b16 %v1446, %v1445
        %v1453 = vpack.c.b16 %v1448, %v1447
        %v1454 = vpack.c.b16 %v1450, %v1449
        %vm1459 = vcmask 523264
        %v1461 = vsel %vm1459, %v1422, 0
        %1463 = vmatpush.bf16.msra.mxu0 0
        %1464 = vmatpush.bf16.msra.mxu0 0
        %1465 = vmatpush.bf16.msra.mxu0 0
        %1466 = vmatpush.bf16.msra.mxu0 0
        %1467 = vmatpush.bf16.msra.mxu0 %v1454
        %1468 = vmatpush.bf16.msra.mxu0 %v1453
        %1469 = vmatpush.bf16.msra.mxu0 %v1452
        %1470 = vmatpush.bf16.msra.mxu0 %v1451
        %1471 = vmatmul.bf16.gmra.mxu0 %v1461
        %v1472 = vpop.f32.mrf.mxu0
        %v1473 = vadd.f32 %v1433, %v1472
        %v1474 = vpop.f32.mrf.mxu0
        %1475 = vdwg.mxu0
        %v1476 = vld [vmem:[%s17] sm:$0x1]
        %v1477 = vld [vmem:[%s18] sm:$0x1]
        %v1478 = vadd.f32 %v1383, %v1473
        %v1479 = vsel %vm660, %v1478, 0.0
        %1480 = vadd.xlane.f32.xlu0 %v1479
        %v1481 = vpop.xlane.xlu0 %1480
        %v1482 = vmul.f32 %v1481, %v977
        %v1483 = vsub.f32 %v1478, %v1482
        %v1484 = vmul.f32 %v1483, %v1483
        %v1485 = vsel %vm660, %v1484, 0.0
        %1486 = vadd.xlane.f32.xlu0 %v1485
        %v1487 = vpop.xlane.xlu0 %1486
        %v1488 = vmul.f32 %v1487, %v977
        %v1489 = vadd.f32 %v1488, 1e-05
        %v1490 = vrsqrt.pop %v1489
        %v1491 = vmul.f32 %v1490, %v1489
        %v1492 = vmul.f32 %v1491, %v1490
        %v1493 = vmul.f32 0.5, %v1492
        %v1494 = vsub.f32 1.5, %v1493
        %v1495 = vmul.f32 %v1490, %v1494
        %vm1496 = vweird.f32 %v1489
        %vm1497 = vweird.f32 %v1490
        %vm1498 = vmor %vm1496, %vm1497
        %v1499 = vsel %vm1498, %v1490, %v1495
        %v1500 = vmul.f32 %v1483, %v1499
        %v1502 = vperm.slane %v1476, 0
        %v1504 = vmul.f32 %v1500, %v1502
        %v1506 = vperm.slane %v1477, 0
        %v1508 = vadd.f32 %v1504, %v1506
        %v1509 = vpack.c.bf16 %v1508, %v1508
        %1510 = vst.msk [vmem:[%s634] sm:$0xf] %vm642, %v1509
        %p1511 = scmp.lt.s32.totalorder %s43, 1
        %s1512 = scalar_select %p1511, %s43, 1
        %s1513 = smul.addr %s1512, 4
        %s1514 = scalar_lea.vmem %s19, %s1513
        %s1515 = sand.u32 %s465, 1
        %s1516 = scalar_lea.sflag [#allocation5], %s1515
        %s1517 = sand.u32 %s465, 1
        %s1518 = smul.addr %s1517, 4
        %s1519 = scalar_lea.vmem [#allocation4], %s1518
        // Predicated region
        $region93: #{decoder_forward.3} parent=91 // pred_check
          %p1520 = pneg %p449
        $region94: #{decoder_forward.3} parent=91 // pred_check_branch
          %1522 = sbr.rel (%p1520) target = $region96
        $region95: #{decoder_forward.3} parent=91 // pred_region
          _
        $region96: #{decoder_forward.3} parent=91 // pred_fallthru
          _
        // Predicated region
        $region97: #{decoder_forward.3} parent=91 // pred_check
          %p1523 = pneg %p475
        $region98: #{decoder_forward.3} parent=91 // pred_check_branch
          %1525 = sbr.rel (%p1523) target = $region100
        $region99: #{decoder_forward.3} parent=91 // pred_region
          %1527 = vsyncadd %s1516, 0
          %s1528 = smul.addr %s43, 4
          %s1529 = scalar_lea.hbm %s20, %s1528
          %s1531 = sshll.u32 %s1519, 4
          %s1532 = int_to_ptr.vmem [resolvable:$true] %s1531
          %s1533 = sshll.u32 %s1529, 4
          %s1534 = int_to_ptr.hbm [resolvable:$true] %s1533
          %1536 = dma.vmem_to_hbm [thread:$0]  %s1532, 64, %s1534, %s1516
        $region100: #{decoder_forward.3} parent=91 // pred_fallthru
          _
      $region92: #{decoder_forward.3} parent=5 // pred_fallthru
        _
      %p1537 = scmp.le.s32.totalorder 2, %s38
      // Predicated region
      $region101: #{decoder_forward.3} parent=5 // pred_check
        %p1538 = pneg %p1537
      $region102: #{decoder_forward.3} parent=5 // pred_check_branch
        %1540 = sbr.rel (%p1538) target = $region104
      $region103: #{decoder_forward.3} parent=5 // pred_region
        %s1541 = ssub.s32 %s38, 2
        // Predicated region
        $region105: #{decoder_forward.3} parent=103 // pred_check
          %p1542 = pneg %p455
        $region106: #{decoder_forward.3} parent=103 // pred_check_branch
          %1544 = sbr.rel (%p1542) target = $region108
        $region107: #{decoder_forward.3} parent=103 // pred_region
          %p1545 = scmp.lt.s32.totalorder %s44, 1
          %s1546 = scalar_select %p1545, %s44, 1
          %s1547 = smul.addr %s1546, 4
          %s1548 = scalar_lea.vmem %s19, %s1547
        $region108: #{decoder_forward.3} parent=103 // pred_fallthru
          _
        // Predicated region
        $region109: #{decoder_forward.3} parent=103 // pred_check
          %p1549 = pneg %p481
        $region110: #{decoder_forward.3} parent=103 // pred_check_branch
          %1551 = sbr.rel (%p1549) target = $region112
        $region111: #{decoder_forward.3} parent=103 // pred_region
          %s1552 = sand.u32 %s466, 1
          %s1553 = scalar_lea.sflag [#allocation5], %s1552
          %s1554 = sand.u32 %s466, 1
          %s1555 = smul.addr %s1554, 4
          %s1556 = scalar_lea.vmem [#allocation4], %s1555
          %1558 = dma.done %s1553, 64
        $region112: #{decoder_forward.3} parent=103 // pred_fallthru
          _
      $region104: #{decoder_forward.3} parent=5 // pred_fallthru
        _
    $region6: #{decoder_forward.3} parent=1 // loop_footer
      %s42 = sadd.s32 1, %s38
    $region7: #{decoder_forward.3} parent=1 // loop_footer_branch
      %37 = sbr.rel target = $region3
    $region8: #{decoder_forward.3} parent=1 // loop_exit
      _
    %1559 = vsyncpa [#allocation5], 1
    %s1560 = scalar_lea.sflag [#allocation5], 1
    %1561 = vsyncpa %s1560, 1

</llo_original>
